<compile_context>
chip_gen: v7x
topology: tpu7x:2x2x1
jax: 0.10.0
libtpu: 0.0.40
codegen_flags: <defaults>
</compile_context>

<pallas_src>
import jax
import jax.numpy as jnp
from jax import lax
from jax.experimental import pallas as pl
from jax.experimental.pallas import tpu as pltpu

# ----------------------- problem sizes (consistent with the module) ---------
B = 2      # batch
N = 8      # number of nodes (node_embedding.size(1)), N < hidden_size branch
H = 32     # args['hidden_size'] == embedding dim == LSTM hidden
T = H      # LSTM sequence length (= conv out-channel count)


# ----------------------- fused kernel ----------------------------------------
def gcn_fused_kernel(x_ref, dfi_ref, a_ref, wconv_ref, bconv_ref,
                     wih_ref, whh_ref, blstm_ref, o_ref):
    # x_ref:     (B, N, H)   node embeddings
    # dfi_ref:   (B, H, H)   conv input, node axis pre-padded to H in the wrapper
    # a_ref:     (B, N, N)   raw adjacency
    # wconv_ref: (2T, 2*3H)  bf16 block-diag conv weights, rows interleaved (2t+b)
    # bconv_ref: (2T, 1)     conv bias, rows interleaved (2t+b)
    # wih_ref:   (H, 4H)     bf16 LSTM W_ih^T (gate order i, f, g, o)
    # whh_ref:   (H, 4H)     bf16 LSTM W_hh^T
    # blstm_ref: (1, 4H)     b_ih + b_hh
    # o_ref:     (B, N, H)   output
    f32, bf16 = jnp.float32, jnp.bfloat16

    wconv = wconv_ref[...]
    bconv = bconv_ref[...]
    wih = wih_ref[...]
    whh = whh_ref[...]
    blstm = blstm_ref[...]

    # ---- prologue: Conv1d(k=3, pad=1) for BOTH batches in one matmul, output
    #      already interleaved as rows (2t + b) thanks to the block-diagonal weight ----
    col = lax.broadcasted_iota(jnp.int32, (H, H), 1)
    stacks = []
    for b in range(B):                          # static unroll, B = 2
        d_b = dfi_ref[b]                        # (Cin=H, L=H) f32
        # shifted taps with zero padding at the boundaries
        left = jnp.where(col == 0, 0.0, pltpu.roll(d_b, shift=1, axis=1))            # x[:, l-1]
        right = jnp.where(col == H - 1, 0.0, pltpu.roll(d_b, shift=H - 1, axis=1))    # x[:, l+1]
        stacks.append(jnp.concatenate([left, d_b, right], axis=0))                    # (3H, H)
    x_stack = jnp.concatenate(stacks, axis=0).astype(bf16)                            # (2*3H, H)

    dyn_i = jnp.dot(wconv, x_stack, preferred_element_type=f32) + bconv               # (2T, H)
    # hoisted LSTM input projection for all steps and both batches: ONE matmul
    gx = jnp.dot(dyn_i.astype(bf16), wih, preferred_element_type=f32) + blstm         # (2T, 4H)

    # ---- 32-step LSTM recurrence, both batch rows together, h/c carried as values ----
    t_iota = lax.broadcasted_iota(jnp.int32, (T, 1), 0)      # precomputed step mask iota
    hseq = jnp.zeros((B, T, H), f32)                          # hidden sequence accumulator
    h = jnp.zeros((B, H), f32)
    c = jnp.zeros((B, H), f32)
    for t in range(T):                                        # static full unroll
        gates = gx[2 * t:2 * t + 2, :] + jnp.dot(h.astype(bf16), whh,
                                                 preferred_element_type=f32)   # (B, 4H)
        sig = jax.nn.sigmoid(gates)                           # one full-width EUP call
        g_g = jnp.tanh(gates[:, 2 * H:3 * H])                 # g gate only
        c = sig[:, H:2 * H] * c + sig[:, 0:H] * g_g           # f*c + i*g
        h = sig[:, 3 * H:4 * H] * jnp.tanh(c)                 # o*tanh(c)
        # record h_t (select is off the serial h->h chain; no scratch stores)
        hseq = jnp.where(t_iota == t, h[:, None, :], hseq)

    # ---- batched epilogue: adjacency normalization + dynamic linear + sigmoid ----
    rr = lax.broadcasted_iota(jnp.int32, (N, N), 0)
    cc = lax.broadcasted_iota(jnp.int32, (N, N), 1)
    eye = (rr == cc).astype(f32)
    a_hat = a_ref[...] + eye[None, :, :]                       # (B, N, N)
    d = jnp.sum(a_hat, axis=2, keepdims=True)                  # row degrees (B, N, 1)
    dinv = jnp.where(d > 0.0, lax.rsqrt(d), 0.0)               # D^-1/2, inf -> 0
    # D^-1/2 (A+I) D^-1/2 @ X  ==  dinv * ((A+I) @ (dinv * X))
    xs = (dinv * x_ref[...]).astype(bf16)                      # (B, N, H)
    ax = dinv * jnp.einsum('bij,bjh->bih', a_hat.astype(bf16), xs,
                           preferred_element_type=f32)         # (B, N, H)
    out = jnp.einsum('bnh,bhk->bnk', ax.astype(bf16), hseq.astype(bf16),
                     preferred_element_type=f32)               # (B, N, H)
    o_ref[...] = jax.nn.sigmoid(out)


# ----------------------- wrapper ---------------------------------------------
@jax.jit
def gcn_forward(node_embedding, adjacency, params):
    x = node_embedding.astype(jnp.float32)
    a = adjacency.astype(jnp.float32)
    # N -> H zero padding of the conv input done host/XLA-side (out of the kernel)
    if N < H:
        pad = jnp.zeros((B, H - N, H), jnp.float32)
        dfi = jnp.concatenate([x, pad], axis=1)                # (B, H, H)
    else:
        dfi = x[:, N - H:, :]

    vmem = pl.BlockSpec(memory_space=pltpu.MemorySpace.VMEM)   # full-array VMEM blocks
    return pl.pallas_call(
        gcn_fused_kernel,
        out_shape=jax.ShapeDtypeStruct((B, N, H), jnp.float32),
        in_specs=[vmem] * 8,
        out_specs=vmem,
    )(x, dfi, a,
      params["conv_w_blockdiag"], params["conv_b_interleaved"],
      params["w_ih_t"], params["w_hh_t"], params["b_row"])


def init_params(key):
    ks = jax.random.split(key, 6)
    scale = 1.0 / jnp.sqrt(jnp.float32(H))
    conv_w = jax.random.uniform(ks[0], (H, H, 3), jnp.float32, -scale, scale)   # (Cout, Cin, k)
    conv_b = jax.random.uniform(ks[1], (H,), jnp.float32, -scale, scale)
    w_ih = jax.random.uniform(ks[2], (4 * H, H), jnp.float32, -scale, scale)
    w_hh = jax.random.uniform(ks[3], (4 * H, H), jnp.float32, -scale, scale)
    b_ih = jax.random.uniform(ks[4], (4 * H,), jnp.float32, -scale, scale)
    b_hh = jax.random.uniform(ks[5], (4 * H,), jnp.float32, -scale, scale)

    # stack conv taps along Cin: (Cout=H, 3H) operand for a single MXU matmul
    wstk = jnp.concatenate([conv_w[:, :, 0], conv_w[:, :, 1], conv_w[:, :, 2]], axis=1)
    zeros = jnp.zeros_like(wstk)
    # block-diagonal + batch-interleaved rows (2t+b): the conv matmul then emits the
    # LSTM inputs for both batches already in the layout the recurrence slices.
    w_b0 = jnp.concatenate([wstk, zeros], axis=1)              # (H, 6H) batch-0 block
    w_b1 = jnp.concatenate([zeros, wstk], axis=1)              # (H, 6H) batch-1 block
    w_blockdiag = jnp.stack([w_b0, w_b1], axis=1).reshape(2 * H, 6 * H)   # (2T, 6H)
    b_interleaved = jnp.repeat(conv_b, B).reshape(2 * H, 1)               # (2T, 1)

    return {
        "conv_w_blockdiag": w_blockdiag.astype(jnp.bfloat16),  # (2T, 2*3H) bf16
        "conv_b_interleaved": b_interleaved,                   # (2T, 1)    f32
        "w_ih_t": jnp.transpose(w_ih).astype(jnp.bfloat16),    # (H, 4H)    bf16
        "w_hh_t": jnp.transpose(w_hh).astype(jnp.bfloat16),    # (H, 4H)    bf16
        "b_row": (b_ih + b_hh).reshape(1, 4 * H),              # (1, 4H)    f32
    }


if __name__ == "__main__":
    key = jax.random.PRNGKey(0)
    k_x, k_a, k_p = jax.random.split(key, 3)
    node_embedding = jax.random.normal(k_x, (B, N, H), jnp.float32)
    adjacency = jax.random.uniform(k_a, (B, N, N), jnp.float32)   # non-negative weights
    params = init_params(k_p)

    out = gcn_forward(node_embedding, adjacency, params)
    out = jax.block_until_ready(out)
    assert out.shape == (B, N, H)
    assert bool(jnp.all(jnp.isfinite(out)))
    print("KERNEL_OK")
</pallas_src>

<mosaic_0001>
module attributes {stable_mosaic.version = 11 : i64} {
  func.func @gcn_fused_kernel(%arg0: memref<2x8x32xf32, #tpu.memory_space<vmem>>, %arg1: memref<2x32x32xf32, #tpu.memory_space<vmem>>, %arg2: memref<2x8x8xf32, #tpu.memory_space<vmem>>, %arg3: memref<64x192xbf16, #tpu.memory_space<vmem>>, %arg4: memref<64x1xf32, #tpu.memory_space<vmem>>, %arg5: memref<32x128xbf16, #tpu.memory_space<vmem>>, %arg6: memref<32x128xbf16, #tpu.memory_space<vmem>>, %arg7: memref<1x128xf32, #tpu.memory_space<vmem>>, %arg8: memref<2x8x32xf32, #tpu.memory_space<vmem>>) attributes {dimension_semantics = [], scalar_prefetch = 0 : i64, scratch_operands = 0 : i64, tpu.core_type = #tpu.core_type<tc>} {
    %c0 = arith.constant 0 : index
    %c0_0 = arith.constant 0 : index
    %0 = vector.load %arg3[%c0, %c0_0] : memref<64x192xbf16, #tpu.memory_space<vmem>>, vector<64x192xbf16>
    %c0_1 = arith.constant 0 : index
    %c0_2 = arith.constant 0 : index
    %1 = vector.load %arg4[%c0_1, %c0_2] : memref<64x1xf32, #tpu.memory_space<vmem>>, vector<64x1xf32>
    %c0_3 = arith.constant 0 : index
    %c0_4 = arith.constant 0 : index
    %2 = vector.load %arg5[%c0_3, %c0_4] : memref<32x128xbf16, #tpu.memory_space<vmem>>, vector<32x128xbf16>
    %c0_5 = arith.constant 0 : index
    %c0_6 = arith.constant 0 : index
    %3 = vector.load %arg6[%c0_5, %c0_6] : memref<32x128xbf16, #tpu.memory_space<vmem>>, vector<32x128xbf16>
    %c0_7 = arith.constant 0 : index
    %c0_8 = arith.constant 0 : index
    %4 = vector.load %arg7[%c0_7, %c0_8] : memref<1x128xf32, #tpu.memory_space<vmem>>, vector<1x128xf32>
    %5 = tpu.iota {dimensions = array<i32: 1>} : vector<32x32xi32>
    %c0_9 = arith.constant 0 : index
    %c0_10 = arith.constant 0 : index
    %c0_11 = arith.constant 0 : index
    %6 = vector.load %arg1[%c0_9, %c0_10, %c0_11] : memref<2x32x32xf32, #tpu.memory_space<vmem>>, vector<1x32x32xf32>
    %7 = vector.shape_cast %6 : vector<1x32x32xf32> to vector<32x32xf32>
    %c0_i32 = arith.constant 0 : i32
    %8 = vector.broadcast %c0_i32 : i32 to vector<32x32xi32>
    %9 = arith.cmpi eq, %5, %8 : vector<32x32xi32>
    %c1_i32 = arith.constant 1 : i32
    %10 = tpu.dynamic_rotate %7 by %c1_i32 dim 1 : vector<32x32xf32>, i32 -> vector<32x32xf32>
    %cst = arith.constant 0.000000e+00 : f32
    %11 = vector.broadcast %cst : f32 to vector<32x32xf32>
    %12 = arith.select %9, %11, %10 : vector<32x32xi1>, vector<32x32xf32>
    %c31_i32 = arith.constant 31 : i32
    %13 = vector.broadcast %c31_i32 : i32 to vector<32x32xi32>
    %14 = arith.cmpi eq, %5, %13 : vector<32x32xi32>
    %c31_i32_12 = arith.constant 31 : i32
    %15 = tpu.dynamic_rotate %7 by %c31_i32_12 dim 1 : vector<32x32xf32>, i32 -> vector<32x32xf32>
    %cst_13 = arith.constant 0.000000e+00 : f32
    %16 = vector.broadcast %cst_13 : f32 to vector<32x32xf32>
    %17 = arith.select %14, %16, %15 : vector<32x32xi1>, vector<32x32xf32>
    %18 = tpu.concatenate %12, %7, %17 in 0 : vector<32x32xf32>, vector<32x32xf32>, vector<32x32xf32> -> vector<96x32xf32>
    %c1 = arith.constant 1 : index
    %c0_14 = arith.constant 0 : index
    %c0_15 = arith.constant 0 : index
    %19 = vector.load %arg1[%c1, %c0_14, %c0_15] : memref<2x32x32xf32, #tpu.memory_space<vmem>>, vector<1x32x32xf32>
    %20 = vector.shape_cast %19 : vector<1x32x32xf32> to vector<32x32xf32>
    %c0_i32_16 = arith.constant 0 : i32
    %21 = vector.broadcast %c0_i32_16 : i32 to vector<32x32xi32>
    %22 = arith.cmpi eq, %5, %21 : vector<32x32xi32>
    %c1_i32_17 = arith.constant 1 : i32
    %23 = tpu.dynamic_rotate %20 by %c1_i32_17 dim 1 : vector<32x32xf32>, i32 -> vector<32x32xf32>
    %cst_18 = arith.constant 0.000000e+00 : f32
    %24 = vector.broadcast %cst_18 : f32 to vector<32x32xf32>
    %25 = arith.select %22, %24, %23 : vector<32x32xi1>, vector<32x32xf32>
    %c31_i32_19 = arith.constant 31 : i32
    %26 = vector.broadcast %c31_i32_19 : i32 to vector<32x32xi32>
    %27 = arith.cmpi eq, %5, %26 : vector<32x32xi32>
    %c31_i32_20 = arith.constant 31 : i32
    %28 = tpu.dynamic_rotate %20 by %c31_i32_20 dim 1 : vector<32x32xf32>, i32 -> vector<32x32xf32>
    %cst_21 = arith.constant 0.000000e+00 : f32
    %29 = vector.broadcast %cst_21 : f32 to vector<32x32xf32>
    %30 = arith.select %27, %29, %28 : vector<32x32xi1>, vector<32x32xf32>
    %31 = tpu.concatenate %25, %20, %30 in 0 : vector<32x32xf32>, vector<32x32xf32>, vector<32x32xf32> -> vector<96x32xf32>
    %32 = tpu.concatenate %18, %31 in 0 : vector<96x32xf32>, vector<96x32xf32> -> vector<192x32xf32>
    %33 = arith.truncf %32 : vector<192x32xf32> to vector<192x32xbf16>
    %cst_22 = arith.constant dense<0.000000e+00> : vector<64x32xf32>
    %34 = tpu.matmul %0, %33, %cst_22 {dimension_numbers = #tpu.dot_dimension_numbers<[1], [0], [0], [1], [0, 0, 1, 1], [], []>} : vector<64x192xbf16>, vector<192x32xbf16>, vector<64x32xf32> -> vector<64x32xf32>
    %35 = vector.broadcast %1 : vector<64x1xf32> to vector<64x32xf32>
    %36 = arith.addf %34, %35 : vector<64x32xf32>
    %37 = arith.truncf %36 : vector<64x32xf32> to vector<64x32xbf16>
    %cst_23 = arith.constant dense<0.000000e+00> : vector<64x128xf32>
    %38 = tpu.matmul %37, %2, %cst_23 {dimension_numbers = #tpu.dot_dimension_numbers<[1], [0], [0], [1], [0, 0, 1, 1], [], []>} : vector<64x32xbf16>, vector<32x128xbf16>, vector<64x128xf32> -> vector<64x128xf32>
    %39 = vector.broadcast %4 : vector<1x128xf32> to vector<64x128xf32>
    %40 = arith.addf %38, %39 : vector<64x128xf32>
    %41 = tpu.iota {dimensions = array<i32: 0>} : vector<32x1xi32>
    %cst_24 = arith.constant 0.000000e+00 : f32
    %42 = vector.broadcast %cst_24 : f32 to vector<2x32x32xf32>
    %cst_25 = arith.constant 0.000000e+00 : f32
    %43 = vector.broadcast %cst_25 : f32 to vector<2x32xf32>
    %cst_26 = arith.constant 0.000000e+00 : f32
    %44 = vector.broadcast %cst_26 : f32 to vector<2x32xf32>
    %45 = vector.extract_strided_slice %40 {offsets = [0, 0], sizes = [2, 128], strides = [1, 1]} : vector<64x128xf32> to vector<2x128xf32>
    %46 = arith.truncf %43 : vector<2x32xf32> to vector<2x32xbf16>
    %cst_27 = arith.constant dense<0.000000e+00> : vector<2x128xf32>
    %47 = tpu.matmul %46, %3, %cst_27 {dimension_numbers = #tpu.dot_dimension_numbers<[1], [0], [0], [1], [0, 0, 1, 1], [], []>} : vector<2x32xbf16>, vector<32x128xbf16>, vector<2x128xf32> -> vector<2x128xf32>
    %48 = arith.addf %45, %47 : vector<2x128xf32>
    %49 = arith.negf %48 : vector<2x128xf32>
    %50 = math.exp %49 : vector<2x128xf32>
    %cst_28 = arith.constant 1.000000e+00 : f32
    %51 = vector.broadcast %cst_28 : f32 to vector<2x128xf32>
    %52 = arith.addf %51, %50 : vector<2x128xf32>
    %53 = arith.divf %51, %52 : vector<2x128xf32>
    %54 = vector.extract_strided_slice %48 {offsets = [0, 64], sizes = [2, 32], strides = [1, 1]} : vector<2x128xf32> to vector<2x32xf32>
    %55 = math.tanh %54 : vector<2x32xf32>
    %56 = vector.extract_strided_slice %53 {offsets = [0, 32], sizes = [2, 32], strides = [1, 1]} : vector<2x128xf32> to vector<2x32xf32>
    %57 = arith.mulf %56, %44 : vector<2x32xf32>
    %58 = vector.extract_strided_slice %53 {offsets = [0, 0], sizes = [2, 32], strides = [1, 1]} : vector<2x128xf32> to vector<2x32xf32>
    %59 = arith.mulf %58, %55 : vector<2x32xf32>
    %60 = arith.addf %57, %59 : vector<2x32xf32>
    %61 = vector.extract_strided_slice %53 {offsets = [0, 96], sizes = [2, 32], strides = [1, 1]} : vector<2x128xf32> to vector<2x32xf32>
    %62 = math.tanh %60 : vector<2x32xf32>
    %63 = arith.mulf %61, %62 : vector<2x32xf32>
    %c0_i32_29 = arith.constant 0 : i32
    %64 = vector.broadcast %c0_i32_29 : i32 to vector<32x1xi32>
    %65 = arith.cmpi eq, %41, %64 : vector<32x1xi32>
    %66 = vector.shape_cast %63 : vector<2x32xf32> to vector<2x1x32xf32>
    %67 = vector.shape_cast %65 : vector<32x1xi1> to vector<1x32x1xi1>
    %68 = vector.broadcast %67 : vector<1x32x1xi1> to vector<2x32x32xi1>
    %69 = vector.shape_cast %66 : vector<2x1x32xf32> to vector<2x1x32xf32>
    %70 = vector.broadcast %69 : vector<2x1x32xf32> to vector<2x32x32xf32>
    %71 = arith.select %68, %70, %42 : vector<2x32x32xi1>, vector<2x32x32xf32>
    %72 = vector.extract_strided_slice %40 {offsets = [2, 0], sizes = [2, 128], strides = [1, 1]} : vector<64x128xf32> to vector<2x128xf32>
    %73 = arith.truncf %63 : vector<2x32xf32> to vector<2x32xbf16>
    %cst_30 = arith.constant dense<0.000000e+00> : vector<2x128xf32>
    %74 = tpu.matmul %73, %3, %cst_30 {dimension_numbers = #tpu.dot_dimension_numbers<[1], [0], [0], [1], [0, 0, 1, 1], [], []>} : vector<2x32xbf16>, vector<32x128xbf16>, vector<2x128xf32> -> vector<2x128xf32>
    %75 = arith.addf %72, %74 : vector<2x128xf32>
    %76 = arith.negf %75 : vector<2x128xf32>
    %77 = math.exp %76 : vector<2x128xf32>
    %cst_31 = arith.constant 1.000000e+00 : f32
    %78 = vector.broadcast %cst_31 : f32 to vector<2x128xf32>
    %79 = arith.addf %78, %77 : vector<2x128xf32>
    %80 = arith.divf %78, %79 : vector<2x128xf32>
    %81 = vector.extract_strided_slice %75 {offsets = [0, 64], sizes = [2, 32], strides = [1, 1]} : vector<2x128xf32> to vector<2x32xf32>
    %82 = math.tanh %81 : vector<2x32xf32>
    %83 = vector.extract_strided_slice %80 {offsets = [0, 32], sizes = [2, 32], strides = [1, 1]} : vector<2x128xf32> to vector<2x32xf32>
    %84 = arith.mulf %83, %60 : vector<2x32xf32>
    %85 = vector.extract_strided_slice %80 {offsets = [0, 0], sizes = [2, 32], strides = [1, 1]} : vector<2x128xf32> to vector<2x32xf32>
    %86 = arith.mulf %85, %82 : vector<2x32xf32>
    %87 = arith.addf %84, %86 : vector<2x32xf32>
    %88 = vector.extract_strided_slice %80 {offsets = [0, 96], sizes = [2, 32], strides = [1, 1]} : vector<2x128xf32> to vector<2x32xf32>
    %89 = math.tanh %87 : vector<2x32xf32>
    %90 = arith.mulf %88, %89 : vector<2x32xf32>
    %c1_i32_32 = arith.constant 1 : i32
    %91 = vector.broadcast %c1_i32_32 : i32 to vector<32x1xi32>
    %92 = arith.cmpi eq, %41, %91 : vector<32x1xi32>
    %93 = vector.shape_cast %90 : vector<2x32xf32> to vector<2x1x32xf32>
    %94 = vector.shape_cast %92 : vector<32x1xi1> to vector<1x32x1xi1>
    %95 = vector.broadcast %94 : vector<1x32x1xi1> to vector<2x32x32xi1>
    %96 = vector.shape_cast %93 : vector<2x1x32xf32> to vector<2x1x32xf32>
    %97 = vector.broadcast %96 : vector<2x1x32xf32> to vector<2x32x32xf32>
    %98 = arith.select %95, %97, %71 : vector<2x32x32xi1>, vector<2x32x32xf32>
    %99 = vector.extract_strided_slice %40 {offsets = [4, 0], sizes = [2, 128], strides = [1, 1]} : vector<64x128xf32> to vector<2x128xf32>
    %100 = arith.truncf %90 : vector<2x32xf32> to vector<2x32xbf16>
    %cst_33 = arith.constant dense<0.000000e+00> : vector<2x128xf32>
    %101 = tpu.matmul %100, %3, %cst_33 {dimension_numbers = #tpu.dot_dimension_numbers<[1], [0], [0], [1], [0, 0, 1, 1], [], []>} : vector<2x32xbf16>, vector<32x128xbf16>, vector<2x128xf32> -> vector<2x128xf32>
    %102 = arith.addf %99, %101 : vector<2x128xf32>
    %103 = arith.negf %102 : vector<2x128xf32>
    %104 = math.exp %103 : vector<2x128xf32>
    %cst_34 = arith.constant 1.000000e+00 : f32
    %105 = vector.broadcast %cst_34 : f32 to vector<2x128xf32>
    %106 = arith.addf %105, %104 : vector<2x128xf32>
    %107 = arith.divf %105, %106 : vector<2x128xf32>
    %108 = vector.extract_strided_slice %102 {offsets = [0, 64], sizes = [2, 32], strides = [1, 1]} : vector<2x128xf32> to vector<2x32xf32>
    %109 = math.tanh %108 : vector<2x32xf32>
    %110 = vector.extract_strided_slice %107 {offsets = [0, 32], sizes = [2, 32], strides = [1, 1]} : vector<2x128xf32> to vector<2x32xf32>
    %111 = arith.mulf %110, %87 : vector<2x32xf32>
    %112 = vector.extract_strided_slice %107 {offsets = [0, 0], sizes = [2, 32], strides = [1, 1]} : vector<2x128xf32> to vector<2x32xf32>
    %113 = arith.mulf %112, %109 : vector<2x32xf32>
    %114 = arith.addf %111, %113 : vector<2x32xf32>
    %115 = vector.extract_strided_slice %107 {offsets = [0, 96], sizes = [2, 32], strides = [1, 1]} : vector<2x128xf32> to vector<2x32xf32>
    %116 = math.tanh %114 : vector<2x32xf32>
    %117 = arith.mulf %115, %116 : vector<2x32xf32>
    %c2_i32 = arith.constant 2 : i32
    %118 = vector.broadcast %c2_i32 : i32 to vector<32x1xi32>
    %119 = arith.cmpi eq, %41, %118 : vector<32x1xi32>
    %120 = vector.shape_cast %117 : vector<2x32xf32> to vector<2x1x32xf32>
    %121 = vector.shape_cast %119 : vector<32x1xi1> to vector<1x32x1xi1>
    %122 = vector.broadcast %121 : vector<1x32x1xi1> to vector<2x32x32xi1>
    %123 = vector.shape_cast %120 : vector<2x1x32xf32> to vector<2x1x32xf32>
    %124 = vector.broadcast %123 : vector<2x1x32xf32> to vector<2x32x32xf32>
    %125 = arith.select %122, %124, %98 : vector<2x32x32xi1>, vector<2x32x32xf32>
    %126 = vector.extract_strided_slice %40 {offsets = [6, 0], sizes = [2, 128], strides = [1, 1]} : vector<64x128xf32> to vector<2x128xf32>
    %127 = arith.truncf %117 : vector<2x32xf32> to vector<2x32xbf16>
    %cst_35 = arith.constant dense<0.000000e+00> : vector<2x128xf32>
    %128 = tpu.matmul %127, %3, %cst_35 {dimension_numbers = #tpu.dot_dimension_numbers<[1], [0], [0], [1], [0, 0, 1, 1], [], []>} : vector<2x32xbf16>, vector<32x128xbf16>, vector<2x128xf32> -> vector<2x128xf32>
    %129 = arith.addf %126, %128 : vector<2x128xf32>
    %130 = arith.negf %129 : vector<2x128xf32>
    %131 = math.exp %130 : vector<2x128xf32>
    %cst_36 = arith.constant 1.000000e+00 : f32
    %132 = vector.broadcast %cst_36 : f32 to vector<2x128xf32>
    %133 = arith.addf %132, %131 : vector<2x128xf32>
    %134 = arith.divf %132, %133 : vector<2x128xf32>
    %135 = vector.extract_strided_slice %129 {offsets = [0, 64], sizes = [2, 32], strides = [1, 1]} : vector<2x128xf32> to vector<2x32xf32>
    %136 = math.tanh %135 : vector<2x32xf32>
    %137 = vector.extract_strided_slice %134 {offsets = [0, 32], sizes = [2, 32], strides = [1, 1]} : vector<2x128xf32> to vector<2x32xf32>
    %138 = arith.mulf %137, %114 : vector<2x32xf32>
    %139 = vector.extract_strided_slice %134 {offsets = [0, 0], sizes = [2, 32], strides = [1, 1]} : vector<2x128xf32> to vector<2x32xf32>
    %140 = arith.mulf %139, %136 : vector<2x32xf32>
    %141 = arith.addf %138, %140 : vector<2x32xf32>
    %142 = vector.extract_strided_slice %134 {offsets = [0, 96], sizes = [2, 32], strides = [1, 1]} : vector<2x128xf32> to vector<2x32xf32>
    %143 = math.tanh %141 : vector<2x32xf32>
    %144 = arith.mulf %142, %143 : vector<2x32xf32>
    %c3_i32 = arith.constant 3 : i32
    %145 = vector.broadcast %c3_i32 : i32 to vector<32x1xi32>
    %146 = arith.cmpi eq, %41, %145 : vector<32x1xi32>
    %147 = vector.shape_cast %144 : vector<2x32xf32> to vector<2x1x32xf32>
    %148 = vector.shape_cast %146 : vector<32x1xi1> to vector<1x32x1xi1>
    %149 = vector.broadcast %148 : vector<1x32x1xi1> to vector<2x32x32xi1>
    %150 = vector.shape_cast %147 : vector<2x1x32xf32> to vector<2x1x32xf32>
    %151 = vector.broadcast %150 : vector<2x1x32xf32> to vector<2x32x32xf32>
    %152 = arith.select %149, %151, %125 : vector<2x32x32xi1>, vector<2x32x32xf32>
    %153 = vector.extract_strided_slice %40 {offsets = [8, 0], sizes = [2, 128], strides = [1, 1]} : vector<64x128xf32> to vector<2x128xf32>
    %154 = arith.truncf %144 : vector<2x32xf32> to vector<2x32xbf16>
    %cst_37 = arith.constant dense<0.000000e+00> : vector<2x128xf32>
    %155 = tpu.matmul %154, %3, %cst_37 {dimension_numbers = #tpu.dot_dimension_numbers<[1], [0], [0], [1], [0, 0, 1, 1], [], []>} : vector<2x32xbf16>, vector<32x128xbf16>, vector<2x128xf32> -> vector<2x128xf32>
    %156 = arith.addf %153, %155 : vector<2x128xf32>
    %157 = arith.negf %156 : vector<2x128xf32>
    %158 = math.exp %157 : vector<2x128xf32>
    %cst_38 = arith.constant 1.000000e+00 : f32
    %159 = vector.broadcast %cst_38 : f32 to vector<2x128xf32>
    %160 = arith.addf %159, %158 : vector<2x128xf32>
    %161 = arith.divf %159, %160 : vector<2x128xf32>
    %162 = vector.extract_strided_slice %156 {offsets = [0, 64], sizes = [2, 32], strides = [1, 1]} : vector<2x128xf32> to vector<2x32xf32>
    %163 = math.tanh %162 : vector<2x32xf32>
    %164 = vector.extract_strided_slice %161 {offsets = [0, 32], sizes = [2, 32], strides = [1, 1]} : vector<2x128xf32> to vector<2x32xf32>
    %165 = arith.mulf %164, %141 : vector<2x32xf32>
    %166 = vector.extract_strided_slice %161 {offsets = [0, 0], sizes = [2, 32], strides = [1, 1]} : vector<2x128xf32> to vector<2x32xf32>
    %167 = arith.mulf %166, %163 : vector<2x32xf32>
    %168 = arith.addf %165, %167 : vector<2x32xf32>
    %169 = vector.extract_strided_slice %161 {offsets = [0, 96], sizes = [2, 32], strides = [1, 1]} : vector<2x128xf32> to vector<2x32xf32>
    %170 = math.tanh %168 : vector<2x32xf32>
    %171 = arith.mulf %169, %170 : vector<2x32xf32>
    %c4_i32 = arith.constant 4 : i32
    %172 = vector.broadcast %c4_i32 : i32 to vector<32x1xi32>
    %173 = arith.cmpi eq, %41, %172 : vector<32x1xi32>
    %174 = vector.shape_cast %171 : vector<2x32xf32> to vector<2x1x32xf32>
    %175 = vector.shape_cast %173 : vector<32x1xi1> to vector<1x32x1xi1>
    %176 = vector.broadcast %175 : vector<1x32x1xi1> to vector<2x32x32xi1>
    %177 = vector.shape_cast %174 : vector<2x1x32xf32> to vector<2x1x32xf32>
    %178 = vector.broadcast %177 : vector<2x1x32xf32> to vector<2x32x32xf32>
    %179 = arith.select %176, %178, %152 : vector<2x32x32xi1>, vector<2x32x32xf32>
    %180 = vector.extract_strided_slice %40 {offsets = [10, 0], sizes = [2, 128], strides = [1, 1]} : vector<64x128xf32> to vector<2x128xf32>
    %181 = arith.truncf %171 : vector<2x32xf32> to vector<2x32xbf16>
    %cst_39 = arith.constant dense<0.000000e+00> : vector<2x128xf32>
    %182 = tpu.matmul %181, %3, %cst_39 {dimension_numbers = #tpu.dot_dimension_numbers<[1], [0], [0], [1], [0, 0, 1, 1], [], []>} : vector<2x32xbf16>, vector<32x128xbf16>, vector<2x128xf32> -> vector<2x128xf32>
    %183 = arith.addf %180, %182 : vector<2x128xf32>
    %184 = arith.negf %183 : vector<2x128xf32>
    %185 = math.exp %184 : vector<2x128xf32>
    %cst_40 = arith.constant 1.000000e+00 : f32
    %186 = vector.broadcast %cst_40 : f32 to vector<2x128xf32>
    %187 = arith.addf %186, %185 : vector<2x128xf32>
    %188 = arith.divf %186, %187 : vector<2x128xf32>
    %189 = vector.extract_strided_slice %183 {offsets = [0, 64], sizes = [2, 32], strides = [1, 1]} : vector<2x128xf32> to vector<2x32xf32>
    %190 = math.tanh %189 : vector<2x32xf32>
    %191 = vector.extract_strided_slice %188 {offsets = [0, 32], sizes = [2, 32], strides = [1, 1]} : vector<2x128xf32> to vector<2x32xf32>
    %192 = arith.mulf %191, %168 : vector<2x32xf32>
    %193 = vector.extract_strided_slice %188 {offsets = [0, 0], sizes = [2, 32], strides = [1, 1]} : vector<2x128xf32> to vector<2x32xf32>
    %194 = arith.mulf %193, %190 : vector<2x32xf32>
    %195 = arith.addf %192, %194 : vector<2x32xf32>
    %196 = vector.extract_strided_slice %188 {offsets = [0, 96], sizes = [2, 32], strides = [1, 1]} : vector<2x128xf32> to vector<2x32xf32>
    %197 = math.tanh %195 : vector<2x32xf32>
    %198 = arith.mulf %196, %197 : vector<2x32xf32>
    %c5_i32 = arith.constant 5 : i32
    %199 = vector.broadcast %c5_i32 : i32 to vector<32x1xi32>
    %200 = arith.cmpi eq, %41, %199 : vector<32x1xi32>
    %201 = vector.shape_cast %198 : vector<2x32xf32> to vector<2x1x32xf32>
    %202 = vector.shape_cast %200 : vector<32x1xi1> to vector<1x32x1xi1>
    %203 = vector.broadcast %202 : vector<1x32x1xi1> to vector<2x32x32xi1>
    %204 = vector.shape_cast %201 : vector<2x1x32xf32> to vector<2x1x32xf32>
    %205 = vector.broadcast %204 : vector<2x1x32xf32> to vector<2x32x32xf32>
    %206 = arith.select %203, %205, %179 : vector<2x32x32xi1>, vector<2x32x32xf32>
    %207 = vector.extract_strided_slice %40 {offsets = [12, 0], sizes = [2, 128], strides = [1, 1]} : vector<64x128xf32> to vector<2x128xf32>
    %208 = arith.truncf %198 : vector<2x32xf32> to vector<2x32xbf16>
    %cst_41 = arith.constant dense<0.000000e+00> : vector<2x128xf32>
    %209 = tpu.matmul %208, %3, %cst_41 {dimension_numbers = #tpu.dot_dimension_numbers<[1], [0], [0], [1], [0, 0, 1, 1], [], []>} : vector<2x32xbf16>, vector<32x128xbf16>, vector<2x128xf32> -> vector<2x128xf32>
    %210 = arith.addf %207, %209 : vector<2x128xf32>
    %211 = arith.negf %210 : vector<2x128xf32>
    %212 = math.exp %211 : vector<2x128xf32>
    %cst_42 = arith.constant 1.000000e+00 : f32
    %213 = vector.broadcast %cst_42 : f32 to vector<2x128xf32>
    %214 = arith.addf %213, %212 : vector<2x128xf32>
    %215 = arith.divf %213, %214 : vector<2x128xf32>
    %216 = vector.extract_strided_slice %210 {offsets = [0, 64], sizes = [2, 32], strides = [1, 1]} : vector<2x128xf32> to vector<2x32xf32>
    %217 = math.tanh %216 : vector<2x32xf32>
    %218 = vector.extract_strided_slice %215 {offsets = [0, 32], sizes = [2, 32], strides = [1, 1]} : vector<2x128xf32> to vector<2x32xf32>
    %219 = arith.mulf %218, %195 : vector<2x32xf32>
    %220 = vector.extract_strided_slice %215 {offsets = [0, 0], sizes = [2, 32], strides = [1, 1]} : vector<2x128xf32> to vector<2x32xf32>
    %221 = arith.mulf %220, %217 : vector<2x32xf32>
    %222 = arith.addf %219, %221 : vector<2x32xf32>
    %223 = vector.extract_strided_slice %215 {offsets = [0, 96], sizes = [2, 32], strides = [1, 1]} : vector<2x128xf32> to vector<2x32xf32>
    %224 = math.tanh %222 : vector<2x32xf32>
    %225 = arith.mulf %223, %224 : vector<2x32xf32>
    %c6_i32 = arith.constant 6 : i32
    %226 = vector.broadcast %c6_i32 : i32 to vector<32x1xi32>
    %227 = arith.cmpi eq, %41, %226 : vector<32x1xi32>
    %228 = vector.shape_cast %225 : vector<2x32xf32> to vector<2x1x32xf32>
    %229 = vector.shape_cast %227 : vector<32x1xi1> to vector<1x32x1xi1>
    %230 = vector.broadcast %229 : vector<1x32x1xi1> to vector<2x32x32xi1>
    %231 = vector.shape_cast %228 : vector<2x1x32xf32> to vector<2x1x32xf32>
    %232 = vector.broadcast %231 : vector<2x1x32xf32> to vector<2x32x32xf32>
    %233 = arith.select %230, %232, %206 : vector<2x32x32xi1>, vector<2x32x32xf32>
    %234 = vector.extract_strided_slice %40 {offsets = [14, 0], sizes = [2, 128], strides = [1, 1]} : vector<64x128xf32> to vector<2x128xf32>
    %235 = arith.truncf %225 : vector<2x32xf32> to vector<2x32xbf16>
    %cst_43 = arith.constant dense<0.000000e+00> : vector<2x128xf32>
    %236 = tpu.matmul %235, %3, %cst_43 {dimension_numbers = #tpu.dot_dimension_numbers<[1], [0], [0], [1], [0, 0, 1, 1], [], []>} : vector<2x32xbf16>, vector<32x128xbf16>, vector<2x128xf32> -> vector<2x128xf32>
    %237 = arith.addf %234, %236 : vector<2x128xf32>
    %238 = arith.negf %237 : vector<2x128xf32>
    %239 = math.exp %238 : vector<2x128xf32>
    %cst_44 = arith.constant 1.000000e+00 : f32
    %240 = vector.broadcast %cst_44 : f32 to vector<2x128xf32>
    %241 = arith.addf %240, %239 : vector<2x128xf32>
    %242 = arith.divf %240, %241 : vector<2x128xf32>
    %243 = vector.extract_strided_slice %237 {offsets = [0, 64], sizes = [2, 32], strides = [1, 1]} : vector<2x128xf32> to vector<2x32xf32>
    %244 = math.tanh %243 : vector<2x32xf32>
    %245 = vector.extract_strided_slice %242 {offsets = [0, 32], sizes = [2, 32], strides = [1, 1]} : vector<2x128xf32> to vector<2x32xf32>
    %246 = arith.mulf %245, %222 : vector<2x32xf32>
    %247 = vector.extract_strided_slice %242 {offsets = [0, 0], sizes = [2, 32], strides = [1, 1]} : vector<2x128xf32> to vector<2x32xf32>
    %248 = arith.mulf %247, %244 : vector<2x32xf32>
    %249 = arith.addf %246, %248 : vector<2x32xf32>
    %250 = vector.extract_strided_slice %242 {offsets = [0, 96], sizes = [2, 32], strides = [1, 1]} : vector<2x128xf32> to vector<2x32xf32>
    %251 = math.tanh %249 : vector<2x32xf32>
    %252 = arith.mulf %250, %251 : vector<2x32xf32>
    %c7_i32 = arith.constant 7 : i32
    %253 = vector.broadcast %c7_i32 : i32 to vector<32x1xi32>
    %254 = arith.cmpi eq, %41, %253 : vector<32x1xi32>
    %255 = vector.shape_cast %252 : vector<2x32xf32> to vector<2x1x32xf32>
    %256 = vector.shape_cast %254 : vector<32x1xi1> to vector<1x32x1xi1>
    %257 = vector.broadcast %256 : vector<1x32x1xi1> to vector<2x32x32xi1>
    %258 = vector.shape_cast %255 : vector<2x1x32xf32> to vector<2x1x32xf32>
    %259 = vector.broadcast %258 : vector<2x1x32xf32> to vector<2x32x32xf32>
    %260 = arith.select %257, %259, %233 : vector<2x32x32xi1>, vector<2x32x32xf32>
    %261 = vector.extract_strided_slice %40 {offsets = [16, 0], sizes = [2, 128], strides = [1, 1]} : vector<64x128xf32> to vector<2x128xf32>
    %262 = arith.truncf %252 : vector<2x32xf32> to vector<2x32xbf16>
    %cst_45 = arith.constant dense<0.000000e+00> : vector<2x128xf32>
    %263 = tpu.matmul %262, %3, %cst_45 {dimension_numbers = #tpu.dot_dimension_numbers<[1], [0], [0], [1], [0, 0, 1, 1], [], []>} : vector<2x32xbf16>, vector<32x128xbf16>, vector<2x128xf32> -> vector<2x128xf32>
    %264 = arith.addf %261, %263 : vector<2x128xf32>
    %265 = arith.negf %264 : vector<2x128xf32>
    %266 = math.exp %265 : vector<2x128xf32>
    %cst_46 = arith.constant 1.000000e+00 : f32
    %267 = vector.broadcast %cst_46 : f32 to vector<2x128xf32>
    %268 = arith.addf %267, %266 : vector<2x128xf32>
    %269 = arith.divf %267, %268 : vector<2x128xf32>
    %270 = vector.extract_strided_slice %264 {offsets = [0, 64], sizes = [2, 32], strides = [1, 1]} : vector<2x128xf32> to vector<2x32xf32>
    %271 = math.tanh %270 : vector<2x32xf32>
    %272 = vector.extract_strided_slice %269 {offsets = [0, 32], sizes = [2, 32], strides = [1, 1]} : vector<2x128xf32> to vector<2x32xf32>
    %273 = arith.mulf %272, %249 : vector<2x32xf32>
    %274 = vector.extract_strided_slice %269 {offsets = [0, 0], sizes = [2, 32], strides = [1, 1]} : vector<2x128xf32> to vector<2x32xf32>
    %275 = arith.mulf %274, %271 : vector<2x32xf32>
    %276 = arith.addf %273, %275 : vector<2x32xf32>
    %277 = vector.extract_strided_slice %269 {offsets = [0, 96], sizes = [2, 32], strides = [1, 1]} : vector<2x128xf32> to vector<2x32xf32>
    %278 = math.tanh %276 : vector<2x32xf32>
    %279 = arith.mulf %277, %278 : vector<2x32xf32>
    %c8_i32 = arith.constant 8 : i32
    %280 = vector.broadcast %c8_i32 : i32 to vector<32x1xi32>
    %281 = arith.cmpi eq, %41, %280 : vector<32x1xi32>
    %282 = vector.shape_cast %279 : vector<2x32xf32> to vector<2x1x32xf32>
    %283 = vector.shape_cast %281 : vector<32x1xi1> to vector<1x32x1xi1>
    %284 = vector.broadcast %283 : vector<1x32x1xi1> to vector<2x32x32xi1>
    %285 = vector.shape_cast %282 : vector<2x1x32xf32> to vector<2x1x32xf32>
    %286 = vector.broadcast %285 : vector<2x1x32xf32> to vector<2x32x32xf32>
    %287 = arith.select %284, %286, %260 : vector<2x32x32xi1>, vector<2x32x32xf32>
    %288 = vector.extract_strided_slice %40 {offsets = [18, 0], sizes = [2, 128], strides = [1, 1]} : vector<64x128xf32> to vector<2x128xf32>
    %289 = arith.truncf %279 : vector<2x32xf32> to vector<2x32xbf16>
    %cst_47 = arith.constant dense<0.000000e+00> : vector<2x128xf32>
    %290 = tpu.matmul %289, %3, %cst_47 {dimension_numbers = #tpu.dot_dimension_numbers<[1], [0], [0], [1], [0, 0, 1, 1], [], []>} : vector<2x32xbf16>, vector<32x128xbf16>, vector<2x128xf32> -> vector<2x128xf32>
    %291 = arith.addf %288, %290 : vector<2x128xf32>
    %292 = arith.negf %291 : vector<2x128xf32>
    %293 = math.exp %292 : vector<2x128xf32>
    %cst_48 = arith.constant 1.000000e+00 : f32
    %294 = vector.broadcast %cst_48 : f32 to vector<2x128xf32>
    %295 = arith.addf %294, %293 : vector<2x128xf32>
    %296 = arith.divf %294, %295 : vector<2x128xf32>
    %297 = vector.extract_strided_slice %291 {offsets = [0, 64], sizes = [2, 32], strides = [1, 1]} : vector<2x128xf32> to vector<2x32xf32>
    %298 = math.tanh %297 : vector<2x32xf32>
    %299 = vector.extract_strided_slice %296 {offsets = [0, 32], sizes = [2, 32], strides = [1, 1]} : vector<2x128xf32> to vector<2x32xf32>
    %300 = arith.mulf %299, %276 : vector<2x32xf32>
    %301 = vector.extract_strided_slice %296 {offsets = [0, 0], sizes = [2, 32], strides = [1, 1]} : vector<2x128xf32> to vector<2x32xf32>
    %302 = arith.mulf %301, %298 : vector<2x32xf32>
    %303 = arith.addf %300, %302 : vector<2x32xf32>
    %304 = vector.extract_strided_slice %296 {offsets = [0, 96], sizes = [2, 32], strides = [1, 1]} : vector<2x128xf32> to vector<2x32xf32>
    %305 = math.tanh %303 : vector<2x32xf32>
    %306 = arith.mulf %304, %305 : vector<2x32xf32>
    %c9_i32 = arith.constant 9 : i32
    %307 = vector.broadcast %c9_i32 : i32 to vector<32x1xi32>
    %308 = arith.cmpi eq, %41, %307 : vector<32x1xi32>
    %309 = vector.shape_cast %306 : vector<2x32xf32> to vector<2x1x32xf32>
    %310 = vector.shape_cast %308 : vector<32x1xi1> to vector<1x32x1xi1>
    %311 = vector.broadcast %310 : vector<1x32x1xi1> to vector<2x32x32xi1>
    %312 = vector.shape_cast %309 : vector<2x1x32xf32> to vector<2x1x32xf32>
    %313 = vector.broadcast %312 : vector<2x1x32xf32> to vector<2x32x32xf32>
    %314 = arith.select %311, %313, %287 : vector<2x32x32xi1>, vector<2x32x32xf32>
    %315 = vector.extract_strided_slice %40 {offsets = [20, 0], sizes = [2, 128], strides = [1, 1]} : vector<64x128xf32> to vector<2x128xf32>
    %316 = arith.truncf %306 : vector<2x32xf32> to vector<2x32xbf16>
    %cst_49 = arith.constant dense<0.000000e+00> : vector<2x128xf32>
    %317 = tpu.matmul %316, %3, %cst_49 {dimension_numbers = #tpu.dot_dimension_numbers<[1], [0], [0], [1], [0, 0, 1, 1], [], []>} : vector<2x32xbf16>, vector<32x128xbf16>, vector<2x128xf32> -> vector<2x128xf32>
    %318 = arith.addf %315, %317 : vector<2x128xf32>
    %319 = arith.negf %318 : vector<2x128xf32>
    %320 = math.exp %319 : vector<2x128xf32>
    %cst_50 = arith.constant 1.000000e+00 : f32
    %321 = vector.broadcast %cst_50 : f32 to vector<2x128xf32>
    %322 = arith.addf %321, %320 : vector<2x128xf32>
    %323 = arith.divf %321, %322 : vector<2x128xf32>
    %324 = vector.extract_strided_slice %318 {offsets = [0, 64], sizes = [2, 32], strides = [1, 1]} : vector<2x128xf32> to vector<2x32xf32>
    %325 = math.tanh %324 : vector<2x32xf32>
    %326 = vector.extract_strided_slice %323 {offsets = [0, 32], sizes = [2, 32], strides = [1, 1]} : vector<2x128xf32> to vector<2x32xf32>
    %327 = arith.mulf %326, %303 : vector<2x32xf32>
    %328 = vector.extract_strided_slice %323 {offsets = [0, 0], sizes = [2, 32], strides = [1, 1]} : vector<2x128xf32> to vector<2x32xf32>
    %329 = arith.mulf %328, %325 : vector<2x32xf32>
    %330 = arith.addf %327, %329 : vector<2x32xf32>
    %331 = vector.extract_strided_slice %323 {offsets = [0, 96], sizes = [2, 32], strides = [1, 1]} : vector<2x128xf32> to vector<2x32xf32>
    %332 = math.tanh %330 : vector<2x32xf32>
    %333 = arith.mulf %331, %332 : vector<2x32xf32>
    %c10_i32 = arith.constant 10 : i32
    %334 = vector.broadcast %c10_i32 : i32 to vector<32x1xi32>
    %335 = arith.cmpi eq, %41, %334 : vector<32x1xi32>
    %336 = vector.shape_cast %333 : vector<2x32xf32> to vector<2x1x32xf32>
    %337 = vector.shape_cast %335 : vector<32x1xi1> to vector<1x32x1xi1>
    %338 = vector.broadcast %337 : vector<1x32x1xi1> to vector<2x32x32xi1>
    %339 = vector.shape_cast %336 : vector<2x1x32xf32> to vector<2x1x32xf32>
    %340 = vector.broadcast %339 : vector<2x1x32xf32> to vector<2x32x32xf32>
    %341 = arith.select %338, %340, %314 : vector<2x32x32xi1>, vector<2x32x32xf32>
    %342 = vector.extract_strided_slice %40 {offsets = [22, 0], sizes = [2, 128], strides = [1, 1]} : vector<64x128xf32> to vector<2x128xf32>
    %343 = arith.truncf %333 : vector<2x32xf32> to vector<2x32xbf16>
    %cst_51 = arith.constant dense<0.000000e+00> : vector<2x128xf32>
    %344 = tpu.matmul %343, %3, %cst_51 {dimension_numbers = #tpu.dot_dimension_numbers<[1], [0], [0], [1], [0, 0, 1, 1], [], []>} : vector<2x32xbf16>, vector<32x128xbf16>, vector<2x128xf32> -> vector<2x128xf32>
    %345 = arith.addf %342, %344 : vector<2x128xf32>
    %346 = arith.negf %345 : vector<2x128xf32>
    %347 = math.exp %346 : vector<2x128xf32>
    %cst_52 = arith.constant 1.000000e+00 : f32
    %348 = vector.broadcast %cst_52 : f32 to vector<2x128xf32>
    %349 = arith.addf %348, %347 : vector<2x128xf32>
    %350 = arith.divf %348, %349 : vector<2x128xf32>
    %351 = vector.extract_strided_slice %345 {offsets = [0, 64], sizes = [2, 32], strides = [1, 1]} : vector<2x128xf32> to vector<2x32xf32>
    %352 = math.tanh %351 : vector<2x32xf32>
    %353 = vector.extract_strided_slice %350 {offsets = [0, 32], sizes = [2, 32], strides = [1, 1]} : vector<2x128xf32> to vector<2x32xf32>
    %354 = arith.mulf %353, %330 : vector<2x32xf32>
    %355 = vector.extract_strided_slice %350 {offsets = [0, 0], sizes = [2, 32], strides = [1, 1]} : vector<2x128xf32> to vector<2x32xf32>
    %356 = arith.mulf %355, %352 : vector<2x32xf32>
    %357 = arith.addf %354, %356 : vector<2x32xf32>
    %358 = vector.extract_strided_slice %350 {offsets = [0, 96], sizes = [2, 32], strides = [1, 1]} : vector<2x128xf32> to vector<2x32xf32>
    %359 = math.tanh %357 : vector<2x32xf32>
    %360 = arith.mulf %358, %359 : vector<2x32xf32>
    %c11_i32 = arith.constant 11 : i32
    %361 = vector.broadcast %c11_i32 : i32 to vector<32x1xi32>
    %362 = arith.cmpi eq, %41, %361 : vector<32x1xi32>
    %363 = vector.shape_cast %360 : vector<2x32xf32> to vector<2x1x32xf32>
    %364 = vector.shape_cast %362 : vector<32x1xi1> to vector<1x32x1xi1>
    %365 = vector.broadcast %364 : vector<1x32x1xi1> to vector<2x32x32xi1>
    %366 = vector.shape_cast %363 : vector<2x1x32xf32> to vector<2x1x32xf32>
    %367 = vector.broadcast %366 : vector<2x1x32xf32> to vector<2x32x32xf32>
    %368 = arith.select %365, %367, %341 : vector<2x32x32xi1>, vector<2x32x32xf32>
    %369 = vector.extract_strided_slice %40 {offsets = [24, 0], sizes = [2, 128], strides = [1, 1]} : vector<64x128xf32> to vector<2x128xf32>
    %370 = arith.truncf %360 : vector<2x32xf32> to vector<2x32xbf16>
    %cst_53 = arith.constant dense<0.000000e+00> : vector<2x128xf32>
    %371 = tpu.matmul %370, %3, %cst_53 {dimension_numbers = #tpu.dot_dimension_numbers<[1], [0], [0], [1], [0, 0, 1, 1], [], []>} : vector<2x32xbf16>, vector<32x128xbf16>, vector<2x128xf32> -> vector<2x128xf32>
    %372 = arith.addf %369, %371 : vector<2x128xf32>
    %373 = arith.negf %372 : vector<2x128xf32>
    %374 = math.exp %373 : vector<2x128xf32>
    %cst_54 = arith.constant 1.000000e+00 : f32
    %375 = vector.broadcast %cst_54 : f32 to vector<2x128xf32>
    %376 = arith.addf %375, %374 : vector<2x128xf32>
    %377 = arith.divf %375, %376 : vector<2x128xf32>
    %378 = vector.extract_strided_slice %372 {offsets = [0, 64], sizes = [2, 32], strides = [1, 1]} : vector<2x128xf32> to vector<2x32xf32>
    %379 = math.tanh %378 : vector<2x32xf32>
    %380 = vector.extract_strided_slice %377 {offsets = [0, 32], sizes = [2, 32], strides = [1, 1]} : vector<2x128xf32> to vector<2x32xf32>
    %381 = arith.mulf %380, %357 : vector<2x32xf32>
    %382 = vector.extract_strided_slice %377 {offsets = [0, 0], sizes = [2, 32], strides = [1, 1]} : vector<2x128xf32> to vector<2x32xf32>
    %383 = arith.mulf %382, %379 : vector<2x32xf32>
    %384 = arith.addf %381, %383 : vector<2x32xf32>
    %385 = vector.extract_strided_slice %377 {offsets = [0, 96], sizes = [2, 32], strides = [1, 1]} : vector<2x128xf32> to vector<2x32xf32>
    %386 = math.tanh %384 : vector<2x32xf32>
    %387 = arith.mulf %385, %386 : vector<2x32xf32>
    %c12_i32 = arith.constant 12 : i32
    %388 = vector.broadcast %c12_i32 : i32 to vector<32x1xi32>
    %389 = arith.cmpi eq, %41, %388 : vector<32x1xi32>
    %390 = vector.shape_cast %387 : vector<2x32xf32> to vector<2x1x32xf32>
    %391 = vector.shape_cast %389 : vector<32x1xi1> to vector<1x32x1xi1>
    %392 = vector.broadcast %391 : vector<1x32x1xi1> to vector<2x32x32xi1>
    %393 = vector.shape_cast %390 : vector<2x1x32xf32> to vector<2x1x32xf32>
    %394 = vector.broadcast %393 : vector<2x1x32xf32> to vector<2x32x32xf32>
    %395 = arith.select %392, %394, %368 : vector<2x32x32xi1>, vector<2x32x32xf32>
    %396 = vector.extract_strided_slice %40 {offsets = [26, 0], sizes = [2, 128], strides = [1, 1]} : vector<64x128xf32> to vector<2x128xf32>
    %397 = arith.truncf %387 : vector<2x32xf32> to vector<2x32xbf16>
    %cst_55 = arith.constant dense<0.000000e+00> : vector<2x128xf32>
    %398 = tpu.matmul %397, %3, %cst_55 {dimension_numbers = #tpu.dot_dimension_numbers<[1], [0], [0], [1], [0, 0, 1, 1], [], []>} : vector<2x32xbf16>, vector<32x128xbf16>, vector<2x128xf32> -> vector<2x128xf32>
    %399 = arith.addf %396, %398 : vector<2x128xf32>
    %400 = arith.negf %399 : vector<2x128xf32>
    %401 = math.exp %400 : vector<2x128xf32>
    %cst_56 = arith.constant 1.000000e+00 : f32
    %402 = vector.broadcast %cst_56 : f32 to vector<2x128xf32>
    %403 = arith.addf %402, %401 : vector<2x128xf32>
    %404 = arith.divf %402, %403 : vector<2x128xf32>
    %405 = vector.extract_strided_slice %399 {offsets = [0, 64], sizes = [2, 32], strides = [1, 1]} : vector<2x128xf32> to vector<2x32xf32>
    %406 = math.tanh %405 : vector<2x32xf32>
    %407 = vector.extract_strided_slice %404 {offsets = [0, 32], sizes = [2, 32], strides = [1, 1]} : vector<2x128xf32> to vector<2x32xf32>
    %408 = arith.mulf %407, %384 : vector<2x32xf32>
    %409 = vector.extract_strided_slice %404 {offsets = [0, 0], sizes = [2, 32], strides = [1, 1]} : vector<2x128xf32> to vector<2x32xf32>
    %410 = arith.mulf %409, %406 : vector<2x32xf32>
    %411 = arith.addf %408, %410 : vector<2x32xf32>
    %412 = vector.extract_strided_slice %404 {offsets = [0, 96], sizes = [2, 32], strides = [1, 1]} : vector<2x128xf32> to vector<2x32xf32>
    %413 = math.tanh %411 : vector<2x32xf32>
    %414 = arith.mulf %412, %413 : vector<2x32xf32>
    %c13_i32 = arith.constant 13 : i32
    %415 = vector.broadcast %c13_i32 : i32 to vector<32x1xi32>
    %416 = arith.cmpi eq, %41, %415 : vector<32x1xi32>
    %417 = vector.shape_cast %414 : vector<2x32xf32> to vector<2x1x32xf32>
    %418 = vector.shape_cast %416 : vector<32x1xi1> to vector<1x32x1xi1>
    %419 = vector.broadcast %418 : vector<1x32x1xi1> to vector<2x32x32xi1>
    %420 = vector.shape_cast %417 : vector<2x1x32xf32> to vector<2x1x32xf32>
    %421 = vector.broadcast %420 : vector<2x1x32xf32> to vector<2x32x32xf32>
    %422 = arith.select %419, %421, %395 : vector<2x32x32xi1>, vector<2x32x32xf32>
    %423 = vector.extract_strided_slice %40 {offsets = [28, 0], sizes = [2, 128], strides = [1, 1]} : vector<64x128xf32> to vector<2x128xf32>
    %424 = arith.truncf %414 : vector<2x32xf32> to vector<2x32xbf16>
    %cst_57 = arith.constant dense<0.000000e+00> : vector<2x128xf32>
    %425 = tpu.matmul %424, %3, %cst_57 {dimension_numbers = #tpu.dot_dimension_numbers<[1], [0], [0], [1], [0, 0, 1, 1], [], []>} : vector<2x32xbf16>, vector<32x128xbf16>, vector<2x128xf32> -> vector<2x128xf32>
    %426 = arith.addf %423, %425 : vector<2x128xf32>
    %427 = arith.negf %426 : vector<2x128xf32>
    %428 = math.exp %427 : vector<2x128xf32>
    %cst_58 = arith.constant 1.000000e+00 : f32
    %429 = vector.broadcast %cst_58 : f32 to vector<2x128xf32>
    %430 = arith.addf %429, %428 : vector<2x128xf32>
    %431 = arith.divf %429, %430 : vector<2x128xf32>
    %432 = vector.extract_strided_slice %426 {offsets = [0, 64], sizes = [2, 32], strides = [1, 1]} : vector<2x128xf32> to vector<2x32xf32>
    %433 = math.tanh %432 : vector<2x32xf32>
    %434 = vector.extract_strided_slice %431 {offsets = [0, 32], sizes = [2, 32], strides = [1, 1]} : vector<2x128xf32> to vector<2x32xf32>
    %435 = arith.mulf %434, %411 : vector<2x32xf32>
    %436 = vector.extract_strided_slice %431 {offsets = [0, 0], sizes = [2, 32], strides = [1, 1]} : vector<2x128xf32> to vector<2x32xf32>
    %437 = arith.mulf %436, %433 : vector<2x32xf32>
    %438 = arith.addf %435, %437 : vector<2x32xf32>
    %439 = vector.extract_strided_slice %431 {offsets = [0, 96], sizes = [2, 32], strides = [1, 1]} : vector<2x128xf32> to vector<2x32xf32>
    %440 = math.tanh %438 : vector<2x32xf32>
    %441 = arith.mulf %439, %440 : vector<2x32xf32>
    %c14_i32 = arith.constant 14 : i32
    %442 = vector.broadcast %c14_i32 : i32 to vector<32x1xi32>
    %443 = arith.cmpi eq, %41, %442 : vector<32x1xi32>
    %444 = vector.shape_cast %441 : vector<2x32xf32> to vector<2x1x32xf32>
    %445 = vector.shape_cast %443 : vector<32x1xi1> to vector<1x32x1xi1>
    %446 = vector.broadcast %445 : vector<1x32x1xi1> to vector<2x32x32xi1>
    %447 = vector.shape_cast %444 : vector<2x1x32xf32> to vector<2x1x32xf32>
    %448 = vector.broadcast %447 : vector<2x1x32xf32> to vector<2x32x32xf32>
    %449 = arith.select %446, %448, %422 : vector<2x32x32xi1>, vector<2x32x32xf32>
    %450 = vector.extract_strided_slice %40 {offsets = [30, 0], sizes = [2, 128], strides = [1, 1]} : vector<64x128xf32> to vector<2x128xf32>
    %451 = arith.truncf %441 : vector<2x32xf32> to vector<2x32xbf16>
    %cst_59 = arith.constant dense<0.000000e+00> : vector<2x128xf32>
    %452 = tpu.matmul %451, %3, %cst_59 {dimension_numbers = #tpu.dot_dimension_numbers<[1], [0], [0], [1], [0, 0, 1, 1], [], []>} : vector<2x32xbf16>, vector<32x128xbf16>, vector<2x128xf32> -> vector<2x128xf32>
    %453 = arith.addf %450, %452 : vector<2x128xf32>
    %454 = arith.negf %453 : vector<2x128xf32>
    %455 = math.exp %454 : vector<2x128xf32>
    %cst_60 = arith.constant 1.000000e+00 : f32
    %456 = vector.broadcast %cst_60 : f32 to vector<2x128xf32>
    %457 = arith.addf %456, %455 : vector<2x128xf32>
    %458 = arith.divf %456, %457 : vector<2x128xf32>
    %459 = vector.extract_strided_slice %453 {offsets = [0, 64], sizes = [2, 32], strides = [1, 1]} : vector<2x128xf32> to vector<2x32xf32>
    %460 = math.tanh %459 : vector<2x32xf32>
    %461 = vector.extract_strided_slice %458 {offsets = [0, 32], sizes = [2, 32], strides = [1, 1]} : vector<2x128xf32> to vector<2x32xf32>
    %462 = arith.mulf %461, %438 : vector<2x32xf32>
    %463 = vector.extract_strided_slice %458 {offsets = [0, 0], sizes = [2, 32], strides = [1, 1]} : vector<2x128xf32> to vector<2x32xf32>
    %464 = arith.mulf %463, %460 : vector<2x32xf32>
    %465 = arith.addf %462, %464 : vector<2x32xf32>
    %466 = vector.extract_strided_slice %458 {offsets = [0, 96], sizes = [2, 32], strides = [1, 1]} : vector<2x128xf32> to vector<2x32xf32>
    %467 = math.tanh %465 : vector<2x32xf32>
    %468 = arith.mulf %466, %467 : vector<2x32xf32>
    %c15_i32 = arith.constant 15 : i32
    %469 = vector.broadcast %c15_i32 : i32 to vector<32x1xi32>
    %470 = arith.cmpi eq, %41, %469 : vector<32x1xi32>
    %471 = vector.shape_cast %468 : vector<2x32xf32> to vector<2x1x32xf32>
    %472 = vector.shape_cast %470 : vector<32x1xi1> to vector<1x32x1xi1>
    %473 = vector.broadcast %472 : vector<1x32x1xi1> to vector<2x32x32xi1>
    %474 = vector.shape_cast %471 : vector<2x1x32xf32> to vector<2x1x32xf32>
    %475 = vector.broadcast %474 : vector<2x1x32xf32> to vector<2x32x32xf32>
    %476 = arith.select %473, %475, %449 : vector<2x32x32xi1>, vector<2x32x32xf32>
    %477 = vector.extract_strided_slice %40 {offsets = [32, 0], sizes = [2, 128], strides = [1, 1]} : vector<64x128xf32> to vector<2x128xf32>
    %478 = arith.truncf %468 : vector<2x32xf32> to vector<2x32xbf16>
    %cst_61 = arith.constant dense<0.000000e+00> : vector<2x128xf32>
    %479 = tpu.matmul %478, %3, %cst_61 {dimension_numbers = #tpu.dot_dimension_numbers<[1], [0], [0], [1], [0, 0, 1, 1], [], []>} : vector<2x32xbf16>, vector<32x128xbf16>, vector<2x128xf32> -> vector<2x128xf32>
    %480 = arith.addf %477, %479 : vector<2x128xf32>
    %481 = arith.negf %480 : vector<2x128xf32>
    %482 = math.exp %481 : vector<2x128xf32>
    %cst_62 = arith.constant 1.000000e+00 : f32
    %483 = vector.broadcast %cst_62 : f32 to vector<2x128xf32>
    %484 = arith.addf %483, %482 : vector<2x128xf32>
    %485 = arith.divf %483, %484 : vector<2x128xf32>
    %486 = vector.extract_strided_slice %480 {offsets = [0, 64], sizes = [2, 32], strides = [1, 1]} : vector<2x128xf32> to vector<2x32xf32>
    %487 = math.tanh %486 : vector<2x32xf32>
    %488 = vector.extract_strided_slice %485 {offsets = [0, 32], sizes = [2, 32], strides = [1, 1]} : vector<2x128xf32> to vector<2x32xf32>
    %489 = arith.mulf %488, %465 : vector<2x32xf32>
    %490 = vector.extract_strided_slice %485 {offsets = [0, 0], sizes = [2, 32], strides = [1, 1]} : vector<2x128xf32> to vector<2x32xf32>
    %491 = arith.mulf %490, %487 : vector<2x32xf32>
    %492 = arith.addf %489, %491 : vector<2x32xf32>
    %493 = vector.extract_strided_slice %485 {offsets = [0, 96], sizes = [2, 32], strides = [1, 1]} : vector<2x128xf32> to vector<2x32xf32>
    %494 = math.tanh %492 : vector<2x32xf32>
    %495 = arith.mulf %493, %494 : vector<2x32xf32>
    %c16_i32 = arith.constant 16 : i32
    %496 = vector.broadcast %c16_i32 : i32 to vector<32x1xi32>
    %497 = arith.cmpi eq, %41, %496 : vector<32x1xi32>
    %498 = vector.shape_cast %495 : vector<2x32xf32> to vector<2x1x32xf32>
    %499 = vector.shape_cast %497 : vector<32x1xi1> to vector<1x32x1xi1>
    %500 = vector.broadcast %499 : vector<1x32x1xi1> to vector<2x32x32xi1>
    %501 = vector.shape_cast %498 : vector<2x1x32xf32> to vector<2x1x32xf32>
    %502 = vector.broadcast %501 : vector<2x1x32xf32> to vector<2x32x32xf32>
    %503 = arith.select %500, %502, %476 : vector<2x32x32xi1>, vector<2x32x32xf32>
    %504 = vector.extract_strided_slice %40 {offsets = [34, 0], sizes = [2, 128], strides = [1, 1]} : vector<64x128xf32> to vector<2x128xf32>
    %505 = arith.truncf %495 : vector<2x32xf32> to vector<2x32xbf16>
    %cst_63 = arith.constant dense<0.000000e+00> : vector<2x128xf32>
    %506 = tpu.matmul %505, %3, %cst_63 {dimension_numbers = #tpu.dot_dimension_numbers<[1], [0], [0], [1], [0, 0, 1, 1], [], []>} : vector<2x32xbf16>, vector<32x128xbf16>, vector<2x128xf32> -> vector<2x128xf32>
    %507 = arith.addf %504, %506 : vector<2x128xf32>
    %508 = arith.negf %507 : vector<2x128xf32>
    %509 = math.exp %508 : vector<2x128xf32>
    %cst_64 = arith.constant 1.000000e+00 : f32
    %510 = vector.broadcast %cst_64 : f32 to vector<2x128xf32>
    %511 = arith.addf %510, %509 : vector<2x128xf32>
    %512 = arith.divf %510, %511 : vector<2x128xf32>
    %513 = vector.extract_strided_slice %507 {offsets = [0, 64], sizes = [2, 32], strides = [1, 1]} : vector<2x128xf32> to vector<2x32xf32>
    %514 = math.tanh %513 : vector<2x32xf32>
    %515 = vector.extract_strided_slice %512 {offsets = [0, 32], sizes = [2, 32], strides = [1, 1]} : vector<2x128xf32> to vector<2x32xf32>
    %516 = arith.mulf %515, %492 : vector<2x32xf32>
    %517 = vector.extract_strided_slice %512 {offsets = [0, 0], sizes = [2, 32], strides = [1, 1]} : vector<2x128xf32> to vector<2x32xf32>
    %518 = arith.mulf %517, %514 : vector<2x32xf32>
    %519 = arith.addf %516, %518 : vector<2x32xf32>
    %520 = vector.extract_strided_slice %512 {offsets = [0, 96], sizes = [2, 32], strides = [1, 1]} : vector<2x128xf32> to vector<2x32xf32>
    %521 = math.tanh %519 : vector<2x32xf32>
    %522 = arith.mulf %520, %521 : vector<2x32xf32>
    %c17_i32 = arith.constant 17 : i32
    %523 = vector.broadcast %c17_i32 : i32 to vector<32x1xi32>
    %524 = arith.cmpi eq, %41, %523 : vector<32x1xi32>
    %525 = vector.shape_cast %522 : vector<2x32xf32> to vector<2x1x32xf32>
    %526 = vector.shape_cast %524 : vector<32x1xi1> to vector<1x32x1xi1>
    %527 = vector.broadcast %526 : vector<1x32x1xi1> to vector<2x32x32xi1>
    %528 = vector.shape_cast %525 : vector<2x1x32xf32> to vector<2x1x32xf32>
    %529 = vector.broadcast %528 : vector<2x1x32xf32> to vector<2x32x32xf32>
    %530 = arith.select %527, %529, %503 : vector<2x32x32xi1>, vector<2x32x32xf32>
    %531 = vector.extract_strided_slice %40 {offsets = [36, 0], sizes = [2, 128], strides = [1, 1]} : vector<64x128xf32> to vector<2x128xf32>
    %532 = arith.truncf %522 : vector<2x32xf32> to vector<2x32xbf16>
    %cst_65 = arith.constant dense<0.000000e+00> : vector<2x128xf32>
    %533 = tpu.matmul %532, %3, %cst_65 {dimension_numbers = #tpu.dot_dimension_numbers<[1], [0], [0], [1], [0, 0, 1, 1], [], []>} : vector<2x32xbf16>, vector<32x128xbf16>, vector<2x128xf32> -> vector<2x128xf32>
    %534 = arith.addf %531, %533 : vector<2x128xf32>
    %535 = arith.negf %534 : vector<2x128xf32>
    %536 = math.exp %535 : vector<2x128xf32>
    %cst_66 = arith.constant 1.000000e+00 : f32
    %537 = vector.broadcast %cst_66 : f32 to vector<2x128xf32>
    %538 = arith.addf %537, %536 : vector<2x128xf32>
    %539 = arith.divf %537, %538 : vector<2x128xf32>
    %540 = vector.extract_strided_slice %534 {offsets = [0, 64], sizes = [2, 32], strides = [1, 1]} : vector<2x128xf32> to vector<2x32xf32>
    %541 = math.tanh %540 : vector<2x32xf32>
    %542 = vector.extract_strided_slice %539 {offsets = [0, 32], sizes = [2, 32], strides = [1, 1]} : vector<2x128xf32> to vector<2x32xf32>
    %543 = arith.mulf %542, %519 : vector<2x32xf32>
    %544 = vector.extract_strided_slice %539 {offsets = [0, 0], sizes = [2, 32], strides = [1, 1]} : vector<2x128xf32> to vector<2x32xf32>
    %545 = arith.mulf %544, %541 : vector<2x32xf32>
    %546 = arith.addf %543, %545 : vector<2x32xf32>
    %547 = vector.extract_strided_slice %539 {offsets = [0, 96], sizes = [2, 32], strides = [1, 1]} : vector<2x128xf32> to vector<2x32xf32>
    %548 = math.tanh %546 : vector<2x32xf32>
    %549 = arith.mulf %547, %548 : vector<2x32xf32>
    %c18_i32 = arith.constant 18 : i32
    %550 = vector.broadcast %c18_i32 : i32 to vector<32x1xi32>
    %551 = arith.cmpi eq, %41, %550 : vector<32x1xi32>
    %552 = vector.shape_cast %549 : vector<2x32xf32> to vector<2x1x32xf32>
    %553 = vector.shape_cast %551 : vector<32x1xi1> to vector<1x32x1xi1>
    %554 = vector.broadcast %553 : vector<1x32x1xi1> to vector<2x32x32xi1>
    %555 = vector.shape_cast %552 : vector<2x1x32xf32> to vector<2x1x32xf32>
    %556 = vector.broadcast %555 : vector<2x1x32xf32> to vector<2x32x32xf32>
    %557 = arith.select %554, %556, %530 : vector<2x32x32xi1>, vector<2x32x32xf32>
    %558 = vector.extract_strided_slice %40 {offsets = [38, 0], sizes = [2, 128], strides = [1, 1]} : vector<64x128xf32> to vector<2x128xf32>
    %559 = arith.truncf %549 : vector<2x32xf32> to vector<2x32xbf16>
    %cst_67 = arith.constant dense<0.000000e+00> : vector<2x128xf32>
    %560 = tpu.matmul %559, %3, %cst_67 {dimension_numbers = #tpu.dot_dimension_numbers<[1], [0], [0], [1], [0, 0, 1, 1], [], []>} : vector<2x32xbf16>, vector<32x128xbf16>, vector<2x128xf32> -> vector<2x128xf32>
    %561 = arith.addf %558, %560 : vector<2x128xf32>
    %562 = arith.negf %561 : vector<2x128xf32>
    %563 = math.exp %562 : vector<2x128xf32>
    %cst_68 = arith.constant 1.000000e+00 : f32
    %564 = vector.broadcast %cst_68 : f32 to vector<2x128xf32>
    %565 = arith.addf %564, %563 : vector<2x128xf32>
    %566 = arith.divf %564, %565 : vector<2x128xf32>
    %567 = vector.extract_strided_slice %561 {offsets = [0, 64], sizes = [2, 32], strides = [1, 1]} : vector<2x128xf32> to vector<2x32xf32>
    %568 = math.tanh %567 : vector<2x32xf32>
    %569 = vector.extract_strided_slice %566 {offsets = [0, 32], sizes = [2, 32], strides = [1, 1]} : vector<2x128xf32> to vector<2x32xf32>
    %570 = arith.mulf %569, %546 : vector<2x32xf32>
    %571 = vector.extract_strided_slice %566 {offsets = [0, 0], sizes = [2, 32], strides = [1, 1]} : vector<2x128xf32> to vector<2x32xf32>
    %572 = arith.mulf %571, %568 : vector<2x32xf32>
    %573 = arith.addf %570, %572 : vector<2x32xf32>
    %574 = vector.extract_strided_slice %566 {offsets = [0, 96], sizes = [2, 32], strides = [1, 1]} : vector<2x128xf32> to vector<2x32xf32>
    %575 = math.tanh %573 : vector<2x32xf32>
    %576 = arith.mulf %574, %575 : vector<2x32xf32>
    %c19_i32 = arith.constant 19 : i32
    %577 = vector.broadcast %c19_i32 : i32 to vector<32x1xi32>
    %578 = arith.cmpi eq, %41, %577 : vector<32x1xi32>
    %579 = vector.shape_cast %576 : vector<2x32xf32> to vector<2x1x32xf32>
    %580 = vector.shape_cast %578 : vector<32x1xi1> to vector<1x32x1xi1>
    %581 = vector.broadcast %580 : vector<1x32x1xi1> to vector<2x32x32xi1>
    %582 = vector.shape_cast %579 : vector<2x1x32xf32> to vector<2x1x32xf32>
    %583 = vector.broadcast %582 : vector<2x1x32xf32> to vector<2x32x32xf32>
    %584 = arith.select %581, %583, %557 : vector<2x32x32xi1>, vector<2x32x32xf32>
    %585 = vector.extract_strided_slice %40 {offsets = [40, 0], sizes = [2, 128], strides = [1, 1]} : vector<64x128xf32> to vector<2x128xf32>
    %586 = arith.truncf %576 : vector<2x32xf32> to vector<2x32xbf16>
    %cst_69 = arith.constant dense<0.000000e+00> : vector<2x128xf32>
    %587 = tpu.matmul %586, %3, %cst_69 {dimension_numbers = #tpu.dot_dimension_numbers<[1], [0], [0], [1], [0, 0, 1, 1], [], []>} : vector<2x32xbf16>, vector<32x128xbf16>, vector<2x128xf32> -> vector<2x128xf32>
    %588 = arith.addf %585, %587 : vector<2x128xf32>
    %589 = arith.negf %588 : vector<2x128xf32>
    %590 = math.exp %589 : vector<2x128xf32>
    %cst_70 = arith.constant 1.000000e+00 : f32
    %591 = vector.broadcast %cst_70 : f32 to vector<2x128xf32>
    %592 = arith.addf %591, %590 : vector<2x128xf32>
    %593 = arith.divf %591, %592 : vector<2x128xf32>
    %594 = vector.extract_strided_slice %588 {offsets = [0, 64], sizes = [2, 32], strides = [1, 1]} : vector<2x128xf32> to vector<2x32xf32>
    %595 = math.tanh %594 : vector<2x32xf32>
    %596 = vector.extract_strided_slice %593 {offsets = [0, 32], sizes = [2, 32], strides = [1, 1]} : vector<2x128xf32> to vector<2x32xf32>
    %597 = arith.mulf %596, %573 : vector<2x32xf32>
    %598 = vector.extract_strided_slice %593 {offsets = [0, 0], sizes = [2, 32], strides = [1, 1]} : vector<2x128xf32> to vector<2x32xf32>
    %599 = arith.mulf %598, %595 : vector<2x32xf32>
    %600 = arith.addf %597, %599 : vector<2x32xf32>
    %601 = vector.extract_strided_slice %593 {offsets = [0, 96], sizes = [2, 32], strides = [1, 1]} : vector<2x128xf32> to vector<2x32xf32>
    %602 = math.tanh %600 : vector<2x32xf32>
    %603 = arith.mulf %601, %602 : vector<2x32xf32>
    %c20_i32 = arith.constant 20 : i32
    %604 = vector.broadcast %c20_i32 : i32 to vector<32x1xi32>
    %605 = arith.cmpi eq, %41, %604 : vector<32x1xi32>
    %606 = vector.shape_cast %603 : vector<2x32xf32> to vector<2x1x32xf32>
    %607 = vector.shape_cast %605 : vector<32x1xi1> to vector<1x32x1xi1>
    %608 = vector.broadcast %607 : vector<1x32x1xi1> to vector<2x32x32xi1>
    %609 = vector.shape_cast %606 : vector<2x1x32xf32> to vector<2x1x32xf32>
    %610 = vector.broadcast %609 : vector<2x1x32xf32> to vector<2x32x32xf32>
    %611 = arith.select %608, %610, %584 : vector<2x32x32xi1>, vector<2x32x32xf32>
    %612 = vector.extract_strided_slice %40 {offsets = [42, 0], sizes = [2, 128], strides = [1, 1]} : vector<64x128xf32> to vector<2x128xf32>
    %613 = arith.truncf %603 : vector<2x32xf32> to vector<2x32xbf16>
    %cst_71 = arith.constant dense<0.000000e+00> : vector<2x128xf32>
    %614 = tpu.matmul %613, %3, %cst_71 {dimension_numbers = #tpu.dot_dimension_numbers<[1], [0], [0], [1], [0, 0, 1, 1], [], []>} : vector<2x32xbf16>, vector<32x128xbf16>, vector<2x128xf32> -> vector<2x128xf32>
    %615 = arith.addf %612, %614 : vector<2x128xf32>
    %616 = arith.negf %615 : vector<2x128xf32>
    %617 = math.exp %616 : vector<2x128xf32>
    %cst_72 = arith.constant 1.000000e+00 : f32
    %618 = vector.broadcast %cst_72 : f32 to vector<2x128xf32>
    %619 = arith.addf %618, %617 : vector<2x128xf32>
    %620 = arith.divf %618, %619 : vector<2x128xf32>
    %621 = vector.extract_strided_slice %615 {offsets = [0, 64], sizes = [2, 32], strides = [1, 1]} : vector<2x128xf32> to vector<2x32xf32>
    %622 = math.tanh %621 : vector<2x32xf32>
    %623 = vector.extract_strided_slice %620 {offsets = [0, 32], sizes = [2, 32], strides = [1, 1]} : vector<2x128xf32> to vector<2x32xf32>
    %624 = arith.mulf %623, %600 : vector<2x32xf32>
    %625 = vector.extract_strided_slice %620 {offsets = [0, 0], sizes = [2, 32], strides = [1, 1]} : vector<2x128xf32> to vector<2x32xf32>
    %626 = arith.mulf %625, %622 : vector<2x32xf32>
    %627 = arith.addf %624, %626 : vector<2x32xf32>
    %628 = vector.extract_strided_slice %620 {offsets = [0, 96], sizes = [2, 32], strides = [1, 1]} : vector<2x128xf32> to vector<2x32xf32>
    %629 = math.tanh %627 : vector<2x32xf32>
    %630 = arith.mulf %628, %629 : vector<2x32xf32>
    %c21_i32 = arith.constant 21 : i32
    %631 = vector.broadcast %c21_i32 : i32 to vector<32x1xi32>
    %632 = arith.cmpi eq, %41, %631 : vector<32x1xi32>
    %633 = vector.shape_cast %630 : vector<2x32xf32> to vector<2x1x32xf32>
    %634 = vector.shape_cast %632 : vector<32x1xi1> to vector<1x32x1xi1>
    %635 = vector.broadcast %634 : vector<1x32x1xi1> to vector<2x32x32xi1>
    %636 = vector.shape_cast %633 : vector<2x1x32xf32> to vector<2x1x32xf32>
    %637 = vector.broadcast %636 : vector<2x1x32xf32> to vector<2x32x32xf32>
    %638 = arith.select %635, %637, %611 : vector<2x32x32xi1>, vector<2x32x32xf32>
    %639 = vector.extract_strided_slice %40 {offsets = [44, 0], sizes = [2, 128], strides = [1, 1]} : vector<64x128xf32> to vector<2x128xf32>
    %640 = arith.truncf %630 : vector<2x32xf32> to vector<2x32xbf16>
    %cst_73 = arith.constant dense<0.000000e+00> : vector<2x128xf32>
    %641 = tpu.matmul %640, %3, %cst_73 {dimension_numbers = #tpu.dot_dimension_numbers<[1], [0], [0], [1], [0, 0, 1, 1], [], []>} : vector<2x32xbf16>, vector<32x128xbf16>, vector<2x128xf32> -> vector<2x128xf32>
    %642 = arith.addf %639, %641 : vector<2x128xf32>
    %643 = arith.negf %642 : vector<2x128xf32>
    %644 = math.exp %643 : vector<2x128xf32>
    %cst_74 = arith.constant 1.000000e+00 : f32
    %645 = vector.broadcast %cst_74 : f32 to vector<2x128xf32>
    %646 = arith.addf %645, %644 : vector<2x128xf32>
    %647 = arith.divf %645, %646 : vector<2x128xf32>
    %648 = vector.extract_strided_slice %642 {offsets = [0, 64], sizes = [2, 32], strides = [1, 1]} : vector<2x128xf32> to vector<2x32xf32>
    %649 = math.tanh %648 : vector<2x32xf32>
    %650 = vector.extract_strided_slice %647 {offsets = [0, 32], sizes = [2, 32], strides = [1, 1]} : vector<2x128xf32> to vector<2x32xf32>
    %651 = arith.mulf %650, %627 : vector<2x32xf32>
    %652 = vector.extract_strided_slice %647 {offsets = [0, 0], sizes = [2, 32], strides = [1, 1]} : vector<2x128xf32> to vector<2x32xf32>
    %653 = arith.mulf %652, %649 : vector<2x32xf32>
    %654 = arith.addf %651, %653 : vector<2x32xf32>
    %655 = vector.extract_strided_slice %647 {offsets = [0, 96], sizes = [2, 32], strides = [1, 1]} : vector<2x128xf32> to vector<2x32xf32>
    %656 = math.tanh %654 : vector<2x32xf32>
    %657 = arith.mulf %655, %656 : vector<2x32xf32>
    %c22_i32 = arith.constant 22 : i32
    %658 = vector.broadcast %c22_i32 : i32 to vector<32x1xi32>
    %659 = arith.cmpi eq, %41, %658 : vector<32x1xi32>
    %660 = vector.shape_cast %657 : vector<2x32xf32> to vector<2x1x32xf32>
    %661 = vector.shape_cast %659 : vector<32x1xi1> to vector<1x32x1xi1>
    %662 = vector.broadcast %661 : vector<1x32x1xi1> to vector<2x32x32xi1>
    %663 = vector.shape_cast %660 : vector<2x1x32xf32> to vector<2x1x32xf32>
    %664 = vector.broadcast %663 : vector<2x1x32xf32> to vector<2x32x32xf32>
    %665 = arith.select %662, %664, %638 : vector<2x32x32xi1>, vector<2x32x32xf32>
    %666 = vector.extract_strided_slice %40 {offsets = [46, 0], sizes = [2, 128], strides = [1, 1]} : vector<64x128xf32> to vector<2x128xf32>
    %667 = arith.truncf %657 : vector<2x32xf32> to vector<2x32xbf16>
    %cst_75 = arith.constant dense<0.000000e+00> : vector<2x128xf32>
    %668 = tpu.matmul %667, %3, %cst_75 {dimension_numbers = #tpu.dot_dimension_numbers<[1], [0], [0], [1], [0, 0, 1, 1], [], []>} : vector<2x32xbf16>, vector<32x128xbf16>, vector<2x128xf32> -> vector<2x128xf32>
    %669 = arith.addf %666, %668 : vector<2x128xf32>
    %670 = arith.negf %669 : vector<2x128xf32>
    %671 = math.exp %670 : vector<2x128xf32>
    %cst_76 = arith.constant 1.000000e+00 : f32
    %672 = vector.broadcast %cst_76 : f32 to vector<2x128xf32>
    %673 = arith.addf %672, %671 : vector<2x128xf32>
    %674 = arith.divf %672, %673 : vector<2x128xf32>
    %675 = vector.extract_strided_slice %669 {offsets = [0, 64], sizes = [2, 32], strides = [1, 1]} : vector<2x128xf32> to vector<2x32xf32>
    %676 = math.tanh %675 : vector<2x32xf32>
    %677 = vector.extract_strided_slice %674 {offsets = [0, 32], sizes = [2, 32], strides = [1, 1]} : vector<2x128xf32> to vector<2x32xf32>
    %678 = arith.mulf %677, %654 : vector<2x32xf32>
    %679 = vector.extract_strided_slice %674 {offsets = [0, 0], sizes = [2, 32], strides = [1, 1]} : vector<2x128xf32> to vector<2x32xf32>
    %680 = arith.mulf %679, %676 : vector<2x32xf32>
    %681 = arith.addf %678, %680 : vector<2x32xf32>
    %682 = vector.extract_strided_slice %674 {offsets = [0, 96], sizes = [2, 32], strides = [1, 1]} : vector<2x128xf32> to vector<2x32xf32>
    %683 = math.tanh %681 : vector<2x32xf32>
    %684 = arith.mulf %682, %683 : vector<2x32xf32>
    %c23_i32 = arith.constant 23 : i32
    %685 = vector.broadcast %c23_i32 : i32 to vector<32x1xi32>
    %686 = arith.cmpi eq, %41, %685 : vector<32x1xi32>
    %687 = vector.shape_cast %684 : vector<2x32xf32> to vector<2x1x32xf32>
    %688 = vector.shape_cast %686 : vector<32x1xi1> to vector<1x32x1xi1>
    %689 = vector.broadcast %688 : vector<1x32x1xi1> to vector<2x32x32xi1>
    %690 = vector.shape_cast %687 : vector<2x1x32xf32> to vector<2x1x32xf32>
    %691 = vector.broadcast %690 : vector<2x1x32xf32> to vector<2x32x32xf32>
    %692 = arith.select %689, %691, %665 : vector<2x32x32xi1>, vector<2x32x32xf32>
    %693 = vector.extract_strided_slice %40 {offsets = [48, 0], sizes = [2, 128], strides = [1, 1]} : vector<64x128xf32> to vector<2x128xf32>
    %694 = arith.truncf %684 : vector<2x32xf32> to vector<2x32xbf16>
    %cst_77 = arith.constant dense<0.000000e+00> : vector<2x128xf32>
    %695 = tpu.matmul %694, %3, %cst_77 {dimension_numbers = #tpu.dot_dimension_numbers<[1], [0], [0], [1], [0, 0, 1, 1], [], []>} : vector<2x32xbf16>, vector<32x128xbf16>, vector<2x128xf32> -> vector<2x128xf32>
    %696 = arith.addf %693, %695 : vector<2x128xf32>
    %697 = arith.negf %696 : vector<2x128xf32>
    %698 = math.exp %697 : vector<2x128xf32>
    %cst_78 = arith.constant 1.000000e+00 : f32
    %699 = vector.broadcast %cst_78 : f32 to vector<2x128xf32>
    %700 = arith.addf %699, %698 : vector<2x128xf32>
    %701 = arith.divf %699, %700 : vector<2x128xf32>
    %702 = vector.extract_strided_slice %696 {offsets = [0, 64], sizes = [2, 32], strides = [1, 1]} : vector<2x128xf32> to vector<2x32xf32>
    %703 = math.tanh %702 : vector<2x32xf32>
    %704 = vector.extract_strided_slice %701 {offsets = [0, 32], sizes = [2, 32], strides = [1, 1]} : vector<2x128xf32> to vector<2x32xf32>
    %705 = arith.mulf %704, %681 : vector<2x32xf32>
    %706 = vector.extract_strided_slice %701 {offsets = [0, 0], sizes = [2, 32], strides = [1, 1]} : vector<2x128xf32> to vector<2x32xf32>
    %707 = arith.mulf %706, %703 : vector<2x32xf32>
    %708 = arith.addf %705, %707 : vector<2x32xf32>
    %709 = vector.extract_strided_slice %701 {offsets = [0, 96], sizes = [2, 32], strides = [1, 1]} : vector<2x128xf32> to vector<2x32xf32>
    %710 = math.tanh %708 : vector<2x32xf32>
    %711 = arith.mulf %709, %710 : vector<2x32xf32>
    %c24_i32 = arith.constant 24 : i32
    %712 = vector.broadcast %c24_i32 : i32 to vector<32x1xi32>
    %713 = arith.cmpi eq, %41, %712 : vector<32x1xi32>
    %714 = vector.shape_cast %711 : vector<2x32xf32> to vector<2x1x32xf32>
    %715 = vector.shape_cast %713 : vector<32x1xi1> to vector<1x32x1xi1>
    %716 = vector.broadcast %715 : vector<1x32x1xi1> to vector<2x32x32xi1>
    %717 = vector.shape_cast %714 : vector<2x1x32xf32> to vector<2x1x32xf32>
    %718 = vector.broadcast %717 : vector<2x1x32xf32> to vector<2x32x32xf32>
    %719 = arith.select %716, %718, %692 : vector<2x32x32xi1>, vector<2x32x32xf32>
    %720 = vector.extract_strided_slice %40 {offsets = [50, 0], sizes = [2, 128], strides = [1, 1]} : vector<64x128xf32> to vector<2x128xf32>
    %721 = arith.truncf %711 : vector<2x32xf32> to vector<2x32xbf16>
    %cst_79 = arith.constant dense<0.000000e+00> : vector<2x128xf32>
    %722 = tpu.matmul %721, %3, %cst_79 {dimension_numbers = #tpu.dot_dimension_numbers<[1], [0], [0], [1], [0, 0, 1, 1], [], []>} : vector<2x32xbf16>, vector<32x128xbf16>, vector<2x128xf32> -> vector<2x128xf32>
    %723 = arith.addf %720, %722 : vector<2x128xf32>
    %724 = arith.negf %723 : vector<2x128xf32>
    %725 = math.exp %724 : vector<2x128xf32>
    %cst_80 = arith.constant 1.000000e+00 : f32
    %726 = vector.broadcast %cst_80 : f32 to vector<2x128xf32>
    %727 = arith.addf %726, %725 : vector<2x128xf32>
    %728 = arith.divf %726, %727 : vector<2x128xf32>
    %729 = vector.extract_strided_slice %723 {offsets = [0, 64], sizes = [2, 32], strides = [1, 1]} : vector<2x128xf32> to vector<2x32xf32>
    %730 = math.tanh %729 : vector<2x32xf32>
    %731 = vector.extract_strided_slice %728 {offsets = [0, 32], sizes = [2, 32], strides = [1, 1]} : vector<2x128xf32> to vector<2x32xf32>
    %732 = arith.mulf %731, %708 : vector<2x32xf32>
    %733 = vector.extract_strided_slice %728 {offsets = [0, 0], sizes = [2, 32], strides = [1, 1]} : vector<2x128xf32> to vector<2x32xf32>
    %734 = arith.mulf %733, %730 : vector<2x32xf32>
    %735 = arith.addf %732, %734 : vector<2x32xf32>
    %736 = vector.extract_strided_slice %728 {offsets = [0, 96], sizes = [2, 32], strides = [1, 1]} : vector<2x128xf32> to vector<2x32xf32>
    %737 = math.tanh %735 : vector<2x32xf32>
    %738 = arith.mulf %736, %737 : vector<2x32xf32>
    %c25_i32 = arith.constant 25 : i32
    %739 = vector.broadcast %c25_i32 : i32 to vector<32x1xi32>
    %740 = arith.cmpi eq, %41, %739 : vector<32x1xi32>
    %741 = vector.shape_cast %738 : vector<2x32xf32> to vector<2x1x32xf32>
    %742 = vector.shape_cast %740 : vector<32x1xi1> to vector<1x32x1xi1>
    %743 = vector.broadcast %742 : vector<1x32x1xi1> to vector<2x32x32xi1>
    %744 = vector.shape_cast %741 : vector<2x1x32xf32> to vector<2x1x32xf32>
    %745 = vector.broadcast %744 : vector<2x1x32xf32> to vector<2x32x32xf32>
    %746 = arith.select %743, %745, %719 : vector<2x32x32xi1>, vector<2x32x32xf32>
    %747 = vector.extract_strided_slice %40 {offsets = [52, 0], sizes = [2, 128], strides = [1, 1]} : vector<64x128xf32> to vector<2x128xf32>
    %748 = arith.truncf %738 : vector<2x32xf32> to vector<2x32xbf16>
    %cst_81 = arith.constant dense<0.000000e+00> : vector<2x128xf32>
    %749 = tpu.matmul %748, %3, %cst_81 {dimension_numbers = #tpu.dot_dimension_numbers<[1], [0], [0], [1], [0, 0, 1, 1], [], []>} : vector<2x32xbf16>, vector<32x128xbf16>, vector<2x128xf32> -> vector<2x128xf32>
    %750 = arith.addf %747, %749 : vector<2x128xf32>
    %751 = arith.negf %750 : vector<2x128xf32>
    %752 = math.exp %751 : vector<2x128xf32>
    %cst_82 = arith.constant 1.000000e+00 : f32
    %753 = vector.broadcast %cst_82 : f32 to vector<2x128xf32>
    %754 = arith.addf %753, %752 : vector<2x128xf32>
    %755 = arith.divf %753, %754 : vector<2x128xf32>
    %756 = vector.extract_strided_slice %750 {offsets = [0, 64], sizes = [2, 32], strides = [1, 1]} : vector<2x128xf32> to vector<2x32xf32>
    %757 = math.tanh %756 : vector<2x32xf32>
    %758 = vector.extract_strided_slice %755 {offsets = [0, 32], sizes = [2, 32], strides = [1, 1]} : vector<2x128xf32> to vector<2x32xf32>
    %759 = arith.mulf %758, %735 : vector<2x32xf32>
    %760 = vector.extract_strided_slice %755 {offsets = [0, 0], sizes = [2, 32], strides = [1, 1]} : vector<2x128xf32> to vector<2x32xf32>
    %761 = arith.mulf %760, %757 : vector<2x32xf32>
    %762 = arith.addf %759, %761 : vector<2x32xf32>
    %763 = vector.extract_strided_slice %755 {offsets = [0, 96], sizes = [2, 32], strides = [1, 1]} : vector<2x128xf32> to vector<2x32xf32>
    %764 = math.tanh %762 : vector<2x32xf32>
    %765 = arith.mulf %763, %764 : vector<2x32xf32>
    %c26_i32 = arith.constant 26 : i32
    %766 = vector.broadcast %c26_i32 : i32 to vector<32x1xi32>
    %767 = arith.cmpi eq, %41, %766 : vector<32x1xi32>
    %768 = vector.shape_cast %765 : vector<2x32xf32> to vector<2x1x32xf32>
    %769 = vector.shape_cast %767 : vector<32x1xi1> to vector<1x32x1xi1>
    %770 = vector.broadcast %769 : vector<1x32x1xi1> to vector<2x32x32xi1>
    %771 = vector.shape_cast %768 : vector<2x1x32xf32> to vector<2x1x32xf32>
    %772 = vector.broadcast %771 : vector<2x1x32xf32> to vector<2x32x32xf32>
    %773 = arith.select %770, %772, %746 : vector<2x32x32xi1>, vector<2x32x32xf32>
    %774 = vector.extract_strided_slice %40 {offsets = [54, 0], sizes = [2, 128], strides = [1, 1]} : vector<64x128xf32> to vector<2x128xf32>
    %775 = arith.truncf %765 : vector<2x32xf32> to vector<2x32xbf16>
    %cst_83 = arith.constant dense<0.000000e+00> : vector<2x128xf32>
    %776 = tpu.matmul %775, %3, %cst_83 {dimension_numbers = #tpu.dot_dimension_numbers<[1], [0], [0], [1], [0, 0, 1, 1], [], []>} : vector<2x32xbf16>, vector<32x128xbf16>, vector<2x128xf32> -> vector<2x128xf32>
    %777 = arith.addf %774, %776 : vector<2x128xf32>
    %778 = arith.negf %777 : vector<2x128xf32>
    %779 = math.exp %778 : vector<2x128xf32>
    %cst_84 = arith.constant 1.000000e+00 : f32
    %780 = vector.broadcast %cst_84 : f32 to vector<2x128xf32>
    %781 = arith.addf %780, %779 : vector<2x128xf32>
    %782 = arith.divf %780, %781 : vector<2x128xf32>
    %783 = vector.extract_strided_slice %777 {offsets = [0, 64], sizes = [2, 32], strides = [1, 1]} : vector<2x128xf32> to vector<2x32xf32>
    %784 = math.tanh %783 : vector<2x32xf32>
    %785 = vector.extract_strided_slice %782 {offsets = [0, 32], sizes = [2, 32], strides = [1, 1]} : vector<2x128xf32> to vector<2x32xf32>
    %786 = arith.mulf %785, %762 : vector<2x32xf32>
    %787 = vector.extract_strided_slice %782 {offsets = [0, 0], sizes = [2, 32], strides = [1, 1]} : vector<2x128xf32> to vector<2x32xf32>
    %788 = arith.mulf %787, %784 : vector<2x32xf32>
    %789 = arith.addf %786, %788 : vector<2x32xf32>
    %790 = vector.extract_strided_slice %782 {offsets = [0, 96], sizes = [2, 32], strides = [1, 1]} : vector<2x128xf32> to vector<2x32xf32>
    %791 = math.tanh %789 : vector<2x32xf32>
    %792 = arith.mulf %790, %791 : vector<2x32xf32>
    %c27_i32 = arith.constant 27 : i32
    %793 = vector.broadcast %c27_i32 : i32 to vector<32x1xi32>
    %794 = arith.cmpi eq, %41, %793 : vector<32x1xi32>
    %795 = vector.shape_cast %792 : vector<2x32xf32> to vector<2x1x32xf32>
    %796 = vector.shape_cast %794 : vector<32x1xi1> to vector<1x32x1xi1>
    %797 = vector.broadcast %796 : vector<1x32x1xi1> to vector<2x32x32xi1>
    %798 = vector.shape_cast %795 : vector<2x1x32xf32> to vector<2x1x32xf32>
    %799 = vector.broadcast %798 : vector<2x1x32xf32> to vector<2x32x32xf32>
    %800 = arith.select %797, %799, %773 : vector<2x32x32xi1>, vector<2x32x32xf32>
    %801 = vector.extract_strided_slice %40 {offsets = [56, 0], sizes = [2, 128], strides = [1, 1]} : vector<64x128xf32> to vector<2x128xf32>
    %802 = arith.truncf %792 : vector<2x32xf32> to vector<2x32xbf16>
    %cst_85 = arith.constant dense<0.000000e+00> : vector<2x128xf32>
    %803 = tpu.matmul %802, %3, %cst_85 {dimension_numbers = #tpu.dot_dimension_numbers<[1], [0], [0], [1], [0, 0, 1, 1], [], []>} : vector<2x32xbf16>, vector<32x128xbf16>, vector<2x128xf32> -> vector<2x128xf32>
    %804 = arith.addf %801, %803 : vector<2x128xf32>
    %805 = arith.negf %804 : vector<2x128xf32>
    %806 = math.exp %805 : vector<2x128xf32>
    %cst_86 = arith.constant 1.000000e+00 : f32
    %807 = vector.broadcast %cst_86 : f32 to vector<2x128xf32>
    %808 = arith.addf %807, %806 : vector<2x128xf32>
    %809 = arith.divf %807, %808 : vector<2x128xf32>
    %810 = vector.extract_strided_slice %804 {offsets = [0, 64], sizes = [2, 32], strides = [1, 1]} : vector<2x128xf32> to vector<2x32xf32>
    %811 = math.tanh %810 : vector<2x32xf32>
    %812 = vector.extract_strided_slice %809 {offsets = [0, 32], sizes = [2, 32], strides = [1, 1]} : vector<2x128xf32> to vector<2x32xf32>
    %813 = arith.mulf %812, %789 : vector<2x32xf32>
    %814 = vector.extract_strided_slice %809 {offsets = [0, 0], sizes = [2, 32], strides = [1, 1]} : vector<2x128xf32> to vector<2x32xf32>
    %815 = arith.mulf %814, %811 : vector<2x32xf32>
    %816 = arith.addf %813, %815 : vector<2x32xf32>
    %817 = vector.extract_strided_slice %809 {offsets = [0, 96], sizes = [2, 32], strides = [1, 1]} : vector<2x128xf32> to vector<2x32xf32>
    %818 = math.tanh %816 : vector<2x32xf32>
    %819 = arith.mulf %817, %818 : vector<2x32xf32>
    %c28_i32 = arith.constant 28 : i32
    %820 = vector.broadcast %c28_i32 : i32 to vector<32x1xi32>
    %821 = arith.cmpi eq, %41, %820 : vector<32x1xi32>
    %822 = vector.shape_cast %819 : vector<2x32xf32> to vector<2x1x32xf32>
    %823 = vector.shape_cast %821 : vector<32x1xi1> to vector<1x32x1xi1>
    %824 = vector.broadcast %823 : vector<1x32x1xi1> to vector<2x32x32xi1>
    %825 = vector.shape_cast %822 : vector<2x1x32xf32> to vector<2x1x32xf32>
    %826 = vector.broadcast %825 : vector<2x1x32xf32> to vector<2x32x32xf32>
    %827 = arith.select %824, %826, %800 : vector<2x32x32xi1>, vector<2x32x32xf32>
    %828 = vector.extract_strided_slice %40 {offsets = [58, 0], sizes = [2, 128], strides = [1, 1]} : vector<64x128xf32> to vector<2x128xf32>
    %829 = arith.truncf %819 : vector<2x32xf32> to vector<2x32xbf16>
    %cst_87 = arith.constant dense<0.000000e+00> : vector<2x128xf32>
    %830 = tpu.matmul %829, %3, %cst_87 {dimension_numbers = #tpu.dot_dimension_numbers<[1], [0], [0], [1], [0, 0, 1, 1], [], []>} : vector<2x32xbf16>, vector<32x128xbf16>, vector<2x128xf32> -> vector<2x128xf32>
    %831 = arith.addf %828, %830 : vector<2x128xf32>
    %832 = arith.negf %831 : vector<2x128xf32>
    %833 = math.exp %832 : vector<2x128xf32>
    %cst_88 = arith.constant 1.000000e+00 : f32
    %834 = vector.broadcast %cst_88 : f32 to vector<2x128xf32>
    %835 = arith.addf %834, %833 : vector<2x128xf32>
    %836 = arith.divf %834, %835 : vector<2x128xf32>
    %837 = vector.extract_strided_slice %831 {offsets = [0, 64], sizes = [2, 32], strides = [1, 1]} : vector<2x128xf32> to vector<2x32xf32>
    %838 = math.tanh %837 : vector<2x32xf32>
    %839 = vector.extract_strided_slice %836 {offsets = [0, 32], sizes = [2, 32], strides = [1, 1]} : vector<2x128xf32> to vector<2x32xf32>
    %840 = arith.mulf %839, %816 : vector<2x32xf32>
    %841 = vector.extract_strided_slice %836 {offsets = [0, 0], sizes = [2, 32], strides = [1, 1]} : vector<2x128xf32> to vector<2x32xf32>
    %842 = arith.mulf %841, %838 : vector<2x32xf32>
    %843 = arith.addf %840, %842 : vector<2x32xf32>
    %844 = vector.extract_strided_slice %836 {offsets = [0, 96], sizes = [2, 32], strides = [1, 1]} : vector<2x128xf32> to vector<2x32xf32>
    %845 = math.tanh %843 : vector<2x32xf32>
    %846 = arith.mulf %844, %845 : vector<2x32xf32>
    %c29_i32 = arith.constant 29 : i32
    %847 = vector.broadcast %c29_i32 : i32 to vector<32x1xi32>
    %848 = arith.cmpi eq, %41, %847 : vector<32x1xi32>
    %849 = vector.shape_cast %846 : vector<2x32xf32> to vector<2x1x32xf32>
    %850 = vector.shape_cast %848 : vector<32x1xi1> to vector<1x32x1xi1>
    %851 = vector.broadcast %850 : vector<1x32x1xi1> to vector<2x32x32xi1>
    %852 = vector.shape_cast %849 : vector<2x1x32xf32> to vector<2x1x32xf32>
    %853 = vector.broadcast %852 : vector<2x1x32xf32> to vector<2x32x32xf32>
    %854 = arith.select %851, %853, %827 : vector<2x32x32xi1>, vector<2x32x32xf32>
    %855 = vector.extract_strided_slice %40 {offsets = [60, 0], sizes = [2, 128], strides = [1, 1]} : vector<64x128xf32> to vector<2x128xf32>
    %856 = arith.truncf %846 : vector<2x32xf32> to vector<2x32xbf16>
    %cst_89 = arith.constant dense<0.000000e+00> : vector<2x128xf32>
    %857 = tpu.matmul %856, %3, %cst_89 {dimension_numbers = #tpu.dot_dimension_numbers<[1], [0], [0], [1], [0, 0, 1, 1], [], []>} : vector<2x32xbf16>, vector<32x128xbf16>, vector<2x128xf32> -> vector<2x128xf32>
    %858 = arith.addf %855, %857 : vector<2x128xf32>
    %859 = arith.negf %858 : vector<2x128xf32>
    %860 = math.exp %859 : vector<2x128xf32>
    %cst_90 = arith.constant 1.000000e+00 : f32
    %861 = vector.broadcast %cst_90 : f32 to vector<2x128xf32>
    %862 = arith.addf %861, %860 : vector<2x128xf32>
    %863 = arith.divf %861, %862 : vector<2x128xf32>
    %864 = vector.extract_strided_slice %858 {offsets = [0, 64], sizes = [2, 32], strides = [1, 1]} : vector<2x128xf32> to vector<2x32xf32>
    %865 = math.tanh %864 : vector<2x32xf32>
    %866 = vector.extract_strided_slice %863 {offsets = [0, 32], sizes = [2, 32], strides = [1, 1]} : vector<2x128xf32> to vector<2x32xf32>
    %867 = arith.mulf %866, %843 : vector<2x32xf32>
    %868 = vector.extract_strided_slice %863 {offsets = [0, 0], sizes = [2, 32], strides = [1, 1]} : vector<2x128xf32> to vector<2x32xf32>
    %869 = arith.mulf %868, %865 : vector<2x32xf32>
    %870 = arith.addf %867, %869 : vector<2x32xf32>
    %871 = vector.extract_strided_slice %863 {offsets = [0, 96], sizes = [2, 32], strides = [1, 1]} : vector<2x128xf32> to vector<2x32xf32>
    %872 = math.tanh %870 : vector<2x32xf32>
    %873 = arith.mulf %871, %872 : vector<2x32xf32>
    %c30_i32 = arith.constant 30 : i32
    %874 = vector.broadcast %c30_i32 : i32 to vector<32x1xi32>
    %875 = arith.cmpi eq, %41, %874 : vector<32x1xi32>
    %876 = vector.shape_cast %873 : vector<2x32xf32> to vector<2x1x32xf32>
    %877 = vector.shape_cast %875 : vector<32x1xi1> to vector<1x32x1xi1>
    %878 = vector.broadcast %877 : vector<1x32x1xi1> to vector<2x32x32xi1>
    %879 = vector.shape_cast %876 : vector<2x1x32xf32> to vector<2x1x32xf32>
    %880 = vector.broadcast %879 : vector<2x1x32xf32> to vector<2x32x32xf32>
    %881 = arith.select %878, %880, %854 : vector<2x32x32xi1>, vector<2x32x32xf32>
    %882 = vector.extract_strided_slice %40 {offsets = [62, 0], sizes = [2, 128], strides = [1, 1]} : vector<64x128xf32> to vector<2x128xf32>
    %883 = arith.truncf %873 : vector<2x32xf32> to vector<2x32xbf16>
    %cst_91 = arith.constant dense<0.000000e+00> : vector<2x128xf32>
    %884 = tpu.matmul %883, %3, %cst_91 {dimension_numbers = #tpu.dot_dimension_numbers<[1], [0], [0], [1], [0, 0, 1, 1], [], []>} : vector<2x32xbf16>, vector<32x128xbf16>, vector<2x128xf32> -> vector<2x128xf32>
    %885 = arith.addf %882, %884 : vector<2x128xf32>
    %886 = arith.negf %885 : vector<2x128xf32>
    %887 = math.exp %886 : vector<2x128xf32>
    %cst_92 = arith.constant 1.000000e+00 : f32
    %888 = vector.broadcast %cst_92 : f32 to vector<2x128xf32>
    %889 = arith.addf %888, %887 : vector<2x128xf32>
    %890 = arith.divf %888, %889 : vector<2x128xf32>
    %891 = vector.extract_strided_slice %885 {offsets = [0, 64], sizes = [2, 32], strides = [1, 1]} : vector<2x128xf32> to vector<2x32xf32>
    %892 = math.tanh %891 : vector<2x32xf32>
    %893 = vector.extract_strided_slice %890 {offsets = [0, 32], sizes = [2, 32], strides = [1, 1]} : vector<2x128xf32> to vector<2x32xf32>
    %894 = arith.mulf %893, %870 : vector<2x32xf32>
    %895 = vector.extract_strided_slice %890 {offsets = [0, 0], sizes = [2, 32], strides = [1, 1]} : vector<2x128xf32> to vector<2x32xf32>
    %896 = arith.mulf %895, %892 : vector<2x32xf32>
    %897 = arith.addf %894, %896 : vector<2x32xf32>
    %898 = vector.extract_strided_slice %890 {offsets = [0, 96], sizes = [2, 32], strides = [1, 1]} : vector<2x128xf32> to vector<2x32xf32>
    %899 = math.tanh %897 : vector<2x32xf32>
    %900 = arith.mulf %898, %899 : vector<2x32xf32>
    %c31_i32_93 = arith.constant 31 : i32
    %901 = vector.broadcast %c31_i32_93 : i32 to vector<32x1xi32>
    %902 = arith.cmpi eq, %41, %901 : vector<32x1xi32>
    %903 = vector.shape_cast %900 : vector<2x32xf32> to vector<2x1x32xf32>
    %904 = vector.shape_cast %902 : vector<32x1xi1> to vector<1x32x1xi1>
    %905 = vector.broadcast %904 : vector<1x32x1xi1> to vector<2x32x32xi1>
    %906 = vector.shape_cast %903 : vector<2x1x32xf32> to vector<2x1x32xf32>
    %907 = vector.broadcast %906 : vector<2x1x32xf32> to vector<2x32x32xf32>
    %908 = arith.select %905, %907, %881 : vector<2x32x32xi1>, vector<2x32x32xf32>
    %909 = tpu.iota {dimensions = array<i32: 0>} : vector<8x8xi32>
    %910 = tpu.iota {dimensions = array<i32: 1>} : vector<8x8xi32>
    %911 = arith.cmpi eq, %909, %910 : vector<8x8xi32>
    %912 = arith.extui %911 : vector<8x8xi1> to vector<8x8xi32>
    %913 = arith.sitofp %912 : vector<8x8xi32> to vector<8x8xf32>
    %c0_94 = arith.constant 0 : index
    %c0_95 = arith.constant 0 : index
    %c0_96 = arith.constant 0 : index
    %914 = vector.load %arg2[%c0_94, %c0_95, %c0_96] : memref<2x8x8xf32, #tpu.memory_space<vmem>>, vector<2x8x8xf32>
    %915 = vector.shape_cast %913 : vector<8x8xf32> to vector<1x8x8xf32>
    %916 = vector.broadcast %915 : vector<1x8x8xf32> to vector<2x8x8xf32>
    %917 = arith.addf %914, %916 : vector<2x8x8xf32>
    %cst_97 = arith.constant dense<0.000000e+00> : vector<2x8xf32>
    %918 = vector.multi_reduction <add>, %917, %cst_97 [2] : vector<2x8x8xf32> to vector<2x8xf32>
    %919 = vector.shape_cast %918 : vector<2x8xf32> to vector<2x8x1xf32>
    %cst_98 = arith.constant 0.000000e+00 : f32
    %920 = vector.broadcast %cst_98 : f32 to vector<2x8x1xf32>
    %921 = arith.cmpf ogt, %919, %920 : vector<2x8x1xf32>
    %922 = math.rsqrt %919 : vector<2x8x1xf32>
    %cst_99 = arith.constant 0.000000e+00 : f32
    %923 = vector.broadcast %cst_99 : f32 to vector<2x8x1xf32>
    %924 = arith.select %921, %922, %923 : vector<2x8x1xi1>, vector<2x8x1xf32>
    %c0_100 = arith.constant 0 : index
    %c0_101 = arith.constant 0 : index
    %c0_102 = arith.constant 0 : index
    %925 = vector.load %arg0[%c0_100, %c0_101, %c0_102] : memref<2x8x32xf32, #tpu.memory_space<vmem>>, vector<2x8x32xf32>
    %926 = vector.broadcast %924 : vector<2x8x1xf32> to vector<2x8x32xf32>
    %927 = arith.mulf %926, %925 : vector<2x8x32xf32>
    %928 = arith.truncf %927 : vector<2x8x32xf32> to vector<2x8x32xbf16>
    %929 = arith.truncf %917 : vector<2x8x8xf32> to vector<2x8x8xbf16>
    "tpu.trace_start"() <{level = 10 : i32, message = "bij,bjh->bih"}> : () -> ()
    %cst_103 = arith.constant dense<0.000000e+00> : vector<2x8x32xf32>
    %930 = tpu.matmul %929, %928, %cst_103 {dimension_numbers = #tpu.dot_dimension_numbers<[2], [1], [1], [2], [0, 0, 0, 1, 1, 2], [0], [0]>} : vector<2x8x8xbf16>, vector<2x8x32xbf16>, vector<2x8x32xf32> -> vector<2x8x32xf32>
    "tpu.trace_stop"() : () -> ()
    %931 = vector.broadcast %924 : vector<2x8x1xf32> to vector<2x8x32xf32>
    %932 = arith.mulf %931, %930 : vector<2x8x32xf32>
    %933 = arith.truncf %932 : vector<2x8x32xf32> to vector<2x8x32xbf16>
    %934 = arith.truncf %908 : vector<2x32x32xf32> to vector<2x32x32xbf16>
    "tpu.trace_start"() <{level = 10 : i32, message = "bnh,bhk->bnk"}> : () -> ()
    %cst_104 = arith.constant dense<0.000000e+00> : vector<2x8x32xf32>
    %935 = tpu.matmul %933, %934, %cst_104 {dimension_numbers = #tpu.dot_dimension_numbers<[2], [1], [1], [2], [0, 0, 0, 1, 1, 2], [0], [0]>} : vector<2x8x32xbf16>, vector<2x32x32xbf16>, vector<2x8x32xf32> -> vector<2x8x32xf32>
    "tpu.trace_stop"() : () -> ()
    %936 = arith.negf %935 : vector<2x8x32xf32>
    %937 = math.exp %936 : vector<2x8x32xf32>
    %cst_105 = arith.constant 1.000000e+00 : f32
    %938 = vector.broadcast %cst_105 : f32 to vector<2x8x32xf32>
    %939 = arith.addf %938, %937 : vector<2x8x32xf32>
    %940 = arith.divf %938, %939 : vector<2x8x32xf32>
    %c0_106 = arith.constant 0 : index
    %c0_107 = arith.constant 0 : index
    %c0_108 = arith.constant 0 : index
    %941 = vector.load %arg8[%c0_106, %c0_107, %c0_108] : memref<2x8x32xf32, #tpu.memory_space<vmem>>, vector<2x8x32xf32>
    tpu.vector_store %arg8[%c0_106, %c0_107, %c0_108], %940 {strides = array<i32>} : memref<2x8x32xf32, #tpu.memory_space<vmem>>, vector<2x8x32xf32>,
    return
  }
}

</mosaic_0001>

<llo_original>
// kernel: gcn_forward.1
$region0: #{gcn_forward.1}
  #allocation0 [shape = 'u32[]', space=smem, size = 0x4, offset = 0x4, fixed_abs, tag = 'smem constant byte address 0x4 - core index']
  #allocation1 [shape = 'u32[144,128]{1,0:T(1,128)}', space=vmem, size = 0x12000, scoped, tag = 'internal scratch']
  %s0 = inlined_call_operand.vmem [shape: f32[2,8,32], index: 0, kind: input, shape index: {}]
  %s1 = inlined_call_operand.vmem [shape: f32[2,32,32], index: 1, kind: input, shape index: {}]
  %s2 = inlined_call_operand.vmem [shape: f32[2,8,8], index: 2, kind: input, shape index: {}]
  %s3 = inlined_call_operand.vmem [shape: bf16[64,192], index: 3, kind: input, shape index: {}]
  %s4 = inlined_call_operand.vmem [shape: f32[64,1], index: 4, kind: input, shape index: {}]
  %s5 = inlined_call_operand.vmem [shape: bf16[32,128], index: 5, kind: input, shape index: {}]
  %s6 = inlined_call_operand.vmem [shape: bf16[32,128], index: 6, kind: input, shape index: {}]
  %s7 = inlined_call_operand.vmem [shape: f32[1,128], index: 7, kind: input, shape index: {}]
  %s8 = inlined_call_operand.hbm [shape: f32[2,8,32], index: 8, kind: output, shape index: {}]
  %s9 = sld [smem:[#allocation0]]
  $region42: #{gcn_forward.1} parent=0
    _
  %s11 = ssub.s32 1, %s9
  %s12 = scalar_select 0, %s11, %s9
  $region1: #{gcn_forward.1} parent=0
    #allocation2 [shape = 'u8[8192]{0}', space=vmem, size = 0x2000, scoped, tag = 'output window, operand 0, single buffered']
    #allocation3 [shape = 's32[1]{0}', space=sflag, size = 0x4, scoped, tag = 'scoped memory for gcn_forward.1']
    %13 = vsyncpa [#allocation3], 0
    // Predicated region
    $region2: #{gcn_forward.1} parent=1 // pred_check
      _
    $region3: #{gcn_forward.1} parent=1 // pred_check_branch
      %15 = sbr.rel (0) target = $region5
    $region4: #{gcn_forward.1} parent=1 // pred_region
      _
    $region5: #{gcn_forward.1} parent=1 // pred_fallthru
      _
    // Predicated region
    $region6: #{gcn_forward.1} parent=1 // pred_check
      _
    $region7: #{gcn_forward.1} parent=1 // pred_check_branch
      %17 = sbr.rel (0) target = $region9
    $region8: #{gcn_forward.1} parent=1 // pred_region
      _
    $region9: #{gcn_forward.1} parent=1 // pred_fallthru
      _
    // Predicated region
    $region10: #{gcn_forward.1} parent=1 // pred_check
      _
    $region11: #{gcn_forward.1} parent=1 // pred_check_branch
      %19 = sbr.rel (0) target = $region13
    $region12: #{gcn_forward.1} parent=1 // pred_region
      _
    $region13: #{gcn_forward.1} parent=1 // pred_fallthru
      _
    // Predicated region
    $region14: #{gcn_forward.1} parent=1 // pred_check
      _
    $region15: #{gcn_forward.1} parent=1 // pred_check_branch
      %21 = sbr.rel (0) target = $region17
    $region16: #{gcn_forward.1} parent=1 // pred_region
      _
    $region17: #{gcn_forward.1} parent=1 // pred_fallthru
      _
    // Predicated region
    $region18: #{gcn_forward.1} parent=1 // pred_check
      _
    $region19: #{gcn_forward.1} parent=1 // pred_check_branch
      %23 = sbr.rel (0) target = $region21
    $region20: #{gcn_forward.1} parent=1 // pred_region
      _
    $region21: #{gcn_forward.1} parent=1 // pred_fallthru
      _
    // Predicated region
    $region22: #{gcn_forward.1} parent=1 // pred_check
      _
    $region23: #{gcn_forward.1} parent=1 // pred_check_branch
      %25 = sbr.rel (0) target = $region25
    $region24: #{gcn_forward.1} parent=1 // pred_region
      _
    $region25: #{gcn_forward.1} parent=1 // pred_fallthru
      _
    // Predicated region
    $region26: #{gcn_forward.1} parent=1 // pred_check
      _
    $region27: #{gcn_forward.1} parent=1 // pred_check_branch
      %27 = sbr.rel (0) target = $region29
    $region28: #{gcn_forward.1} parent=1 // pred_region
      _
    $region29: #{gcn_forward.1} parent=1 // pred_fallthru
      _
    // Predicated region
    $region30: #{gcn_forward.1} parent=1 // pred_check
      _
    $region31: #{gcn_forward.1} parent=1 // pred_check_branch
      %29 = sbr.rel (0) target = $region33
    $region32: #{gcn_forward.1} parent=1 // pred_region
      _
    $region33: #{gcn_forward.1} parent=1 // pred_fallthru
      _
    %v31 = vld [vmem:[%s3] sm:$0xff]
    %v32 = vld [vmem:[%s3 + $0x8] sm:$0xff]
    %v33 = vld [vmem:[%s3 + $0x10] sm:$0xff]
    %v34 = vld [vmem:[%s3 + $0x18] sm:$0xff]
    %v35 = vld [vmem:[%s3 + $0x20] sm:$0xff]
    %v36 = vld [vmem:[%s3 + $0x28] sm:$0xff]
    %v37 = vld [vmem:[%s3 + $0x30] sm:$0xff]
    %v38 = vld [vmem:[%s3 + $0x38] sm:$0xff]
    %v39 = vld [vmem:[%s4] sm:$0xff]
    %v40 = vld [vmem:[%s4 + $0x8] sm:$0xff]
    %v41 = vld [vmem:[%s4 + $0x10] sm:$0xff]
    %v42 = vld [vmem:[%s4 + $0x18] sm:$0xff]
    %v43 = vld [vmem:[%s4 + $0x20] sm:$0xff]
    %v44 = vld [vmem:[%s4 + $0x28] sm:$0xff]
    %v45 = vld [vmem:[%s4 + $0x30] sm:$0xff]
    %v46 = vld [vmem:[%s4 + $0x38] sm:$0xff]
    %v47 = vld [vmem:[%s5] sm:$0xf]
    %v48 = vld [vmem:[%s5 + $0x4] sm:$0xf]
    %v49 = vld [vmem:[%s5 + $0x8] sm:$0xf]
    %v50 = vld [vmem:[%s5 + $0xc] sm:$0xf]
    %v51 = vld [vmem:[%s6] sm:$0xf]
    %v52 = vld [vmem:[%s6 + $0x4] sm:$0xf]
    %v53 = vld [vmem:[%s6 + $0x8] sm:$0xf]
    %v54 = vld [vmem:[%s6 + $0xc] sm:$0xf]
    %v55 = vld [vmem:[%s7] sm:$0x1]
    %v56 = vlaneseq
    %v57 = vand.u32 %v56, 127
    %v58 = vld [vmem:[%s1] sm:$0xff]
    %v59 = vld [vmem:[%s1 + $0x8] sm:$0xff]
    %v60 = vld [vmem:[%s1 + $0x10] sm:$0xff]
    %v61 = vld [vmem:[%s1 + $0x18] sm:$0xff]
    %vm62 = vcmp.eq.s32.totalorder %v57, 0
    %vm63 = vcmask 1047808
    %64 = vrot.lane.b32.xlu0 %v58, 32
    %v65 = vpop.permute.xlu0 %64
    %v66 = vsel %vm63, %v65, %v58
    %67 = vrot.lane.b32.xlu0 %v59, 32
    %v68 = vpop.permute.xlu0 %67
    %v69 = vsel %vm63, %v68, %v59
    %70 = vrot.lane.b32.xlu0 %v60, 32
    %v71 = vpop.permute.xlu0 %70
    %v72 = vsel %vm63, %v71, %v60
    %73 = vrot.lane.b32.xlu0 %v61, 32
    %v74 = vpop.permute.xlu0 %73
    %v75 = vsel %vm63, %v74, %v61
    %76 = vrot.lane.b32.xlu0 %v66, 32
    %v77 = vpop.permute.xlu0 %76
    %78 = vrot.lane.b32.xlu0 %v69, 32
    %v79 = vpop.permute.xlu0 %78
    %80 = vrot.lane.b32.xlu0 %v72, 32
    %v81 = vpop.permute.xlu0 %80
    %82 = vrot.lane.b32.xlu0 %v75, 32
    %v83 = vpop.permute.xlu0 %82
    %v84 = vsel %vm63, %v77, %v58
    %v85 = vsel %vm63, %v79, %v59
    %v86 = vsel %vm63, %v81, %v60
    %v87 = vsel %vm63, %v83, %v61
    %92 = vrot.lane.b32.xlu0 %v84, 97
    %v93 = vpop.permute.xlu0 %92
    %94 = vrot.lane.b32.xlu0 %v85, 97
    %v95 = vpop.permute.xlu0 %94
    %96 = vrot.lane.b32.xlu0 %v86, 97
    %v97 = vpop.permute.xlu0 %96
    %98 = vrot.lane.b32.xlu0 %v87, 97
    %v99 = vpop.permute.xlu0 %98
    %v104 = vsel %vm62, 0.0, %v93
    %v105 = vsel %vm62, 0.0, %v95
    %v106 = vsel %vm62, 0.0, %v97
    %v107 = vsel %vm62, 0.0, %v99
    %vm108 = vcmp.eq.s32.totalorder %v57, 31
    %109 = vrot.lane.b32.xlu0 %v84, 127
    %v110 = vpop.permute.xlu0 %109
    %111 = vrot.lane.b32.xlu0 %v85, 127
    %v112 = vpop.permute.xlu0 %111
    %113 = vrot.lane.b32.xlu0 %v86, 127
    %v114 = vpop.permute.xlu0 %113
    %115 = vrot.lane.b32.xlu0 %v87, 127
    %v116 = vpop.permute.xlu0 %115
    %v121 = vsel %vm108, 0.0, %v110
    %v122 = vsel %vm108, 0.0, %v112
    %v123 = vsel %vm108, 0.0, %v114
    %v124 = vsel %vm108, 0.0, %v116
    %s125 = scalar_lea.vmem %s1, 32
    %v126 = vld [vmem:[%s125] sm:$0xff]
    %v127 = vld [vmem:[%s125 + $0x8] sm:$0xff]
    %v128 = vld [vmem:[%s125 + $0x10] sm:$0xff]
    %v129 = vld [vmem:[%s125 + $0x18] sm:$0xff]
    %130 = vrot.lane.b32.xlu0 %v126, 32
    %v131 = vpop.permute.xlu0 %130
    %v132 = vsel %vm63, %v131, %v126
    %133 = vrot.lane.b32.xlu0 %v127, 32
    %v134 = vpop.permute.xlu0 %133
    %v135 = vsel %vm63, %v134, %v127
    %136 = vrot.lane.b32.xlu0 %v128, 32
    %v137 = vpop.permute.xlu0 %136
    %v138 = vsel %vm63, %v137, %v128
    %139 = vrot.lane.b32.xlu0 %v129, 32
    %v140 = vpop.permute.xlu0 %139
    %v141 = vsel %vm63, %v140, %v129
    %142 = vrot.lane.b32.xlu0 %v132, 32
    %v143 = vpop.permute.xlu0 %142
    %144 = vrot.lane.b32.xlu0 %v135, 32
    %v145 = vpop.permute.xlu0 %144
    %146 = vrot.lane.b32.xlu0 %v138, 32
    %v147 = vpop.permute.xlu0 %146
    %148 = vrot.lane.b32.xlu0 %v141, 32
    %v149 = vpop.permute.xlu0 %148
    %v150 = vsel %vm63, %v143, %v126
    %v151 = vsel %vm63, %v145, %v127
    %v152 = vsel %vm63, %v147, %v128
    %v153 = vsel %vm63, %v149, %v129
    %158 = vrot.lane.b32.xlu0 %v150, 97
    %v159 = vpop.permute.xlu0 %158
    %160 = vrot.lane.b32.xlu0 %v151, 97
    %v161 = vpop.permute.xlu0 %160
    %162 = vrot.lane.b32.xlu0 %v152, 97
    %v163 = vpop.permute.xlu0 %162
    %164 = vrot.lane.b32.xlu0 %v153, 97
    %v165 = vpop.permute.xlu0 %164
    %v170 = vsel %vm62, 0.0, %v159
    %v171 = vsel %vm62, 0.0, %v161
    %v172 = vsel %vm62, 0.0, %v163
    %v173 = vsel %vm62, 0.0, %v165
    %174 = vrot.lane.b32.xlu0 %v150, 127
    %v175 = vpop.permute.xlu0 %174
    %176 = vrot.lane.b32.xlu0 %v151, 127
    %v177 = vpop.permute.xlu0 %176
    %178 = vrot.lane.b32.xlu0 %v152, 127
    %v179 = vpop.permute.xlu0 %178
    %180 = vrot.lane.b32.xlu0 %v153, 127
    %v181 = vpop.permute.xlu0 %180
    %v186 = vsel %vm108, 0.0, %v175
    %v187 = vsel %vm108, 0.0, %v177
    %v188 = vsel %vm108, 0.0, %v179
    %v189 = vsel %vm108, 0.0, %v181
    %v190 = vpack.c.bf16 %v105, %v104
    %v191 = vpack.c.bf16 %v107, %v106
    %v192 = vpack.c.bf16 %v59, %v58
    %v193 = vpack.c.bf16 %v61, %v60
    %v194 = vpack.c.bf16 %v122, %v121
    %v195 = vpack.c.bf16 %v124, %v123
    %v196 = vpack.c.bf16 %v171, %v170
    %v197 = vpack.c.bf16 %v173, %v172
    %v198 = vpack.c.bf16 %v127, %v126
    %v199 = vpack.c.bf16 %v129, %v128
    %v200 = vpack.c.bf16 %v187, %v186
    %v201 = vpack.c.bf16 %v189, %v188
    %203 = vset.pattern.permute.xlu0 0
    %204 = vperm.xlu0 %203, %v39
    %v205 = vpop.permute.xlu0 %204
    %208 = vset.pattern.permute.xlu0 0
    %209 = vperm.xlu0 %208, %v40
    %v210 = vpop.permute.xlu0 %209
    %213 = vset.pattern.permute.xlu0 0
    %214 = vperm.xlu0 %213, %v41
    %v215 = vpop.permute.xlu0 %214
    %218 = vset.pattern.permute.xlu0 0
    %219 = vperm.xlu0 %218, %v42
    %v220 = vpop.permute.xlu0 %219
    %223 = vset.pattern.permute.xlu0 0
    %224 = vperm.xlu0 %223, %v43
    %v225 = vpop.permute.xlu0 %224
    %228 = vset.pattern.permute.xlu0 0
    %229 = vperm.xlu0 %228, %v44
    %v230 = vpop.permute.xlu0 %229
    %233 = vset.pattern.permute.xlu0 0
    %234 = vperm.xlu0 %233, %v45
    %v235 = vpop.permute.xlu0 %234
    %238 = vset.pattern.permute.xlu0 0
    %239 = vperm.xlu0 %238, %v46
    %v240 = vpop.permute.xlu0 %239
    %v250 = vunpack.c.l.b16 %v31
    %v251 = vunpack.c.h.b16 %v31
    %v252 = vunpack.c.l.b16 %v32
    %v253 = vunpack.c.h.b16 %v32
    %v254 = vunpack.c.l.b16 %v33
    %v255 = vunpack.c.h.b16 %v33
    %v256 = vunpack.c.l.b16 %v34
    %v257 = vunpack.c.h.b16 %v34
    %v258 = vunpack.c.l.b16 %v35
    %v259 = vunpack.c.h.b16 %v35
    %v260 = vunpack.c.l.b16 %v36
    %v261 = vunpack.c.h.b16 %v36
    %v262 = vunpack.c.l.b16 %v37
    %v263 = vunpack.c.h.b16 %v37
    %v264 = vunpack.c.l.b16 %v38
    %v265 = vunpack.c.h.b16 %v38
    %v266 = vpack.c.b16 %v252, %v250
    %v267 = vpack.c.b16 %v253, %v251
    %v268 = vpack.c.b16 %v256, %v254
    %v269 = vpack.c.b16 %v257, %v255
    %v270 = vpack.c.b16 %v260, %v258
    %v271 = vpack.c.b16 %v261, %v259
    %v272 = vpack.c.b16 %v264, %v262
    %v273 = vpack.c.b16 %v265, %v263
    %vm278 = vcmask 523264
    %v280 = vsel %vm278, %v267, 0
    %v283 = vsel %vm278, %v269, 0
    %v286 = vsel %vm278, %v271, 0
    %v289 = vsel %vm278, %v273, 0
    %291 = vmatprep.subr.bf16.mxu0 0
    %292 = vmatpush1.bf16.msra.mxu0 %v190
    %293 = vmatprep.subr.bf16.mxu0 0
    %294 = vmatpush1.bf16.msra.mxu0 %v191
    %295 = vmatprep.subr.bf16.mxu0 0
    %296 = vmatpush1.bf16.msra.mxu0 %v192
    %297 = vmatprep.subr.bf16.mxu0 0
    %298 = vmatpush1.bf16.msra.mxu0 %v193
    %299 = vmatprep.subr.bf16.mxu0 0
    %300 = vmatpush1.bf16.msra.mxu0 %v194
    %301 = vmatprep.subr.bf16.mxu0 0
    %302 = vmatpush1.bf16.msra.mxu0 %v195
    %303 = vmatprep.subr.bf16.mxu0 0
    %304 = vmatpush1.bf16.msra.mxu0 %v196
    %305 = vmatprep.subr.bf16.mxu0 0
    %306 = vmatpush1.bf16.msra.mxu0 %v197
    %307 = vmatprep.subr.bf16.mxu0 0
    %308 = vmatpush1.bf16.msra.mxu0 %v198
    %309 = vmatprep.subr.bf16.mxu0 0
    %310 = vmatpush1.bf16.msra.mxu0 %v199
    %311 = vmatprep.subr.bf16.mxu0 0
    %312 = vmatpush1.bf16.msra.mxu0 %v200
    %313 = vmatprep.subr.bf16.mxu0 0
    %314 = vmatpush1.bf16.msra.mxu0 %v201
    %315 = vmatprep.subr.bf16.mxu0 0
    %316 = vmatpush1.bf16.msra.mxu0 0
    %317 = vmatprep.subr.bf16.mxu0 0
    %318 = vmatpush1.bf16.msra.mxu0 0
    %319 = vmatprep.subr.bf16.mxu0 0
    %320 = vmatpush1.bf16.msra.mxu0 0
    %321 = vmatprep.subr.bf16.mxu0 0
    %322 = vmatpush1.bf16.msra.mxu0 0
    %323 = vmatprep.mubr.bf16.mxu0 %v280
    %324 = vmatmul.mubr.bf16.gmra.mrb[0].mxu0 %v266
    %v325 = vpop.f32.mrb[0].mxu0
    %v326 = vadd.f32 %v205, %v325
    %v327 = vpop.f32.mrb[0].mxu0
    %v328 = vpop.f32.mrb[0].mxu0
    %v329 = vadd.f32 %v210, %v328
    %v330 = vpop.f32.mrb[0].mxu0
    %331 = vmatprep.mubr.bf16.mxu0 %v283
    %332 = vmatmul.mubr.bf16.gmra.mrb[0].mxu0 %v268
    %v333 = vpop.f32.mrb[0].mxu0
    %v334 = vadd.f32 %v215, %v333
    %v335 = vpop.f32.mrb[0].mxu0
    %v336 = vpop.f32.mrb[0].mxu0
    %v337 = vadd.f32 %v220, %v336
    %v338 = vpop.f32.mrb[0].mxu0
    %339 = vmatprep.mubr.bf16.mxu0 %v286
    %340 = vmatmul.mubr.bf16.gmra.mrb[0].mxu0 %v270
    %v341 = vpop.f32.mrb[0].mxu0
    %v342 = vadd.f32 %v225, %v341
    %v343 = vpop.f32.mrb[0].mxu0
    %v344 = vpop.f32.mrb[0].mxu0
    %v345 = vadd.f32 %v230, %v344
    %v346 = vpop.f32.mrb[0].mxu0
    %347 = vmatprep.mubr.bf16.mxu0 %v289
    %348 = vmatmul.mubr.bf16.gmra.mrb[0].mxu0 %v272
    %v349 = vpop.f32.mrb[0].mxu0
    %v350 = vadd.f32 %v235, %v349
    %v351 = vpop.f32.mrb[0].mxu0
    %v352 = vpop.f32.mrb[0].mxu0
    %v353 = vadd.f32 %v240, %v352
    %v354 = vpop.f32.mrb[0].mxu0
    %355 = vdwg.mxu0
    %v356 = vpack.c.bf16 %v329, %v326
    %v357 = vpack.c.bf16 %v337, %v334
    %v358 = vpack.c.bf16 %v345, %v342
    %v359 = vpack.c.bf16 %v353, %v350
    %v361 = vlaneseq
    %v362 = vshrl.u32 %v361, 7
    %v363 = vsub.s32 0, %v362
    %v364 = vrot.slane %v55, %v363
    %v370 = vunpack.c.l.b16 %v47
    %v371 = vunpack.c.l.b16 %v48
    %v372 = vunpack.c.l.b16 %v49
    %v373 = vunpack.c.l.b16 %v50
    %v374 = vpack.c.b16 %v371, %v370
    %v375 = vpack.c.b16 %v373, %v372
    %vm378 = vcmask 261120
    %v380 = vsel %vm378, %v356, 0
    %v383 = vsel %vm378, %v357, 0
    %v386 = vsel %vm378, %v358, 0
    %v389 = vsel %vm378, %v359, 0
    %391 = vmatprep.subr.bf16.mxu0 0
    %392 = vmatpush1.bf16.msra.mxu0 %v374
    %393 = vmatprep.subr.bf16.mxu0 0
    %394 = vmatpush1.bf16.msra.mxu0 %v375
    %395 = vmatprep.subr.bf16.mxu0 0
    %396 = vmatpush1.bf16.msra.mxu0 0
    %397 = vmatprep.subr.bf16.mxu0 0
    %398 = vmatpush1.bf16.msra.mxu0 0
    %399 = vmatprep.subr.bf16.mxu0 0
    %400 = vmatpush1.bf16.msra.mxu0 0
    %401 = vmatprep.subr.bf16.mxu0 0
    %402 = vmatpush1.bf16.msra.mxu0 0
    %403 = vmatprep.subr.bf16.mxu0 0
    %404 = vmatpush1.bf16.msra.mxu0 0
    %405 = vmatprep.subr.bf16.mxu0 0
    %406 = vmatpush1.bf16.msra.mxu0 0
    %407 = vmatprep.subr.bf16.mxu0 0
    %408 = vmatpush1.bf16.msra.mxu0 0
    %409 = vmatprep.subr.bf16.mxu0 0
    %410 = vmatpush1.bf16.msra.mxu0 0
    %411 = vmatprep.subr.bf16.mxu0 0
    %412 = vmatpush1.bf16.msra.mxu0 0
    %413 = vmatprep.subr.bf16.mxu0 0
    %414 = vmatpush1.bf16.msra.mxu0 0
    %415 = vmatprep.subr.bf16.mxu0 0
    %416 = vmatpush1.bf16.msra.mxu0 0
    %417 = vmatprep.subr.bf16.mxu0 0
    %418 = vmatpush1.bf16.msra.mxu0 0
    %419 = vmatprep.subr.bf16.mxu0 0
    %420 = vmatpush1.bf16.msra.mxu0 0
    %421 = vmatprep.subr.bf16.mxu0 0
    %422 = vmatpush1.bf16.msra.mxu0 0
    %423 = vmatprep.mubr.bf16.mxu0 0
    %424 = vmatmul.mubr.bf16.gmra.mrb[0].mxu0 %v380
    %v425 = vpop.f32.mrb[0].mxu0
    %v426 = vadd.f32 %v364, %v425
    %v427 = vpop.f32.mrb[0].mxu0
    %v428 = vpop.f32.mrb[0].mxu0
    %v429 = vadd.f32 %v364, %v428
    %v430 = vpop.f32.mrb[0].mxu0
    %431 = vmatprep.mubr.bf16.mxu0 0
    %432 = vmatmul.mubr.bf16.gmra.mrb[0].mxu0 %v383
    %v433 = vpop.f32.mrb[0].mxu0
    %v434 = vadd.f32 %v364, %v433
    %v435 = vpop.f32.mrb[0].mxu0
    %v436 = vpop.f32.mrb[0].mxu0
    %v437 = vadd.f32 %v364, %v436
    %v438 = vpop.f32.mrb[0].mxu0
    %439 = vmatprep.mubr.bf16.mxu0 0
    %440 = vmatmul.mubr.bf16.gmra.mrb[0].mxu0 %v386
    %v441 = vpop.f32.mrb[0].mxu0
    %v442 = vadd.f32 %v364, %v441
    %v443 = vpop.f32.mrb[0].mxu0
    %v444 = vpop.f32.mrb[0].mxu0
    %v445 = vadd.f32 %v364, %v444
    %v446 = vpop.f32.mrb[0].mxu0
    %447 = vmatprep.mubr.bf16.mxu0 0
    %448 = vmatmul.mubr.bf16.gmra.mrb[0].mxu0 %v389
    %v449 = vpop.f32.mrb[0].mxu0
    %v450 = vadd.f32 %v364, %v449
    %v451 = vpop.f32.mrb[0].mxu0
    %v452 = vpop.f32.mrb[0].mxu0
    %v453 = vadd.f32 %v364, %v452
    %v454 = vpop.f32.mrb[0].mxu0
    %455 = vdwg.mxu0
    %v456 = vlaneseq
    %v457 = vshrl.u32 %v456, 7
    %v458 = vadd.s32 %v457, 8
    %v459 = vadd.s32 %v457, 16
    %v460 = vadd.s32 %v457, 24
    %v465 = vunpack.c.l.b16 %v51
    %v466 = vunpack.c.l.b16 %v52
    %v467 = vunpack.c.l.b16 %v53
    %v468 = vunpack.c.l.b16 %v54
    %v469 = vpack.c.b16 %v466, %v465
    %v470 = vpack.c.b16 %v468, %v467
    %v474 = vsel %vm378, 0, 0
    %476 = vmatprep.subr.bf16.mxu0 0
    %477 = vmatpush1.bf16.msra.mxu0 %v469
    %478 = vmatprep.subr.bf16.mxu0 0
    %479 = vmatpush1.bf16.msra.mxu0 %v470
    %480 = vmatprep.subr.bf16.mxu0 0
    %481 = vmatpush1.bf16.msra.mxu0 0
    %482 = vmatprep.subr.bf16.mxu0 0
    %483 = vmatpush1.bf16.msra.mxu0 0
    %484 = vmatprep.subr.bf16.mxu0 0
    %485 = vmatpush1.bf16.msra.mxu0 0
    %486 = vmatprep.subr.bf16.mxu0 0
    %487 = vmatpush1.bf16.msra.mxu0 0
    %488 = vmatprep.subr.bf16.mxu0 0
    %489 = vmatpush1.bf16.msra.mxu0 0
    %490 = vmatprep.subr.bf16.mxu0 0
    %491 = vmatpush1.bf16.msra.mxu0 0
    %492 = vmatprep.subr.bf16.mxu0 0
    %493 = vmatpush1.bf16.msra.mxu0 0
    %494 = vmatprep.subr.bf16.mxu0 0
    %495 = vmatpush1.bf16.msra.mxu0 0
    %496 = vmatprep.subr.bf16.mxu0 0
    %497 = vmatpush1.bf16.msra.mxu0 0
    %498 = vmatprep.subr.bf16.mxu0 0
    %499 = vmatpush1.bf16.msra.mxu0 0
    %500 = vmatprep.subr.bf16.mxu0 0
    %501 = vmatpush1.bf16.msra.mxu0 0
    %502 = vmatprep.subr.bf16.mxu0 0
    %503 = vmatpush1.bf16.msra.mxu0 0
    %504 = vmatprep.subr.bf16.mxu0 0
    %505 = vmatpush1.bf16.msra.mxu0 0
    %506 = vmatprep.subr.bf16.mxu0 0
    %507 = vmatpush1.bf16.msra.mxu0 0
    %508 = vmatprep.mubr.bf16.mxu0 0
    %509 = vmatmul.mubr.bf16.gmra.mrb[0].mxu0 %v474
    %v510 = vpop.f32.mrb[0].mxu0
    %v511 = vadd.f32 0.0, %v510
    %v512 = vpop.f32.mrb[0].mxu0
    %v513 = vpop.f32.mrb[0].mxu0
    %v514 = vpop.f32.mrb[0].mxu0
    %515 = vdwg.mxu0
    %v516 = vadd.f32 %v426, %v511
    %v517 = vxor.u32 %v516, 2147483648
    %v518 = vmul.f32 %v517, 1.442695
    %v519 = vpow.pop %v518
    %v520 = vadd.f32 %v519, 1.0
    %v521 = vrcp.pop %v520
    %v522 = vmul.f32 1.0, %v521
    %v523 = vtanh.pop %v516
    %v524 = vmul.f32 %v522, 0.0
    %526 = vrot.lane.b32.xlu0 %v523, 64
    %v527 = vpop.permute.xlu0 %526
    %v529 = vmul.f32 %v522, %v527
    %531 = vrot.lane.b32.xlu0 %v529, 32
    %v532 = vpop.permute.xlu0 %531
    %v534 = vadd.f32 %v524, %v532
    %v535 = vtanh.pop %v534
    %537 = vrot.lane.b32.xlu0 %v535, 64
    %v538 = vpop.permute.xlu0 %537
    %v540 = vmul.f32 %v522, %v538
    %vm541 = vcmp.eq.s32.totalorder %v457, 0
    %vm542 = vcmp.eq.s32.totalorder %v458, 0
    %vm543 = vcmp.eq.s32.totalorder %v459, 0
    %vm544 = vcmp.eq.s32.totalorder %v460, 0
    %v547 = vunpack.c.l.s4 1966171168
    %v548 = vunpack.c.0.s8 %v547
    %v549 = vlaneseq
    %v550 = vshrl.u32 %v549, 7
    %v551 = vsub.s32 %v548, %v550
    %v552 = vrot.slane %v540, %v551
    %v553 = vcombine.high %v552, %v552
    %v555 = vunpack.c.l.s4 1966171168
    %v556 = vunpack.c.0.s8 %v555
    %v557 = vlaneseq
    %v558 = vshrl.u32 %v557, 7
    %v559 = vsub.s32 %v556, %v558
    %v560 = vrot.slane %v552, %v559
    %v562 = vunpack.c.l.s4 1966171168
    %v563 = vunpack.c.0.s8 %v562
    %v564 = vlaneseq
    %v565 = vshrl.u32 %v564, 7
    %v566 = vsub.s32 %v563, %v565
    %v567 = vrot.slane %v553, %v566
    %v568 = vsel %vm541, 1, 0
    %v569 = vsel %vm542, 1, 0
    %v570 = vsel %vm543, 1, 0
    %v571 = vsel %vm544, 1, 0
    %vm572 = vcmp.eq.s32.totalorder %v568, 1
    %vm573 = vcmp.eq.s32.totalorder %v569, 1
    %vm574 = vcmp.eq.s32.totalorder %v570, 1
    %vm575 = vcmp.eq.s32.totalorder %v571, 1
    %v576 = vlaneseq
    %v577 = vshrl.u32 %v576, 7
    %v578 = vsub.s32 0, %v577
    %v579 = vrot.slane %v560, %v578
    %v580 = vlaneseq
    %v581 = vshrl.u32 %v580, 7
    %v582 = vsub.s32 0, %v581
    %v583 = vrot.slane %v567, %v582
    %v586 = vsel %vm572, %v579, 0.0
    %v587 = vsel %vm573, %v579, 0.0
    %v588 = vsel %vm574, %v579, 0.0
    %v589 = vsel %vm575, %v579, 0.0
    %v590 = vsel %vm572, %v583, 0.0
    %v591 = vsel %vm573, %v583, 0.0
    %v592 = vsel %vm574, %v583, 0.0
    %v593 = vsel %vm575, %v583, 0.0
    %v594 = vpack.c.bf16 %v540, %v540
    %596 = vrot.lane.b32.xlu0 %v594, 32
    %v597 = vpop.permute.xlu0 %596
    %v599 = vsel %vm378, %v597, 0
    %601 = vmatprep.subr.bf16.mxu0 0
    %602 = vmatpush1.bf16.msra.mxu0 %v469
    %603 = vmatprep.subr.bf16.mxu0 0
    %604 = vmatpush1.bf16.msra.mxu0 %v470
    %605 = vmatprep.subr.bf16.mxu0 0
    %606 = vmatpush1.bf16.msra.mxu0 0
    %607 = vmatprep.subr.bf16.mxu0 0
    %608 = vmatpush1.bf16.msra.mxu0 0
    %609 = vmatprep.subr.bf16.mxu0 0
    %610 = vmatpush1.bf16.msra.mxu0 0
    %611 = vmatprep.subr.bf16.mxu0 0
    %612 = vmatpush1.bf16.msra.mxu0 0
    %613 = vmatprep.subr.bf16.mxu0 0
    %614 = vmatpush1.bf16.msra.mxu0 0
    %615 = vmatprep.subr.bf16.mxu0 0
    %616 = vmatpush1.bf16.msra.mxu0 0
    %617 = vmatprep.subr.bf16.mxu0 0
    %618 = vmatpush1.bf16.msra.mxu0 0
    %619 = vmatprep.subr.bf16.mxu0 0
    %620 = vmatpush1.bf16.msra.mxu0 0
    %621 = vmatprep.subr.bf16.mxu0 0
    %622 = vmatpush1.bf16.msra.mxu0 0
    %623 = vmatprep.subr.bf16.mxu0 0
    %624 = vmatpush1.bf16.msra.mxu0 0
    %625 = vmatprep.subr.bf16.mxu0 0
    %626 = vmatpush1.bf16.msra.mxu0 0
    %627 = vmatprep.subr.bf16.mxu0 0
    %628 = vmatpush1.bf16.msra.mxu0 0
    %629 = vmatprep.subr.bf16.mxu0 0
    %630 = vmatpush1.bf16.msra.mxu0 0
    %631 = vmatprep.subr.bf16.mxu0 0
    %632 = vmatpush1.bf16.msra.mxu0 0
    %633 = vmatprep.mubr.bf16.mxu0 0
    %634 = vmatmul.mubr.bf16.gmra.mrb[0].mxu0 %v599
    %v635 = vpop.f32.mrb[0].mxu0
    %v636 = vadd.f32 0.0, %v635
    %v637 = vpop.f32.mrb[0].mxu0
    %v638 = vpop.f32.mrb[0].mxu0
    %v639 = vpop.f32.mrb[0].mxu0
    %640 = vdwg.mxu0
    %v642 = vrot.slane %v636, 6
    %v644 = vadd.f32 %v426, %v642
    %v645 = vxor.u32 %v644, 2147483648
    %v646 = vmul.f32 %v645, 1.442695
    %v647 = vpow.pop %v646
    %v648 = vadd.f32 %v647, 1.0
    %v649 = vrcp.pop %v648
    %v650 = vmul.f32 1.0, %v649
    %v651 = vtanh.pop %v644
    %v653 = vrot.slane %v534, 6
    %v655 = vmul.f32 %v650, %v653
    %657 = vrot.lane.b32.xlu0 %v651, 64
    %v658 = vpop.permute.xlu0 %657
    %v660 = vmul.f32 %v650, %v658
    %662 = vrot.lane.b32.xlu0 %v660, 32
    %v663 = vpop.permute.xlu0 %662
    %v665 = vadd.f32 %v655, %v663
    %v666 = vtanh.pop %v665
    %668 = vrot.lane.b32.xlu0 %v666, 64
    %v669 = vpop.permute.xlu0 %668
    %v671 = vmul.f32 %v650, %v669
    %vm672 = vcmp.eq.s32.totalorder %v457, 1
    %vm673 = vcmp.eq.s32.totalorder %v458, 1
    %vm674 = vcmp.eq.s32.totalorder %v459, 1
    %vm675 = vcmp.eq.s32.totalorder %v460, 1
    %v678 = vunpack.c.l.s4 1966171168
    %v679 = vunpack.c.0.s8 %v678
    %v680 = vlaneseq
    %v681 = vshrl.u32 %v680, 7
    %v682 = vsub.s32 %v679, %v681
    %v683 = vrot.slane %v671, %v682
    %v684 = vcombine.high %v683, %v683
    %v686 = vunpack.c.l.s4 1966171168
    %v687 = vunpack.c.0.s8 %v686
    %v688 = vlaneseq
    %v689 = vshrl.u32 %v688, 7
    %v690 = vsub.s32 %v687, %v689
    %v691 = vrot.slane %v683, %v690
    %v693 = vunpack.c.l.s4 1966171168
    %v694 = vunpack.c.0.s8 %v693
    %v695 = vlaneseq
    %v696 = vshrl.u32 %v695, 7
    %v697 = vsub.s32 %v694, %v696
    %v698 = vrot.slane %v684, %v697
    %v699 = vcombine.high %v691, %v691
    %v700 = vcombine.high %v698, %v698
    %v701 = vsel %vm672, 1, 0
    %v702 = vsel %vm673, 1, 0
    %v703 = vsel %vm674, 1, 0
    %v704 = vsel %vm675, 1, 0
    %vm705 = vcmp.eq.s32.totalorder %v701, 1
    %vm706 = vcmp.eq.s32.totalorder %v702, 1
    %vm707 = vcmp.eq.s32.totalorder %v703, 1
    %vm708 = vcmp.eq.s32.totalorder %v704, 1
    %v709 = vlaneseq
    %v710 = vshrl.u32 %v709, 7
    %v711 = vsub.s32 0, %v710
    %v712 = vrot.slane %v699, %v711
    %v713 = vlaneseq
    %v714 = vshrl.u32 %v713, 7
    %v715 = vsub.s32 0, %v714
    %v716 = vrot.slane %v700, %v715
    %v719 = vsel %vm705, %v712, %v586
    %v720 = vsel %vm706, %v712, %v587
    %v721 = vsel %vm707, %v712, %v588
    %v722 = vsel %vm708, %v712, %v589
    %v723 = vsel %vm705, %v716, %v590
    %v724 = vsel %vm706, %v716, %v591
    %v725 = vsel %vm707, %v716, %v592
    %v726 = vsel %vm708, %v716, %v593
    %v727 = vpack.c.bf16 %v671, %v671
    %v729 = vrot.slane %v727, 1
    %730 = vrot.lane.b32.xlu0 %v729, 32
    %v731 = vpop.permute.xlu0 %730
    %v733 = vsel %vm378, %v731, 0
    %735 = vmatprep.subr.bf16.mxu0 0
    %736 = vmatpush1.bf16.msra.mxu0 %v469
    %737 = vmatprep.subr.bf16.mxu0 0
    %738 = vmatpush1.bf16.msra.mxu0 %v470
    %739 = vmatprep.subr.bf16.mxu0 0
    %740 = vmatpush1.bf16.msra.mxu0 0
    %741 = vmatprep.subr.bf16.mxu0 0
    %742 = vmatpush1.bf16.msra.mxu0 0
    %743 = vmatprep.subr.bf16.mxu0 0
    %744 = vmatpush1.bf16.msra.mxu0 0
    %745 = vmatprep.subr.bf16.mxu0 0
    %746 = vmatpush1.bf16.msra.mxu0 0
    %747 = vmatprep.subr.bf16.mxu0 0
    %748 = vmatpush1.bf16.msra.mxu0 0
    %749 = vmatprep.subr.bf16.mxu0 0
    %750 = vmatpush1.bf16.msra.mxu0 0
    %751 = vmatprep.subr.bf16.mxu0 0
    %752 = vmatpush1.bf16.msra.mxu0 0
    %753 = vmatprep.subr.bf16.mxu0 0
    %754 = vmatpush1.bf16.msra.mxu0 0
    %755 = vmatprep.subr.bf16.mxu0 0
    %756 = vmatpush1.bf16.msra.mxu0 0
    %757 = vmatprep.subr.bf16.mxu0 0
    %758 = vmatpush1.bf16.msra.mxu0 0
    %759 = vmatprep.subr.bf16.mxu0 0
    %760 = vmatpush1.bf16.msra.mxu0 0
    %761 = vmatprep.subr.bf16.mxu0 0
    %762 = vmatpush1.bf16.msra.mxu0 0
    %763 = vmatprep.subr.bf16.mxu0 0
    %764 = vmatpush1.bf16.msra.mxu0 0
    %765 = vmatprep.subr.bf16.mxu0 0
    %766 = vmatpush1.bf16.msra.mxu0 0
    %767 = vmatprep.mubr.bf16.mxu0 0
    %768 = vmatmul.mubr.bf16.gmra.mrb[0].mxu0 %v733
    %v769 = vpop.f32.mrb[0].mxu0
    %v770 = vadd.f32 0.0, %v769
    %v771 = vpop.f32.mrb[0].mxu0
    %v772 = vpop.f32.mrb[0].mxu0
    %v773 = vpop.f32.mrb[0].mxu0
    %774 = vdwg.mxu0
    %v776 = vrot.slane %v770, 4
    %v778 = vadd.f32 %v426, %v776
    %v779 = vxor.u32 %v778, 2147483648
    %v780 = vmul.f32 %v779, 1.442695
    %v781 = vpow.pop %v780
    %v782 = vadd.f32 %v781, 1.0
    %v783 = vrcp.pop %v782
    %v784 = vmul.f32 1.0, %v783
    %v785 = vtanh.pop %v778
    %v787 = vrot.slane %v665, 6
    %v789 = vmul.f32 %v784, %v787
    %791 = vrot.lane.b32.xlu0 %v785, 64
    %v792 = vpop.permute.xlu0 %791
    %v794 = vmul.f32 %v784, %v792
    %796 = vrot.lane.b32.xlu0 %v794, 32
    %v797 = vpop.permute.xlu0 %796
    %v799 = vadd.f32 %v789, %v797
    %v800 = vtanh.pop %v799
    %802 = vrot.lane.b32.xlu0 %v800, 64
    %v803 = vpop.permute.xlu0 %802
    %v805 = vmul.f32 %v784, %v803
    %vm806 = vcmp.eq.s32.totalorder %v457, 2
    %vm807 = vcmp.eq.s32.totalorder %v458, 2
    %vm808 = vcmp.eq.s32.totalorder %v459, 2
    %vm809 = vcmp.eq.s32.totalorder %v460, 2
    %v811 = vcombine.high %v805, %v805
    %v813 = vunpack.c.l.s4 1966171168
    %v814 = vunpack.c.0.s8 %v813
    %v815 = vlaneseq
    %v816 = vshrl.u32 %v815, 7
    %v817 = vsub.s32 %v814, %v816
    %v818 = vrot.slane %v811, %v817
    %v819 = vcombine.high %v818, %v818
    %v821 = vunpack.c.l.s4 1966171168
    %v822 = vunpack.c.0.s8 %v821
    %v823 = vlaneseq
    %v824 = vshrl.u32 %v823, 7
    %v825 = vsub.s32 %v822, %v824
    %v826 = vrot.slane %v818, %v825
    %v828 = vunpack.c.l.s4 1966171168
    %v829 = vunpack.c.0.s8 %v828
    %v830 = vlaneseq
    %v831 = vshrl.u32 %v830, 7
    %v832 = vsub.s32 %v829, %v831
    %v833 = vrot.slane %v819, %v832
    %v834 = vsel %vm806, 1, 0
    %v835 = vsel %vm807, 1, 0
    %v836 = vsel %vm808, 1, 0
    %v837 = vsel %vm809, 1, 0
    %vm838 = vcmp.eq.s32.totalorder %v834, 1
    %vm839 = vcmp.eq.s32.totalorder %v835, 1
    %vm840 = vcmp.eq.s32.totalorder %v836, 1
    %vm841 = vcmp.eq.s32.totalorder %v837, 1
    %v842 = vlaneseq
    %v843 = vshrl.u32 %v842, 7
    %v844 = vsub.s32 0, %v843
    %v845 = vrot.slane %v826, %v844
    %v846 = vlaneseq
    %v847 = vshrl.u32 %v846, 7
    %v848 = vsub.s32 0, %v847
    %v849 = vrot.slane %v833, %v848
    %v852 = vsel %vm838, %v845, %v719
    %v853 = vsel %vm839, %v845, %v720
    %v854 = vsel %vm840, %v845, %v721
    %v855 = vsel %vm841, %v845, %v722
    %v856 = vsel %vm838, %v849, %v723
    %v857 = vsel %vm839, %v849, %v724
    %v858 = vsel %vm840, %v849, %v725
    %v859 = vsel %vm841, %v849, %v726
    %v860 = vpack.c.bf16 %v805, %v805
    %v862 = vrot.slane %v860, 2
    %863 = vrot.lane.b32.xlu0 %v862, 32
    %v864 = vpop.permute.xlu0 %863
    %v866 = vsel %vm378, %v864, 0
    %868 = vmatprep.subr.bf16.mxu0 0
    %869 = vmatpush1.bf16.msra.mxu0 %v469
    %870 = vmatprep.subr.bf16.mxu0 0
    %871 = vmatpush1.bf16.msra.mxu0 %v470
    %872 = vmatprep.subr.bf16.mxu0 0
    %873 = vmatpush1.bf16.msra.mxu0 0
    %874 = vmatprep.subr.bf16.mxu0 0
    %875 = vmatpush1.bf16.msra.mxu0 0
    %876 = vmatprep.subr.bf16.mxu0 0
    %877 = vmatpush1.bf16.msra.mxu0 0
    %878 = vmatprep.subr.bf16.mxu0 0
    %879 = vmatpush1.bf16.msra.mxu0 0
    %880 = vmatprep.subr.bf16.mxu0 0
    %881 = vmatpush1.bf16.msra.mxu0 0
    %882 = vmatprep.subr.bf16.mxu0 0
    %883 = vmatpush1.bf16.msra.mxu0 0
    %884 = vmatprep.subr.bf16.mxu0 0
    %885 = vmatpush1.bf16.msra.mxu0 0
    %886 = vmatprep.subr.bf16.mxu0 0
    %887 = vmatpush1.bf16.msra.mxu0 0
    %888 = vmatprep.subr.bf16.mxu0 0
    %889 = vmatpush1.bf16.msra.mxu0 0
    %890 = vmatprep.subr.bf16.mxu0 0
    %891 = vmatpush1.bf16.msra.mxu0 0
    %892 = vmatprep.subr.bf16.mxu0 0
    %893 = vmatpush1.bf16.msra.mxu0 0
    %894 = vmatprep.subr.bf16.mxu0 0
    %895 = vmatpush1.bf16.msra.mxu0 0
    %896 = vmatprep.subr.bf16.mxu0 0
    %897 = vmatpush1.bf16.msra.mxu0 0
    %898 = vmatprep.subr.bf16.mxu0 0
    %899 = vmatpush1.bf16.msra.mxu0 0
    %900 = vmatprep.mubr.bf16.mxu0 0
    %901 = vmatmul.mubr.bf16.gmra.mrb[0].mxu0 %v866
    %v902 = vpop.f32.mrb[0].mxu0
    %v903 = vadd.f32 0.0, %v902
    %v904 = vpop.f32.mrb[0].mxu0
    %v905 = vpop.f32.mrb[0].mxu0
    %v906 = vpop.f32.mrb[0].mxu0
    %907 = vdwg.mxu0
    %v909 = vrot.slane %v903, 2
    %v911 = vadd.f32 %v426, %v909
    %v912 = vxor.u32 %v911, 2147483648
    %v913 = vmul.f32 %v912, 1.442695
    %v914 = vpow.pop %v913
    %v915 = vadd.f32 %v914, 1.0
    %v916 = vrcp.pop %v915
    %v917 = vmul.f32 1.0, %v916
    %v918 = vtanh.pop %v911
    %v920 = vrot.slane %v799, 6
    %v922 = vmul.f32 %v917, %v920
    %924 = vrot.lane.b32.xlu0 %v918, 64
    %v925 = vpop.permute.xlu0 %924
    %v927 = vmul.f32 %v917, %v925
    %929 = vrot.lane.b32.xlu0 %v927, 32
    %v930 = vpop.permute.xlu0 %929
    %v932 = vadd.f32 %v922, %v930
    %v933 = vtanh.pop %v932
    %935 = vrot.lane.b32.xlu0 %v933, 64
    %v936 = vpop.permute.xlu0 %935
    %v938 = vmul.f32 %v917, %v936
    %vm939 = vcmp.eq.s32.totalorder %v457, 3
    %vm940 = vcmp.eq.s32.totalorder %v458, 3
    %vm941 = vcmp.eq.s32.totalorder %v459, 3
    %vm942 = vcmp.eq.s32.totalorder %v460, 3
    %v944 = vcombine.high %v938, %v938
    %v946 = vunpack.c.l.s4 1966171168
    %v947 = vunpack.c.0.s8 %v946
    %v948 = vlaneseq
    %v949 = vshrl.u32 %v948, 7
    %v950 = vsub.s32 %v947, %v949
    %v951 = vrot.slane %v944, %v950
    %v952 = vcombine.high %v951, %v951
    %v954 = vunpack.c.l.s4 1966171168
    %v955 = vunpack.c.0.s8 %v954
    %v956 = vlaneseq
    %v957 = vshrl.u32 %v956, 7
    %v958 = vsub.s32 %v955, %v957
    %v959 = vrot.slane %v951, %v958
    %v961 = vunpack.c.l.s4 1966171168
    %v962 = vunpack.c.0.s8 %v961
    %v963 = vlaneseq
    %v964 = vshrl.u32 %v963, 7
    %v965 = vsub.s32 %v962, %v964
    %v966 = vrot.slane %v952, %v965
    %v967 = vcombine.high %v959, %v959
    %v968 = vcombine.high %v966, %v966
    %v969 = vsel %vm939, 1, 0
    %v970 = vsel %vm940, 1, 0
    %v971 = vsel %vm941, 1, 0
    %v972 = vsel %vm942, 1, 0
    %vm973 = vcmp.eq.s32.totalorder %v969, 1
    %vm974 = vcmp.eq.s32.totalorder %v970, 1
    %vm975 = vcmp.eq.s32.totalorder %v971, 1
    %vm976 = vcmp.eq.s32.totalorder %v972, 1
    %v977 = vlaneseq
    %v978 = vshrl.u32 %v977, 7
    %v979 = vsub.s32 0, %v978
    %v980 = vrot.slane %v967, %v979
    %v981 = vlaneseq
    %v982 = vshrl.u32 %v981, 7
    %v983 = vsub.s32 0, %v982
    %v984 = vrot.slane %v968, %v983
    %v987 = vsel %vm973, %v980, %v852
    %v988 = vsel %vm974, %v980, %v853
    %v989 = vsel %vm975, %v980, %v854
    %v990 = vsel %vm976, %v980, %v855
    %v991 = vsel %vm973, %v984, %v856
    %v992 = vsel %vm974, %v984, %v857
    %v993 = vsel %vm975, %v984, %v858
    %v994 = vsel %vm976, %v984, %v859
    %v995 = vpack.c.bf16 %v938, %v938
    %v997 = vrot.slane %v995, 3
    %998 = vrot.lane.b32.xlu0 %v997, 32
    %v999 = vpop.permute.xlu0 %998
    %v1001 = vsel %vm378, %v999, 0
    %1003 = vmatprep.subr.bf16.mxu0 0
    %1004 = vmatpush1.bf16.msra.mxu0 %v469
    %1005 = vmatprep.subr.bf16.mxu0 0
    %1006 = vmatpush1.bf16.msra.mxu0 %v470
    %1007 = vmatprep.subr.bf16.mxu0 0
    %1008 = vmatpush1.bf16.msra.mxu0 0
    %1009 = vmatprep.subr.bf16.mxu0 0
    %1010 = vmatpush1.bf16.msra.mxu0 0
    %1011 = vmatprep.subr.bf16.mxu0 0
    %1012 = vmatpush1.bf16.msra.mxu0 0
    %1013 = vmatprep.subr.bf16.mxu0 0
    %1014 = vmatpush1.bf16.msra.mxu0 0
    %1015 = vmatprep.subr.bf16.mxu0 0
    %1016 = vmatpush1.bf16.msra.mxu0 0
    %1017 = vmatprep.subr.bf16.mxu0 0
    %1018 = vmatpush1.bf16.msra.mxu0 0
    %1019 = vmatprep.subr.bf16.mxu0 0
    %1020 = vmatpush1.bf16.msra.mxu0 0
    %1021 = vmatprep.subr.bf16.mxu0 0
    %1022 = vmatpush1.bf16.msra.mxu0 0
    %1023 = vmatprep.subr.bf16.mxu0 0
    %1024 = vmatpush1.bf16.msra.mxu0 0
    %1025 = vmatprep.subr.bf16.mxu0 0
    %1026 = vmatpush1.bf16.msra.mxu0 0
    %1027 = vmatprep.subr.bf16.mxu0 0
    %1028 = vmatpush1.bf16.msra.mxu0 0
    %1029 = vmatprep.subr.bf16.mxu0 0
    %1030 = vmatpush1.bf16.msra.mxu0 0
    %1031 = vmatprep.subr.bf16.mxu0 0
    %1032 = vmatpush1.bf16.msra.mxu0 0
    %1033 = vmatprep.subr.bf16.mxu0 0
    %1034 = vmatpush1.bf16.msra.mxu0 0
    %1035 = vmatprep.mubr.bf16.mxu0 0
    %1036 = vmatmul.mubr.bf16.gmra.mrb[0].mxu0 %v1001
    %v1037 = vpop.f32.mrb[0].mxu0
    %v1038 = vadd.f32 0.0, %v1037
    %v1039 = vpop.f32.mrb[0].mxu0
    %v1040 = vpop.f32.mrb[0].mxu0
    %v1041 = vpop.f32.mrb[0].mxu0
    %1042 = vdwg.mxu0
    %v1043 = vadd.f32 %v429, %v1038
    %v1044 = vxor.u32 %v1043, 2147483648
    %v1045 = vmul.f32 %v1044, 1.442695
    %v1046 = vpow.pop %v1045
    %v1047 = vadd.f32 %v1046, 1.0
    %v1048 = vrcp.pop %v1047
    %v1049 = vmul.f32 1.0, %v1048
    %v1050 = vtanh.pop %v1043
    %v1052 = vrot.slane %v932, 6
    %v1054 = vmul.f32 %v1049, %v1052
    %1056 = vrot.lane.b32.xlu0 %v1050, 64
    %v1057 = vpop.permute.xlu0 %1056
    %v1059 = vmul.f32 %v1049, %v1057
    %1061 = vrot.lane.b32.xlu0 %v1059, 32
    %v1062 = vpop.permute.xlu0 %1061
    %v1064 = vadd.f32 %v1054, %v1062
    %v1065 = vtanh.pop %v1064
    %1067 = vrot.lane.b32.xlu0 %v1065, 64
    %v1068 = vpop.permute.xlu0 %1067
    %v1070 = vmul.f32 %v1049, %v1068
    %vm1071 = vcmp.eq.s32.totalorder %v457, 4
    %vm1072 = vcmp.eq.s32.totalorder %v458, 4
    %vm1073 = vcmp.eq.s32.totalorder %v459, 4
    %vm1074 = vcmp.eq.s32.totalorder %v460, 4
    %v1077 = vunpack.c.l.s4 1966171168
    %v1078 = vunpack.c.0.s8 %v1077
    %v1079 = vlaneseq
    %v1080 = vshrl.u32 %v1079, 7
    %v1081 = vsub.s32 %v1078, %v1080
    %v1082 = vrot.slane %v1070, %v1081
    %v1083 = vcombine.high %v1082, %v1082
    %v1085 = vunpack.c.l.s4 1966171168
    %v1086 = vunpack.c.0.s8 %v1085
    %v1087 = vlaneseq
    %v1088 = vshrl.u32 %v1087, 7
    %v1089 = vsub.s32 %v1086, %v1088
    %v1090 = vrot.slane %v1082, %v1089
    %v1092 = vunpack.c.l.s4 1966171168
    %v1093 = vunpack.c.0.s8 %v1092
    %v1094 = vlaneseq
    %v1095 = vshrl.u32 %v1094, 7
    %v1096 = vsub.s32 %v1093, %v1095
    %v1097 = vrot.slane %v1083, %v1096
    %v1098 = vsel %vm1071, 1, 0
    %v1099 = vsel %vm1072, 1, 0
    %v1100 = vsel %vm1073, 1, 0
    %v1101 = vsel %vm1074, 1, 0
    %vm1102 = vcmp.eq.s32.totalorder %v1098, 1
    %vm1103 = vcmp.eq.s32.totalorder %v1099, 1
    %vm1104 = vcmp.eq.s32.totalorder %v1100, 1
    %vm1105 = vcmp.eq.s32.totalorder %v1101, 1
    %v1106 = vlaneseq
    %v1107 = vshrl.u32 %v1106, 7
    %v1108 = vsub.s32 0, %v1107
    %v1109 = vrot.slane %v1090, %v1108
    %v1110 = vlaneseq
    %v1111 = vshrl.u32 %v1110, 7
    %v1112 = vsub.s32 0, %v1111
    %v1113 = vrot.slane %v1097, %v1112
    %v1116 = vsel %vm1102, %v1109, %v987
    %v1117 = vsel %vm1103, %v1109, %v988
    %v1118 = vsel %vm1104, %v1109, %v989
    %v1119 = vsel %vm1105, %v1109, %v990
    %v1120 = vsel %vm1102, %v1113, %v991
    %v1121 = vsel %vm1103, %v1113, %v992
    %v1122 = vsel %vm1104, %v1113, %v993
    %v1123 = vsel %vm1105, %v1113, %v994
    %v1124 = vpack.c.bf16 %v1070, %v1070
    %1126 = vrot.lane.b32.xlu0 %v1124, 32
    %v1127 = vpop.permute.xlu0 %1126
    %v1129 = vsel %vm378, %v1127, 0
    %1131 = vmatprep.subr.bf16.mxu0 0
    %1132 = vmatpush1.bf16.msra.mxu0 %v469
    %1133 = vmatprep.subr.bf16.mxu0 0
    %1134 = vmatpush1.bf16.msra.mxu0 %v470
    %1135 = vmatprep.subr.bf16.mxu0 0
    %1136 = vmatpush1.bf16.msra.mxu0 0
    %1137 = vmatprep.subr.bf16.mxu0 0
    %1138 = vmatpush1.bf16.msra.mxu0 0
    %1139 = vmatprep.subr.bf16.mxu0 0
    %1140 = vmatpush1.bf16.msra.mxu0 0
    %1141 = vmatprep.subr.bf16.mxu0 0
    %1142 = vmatpush1.bf16.msra.mxu0 0
    %1143 = vmatprep.subr.bf16.mxu0 0
    %1144 = vmatpush1.bf16.msra.mxu0 0
    %1145 = vmatprep.subr.bf16.mxu0 0
    %1146 = vmatpush1.bf16.msra.mxu0 0
    %1147 = vmatprep.subr.bf16.mxu0 0
    %1148 = vmatpush1.bf16.msra.mxu0 0
    %1149 = vmatprep.subr.bf16.mxu0 0
    %1150 = vmatpush1.bf16.msra.mxu0 0
    %1151 = vmatprep.subr.bf16.mxu0 0
    %1152 = vmatpush1.bf16.msra.mxu0 0
    %1153 = vmatprep.subr.bf16.mxu0 0
    %1154 = vmatpush1.bf16.msra.mxu0 0
    %1155 = vmatprep.subr.bf16.mxu0 0
    %1156 = vmatpush1.bf16.msra.mxu0 0
    %1157 = vmatprep.subr.bf16.mxu0 0
    %1158 = vmatpush1.bf16.msra.mxu0 0
    %1159 = vmatprep.subr.bf16.mxu0 0
    %1160 = vmatpush1.bf16.msra.mxu0 0
    %1161 = vmatprep.subr.bf16.mxu0 0
    %1162 = vmatpush1.bf16.msra.mxu0 0
    %1163 = vmatprep.mubr.bf16.mxu0 0
    %1164 = vmatmul.mubr.bf16.gmra.mrb[0].mxu0 %v1129
    %v1165 = vpop.f32.mrb[0].mxu0
    %v1166 = vadd.f32 0.0, %v1165
    %v1167 = vpop.f32.mrb[0].mxu0
    %v1168 = vpop.f32.mrb[0].mxu0
    %v1169 = vpop.f32.mrb[0].mxu0
    %1170 = vdwg.mxu0
    %v1172 = vrot.slane %v1166, 6
    %v1174 = vadd.f32 %v429, %v1172
    %v1175 = vxor.u32 %v1174, 2147483648
    %v1176 = vmul.f32 %v1175, 1.442695
    %v1177 = vpow.pop %v1176
    %v1178 = vadd.f32 %v1177, 1.0
    %v1179 = vrcp.pop %v1178
    %v1180 = vmul.f32 1.0, %v1179
    %v1181 = vtanh.pop %v1174
    %v1183 = vrot.slane %v1064, 6
    %v1185 = vmul.f32 %v1180, %v1183
    %1187 = vrot.lane.b32.xlu0 %v1181, 64
    %v1188 = vpop.permute.xlu0 %1187
    %v1190 = vmul.f32 %v1180, %v1188
    %1192 = vrot.lane.b32.xlu0 %v1190, 32
    %v1193 = vpop.permute.xlu0 %1192
    %v1195 = vadd.f32 %v1185, %v1193
    %v1196 = vtanh.pop %v1195
    %1198 = vrot.lane.b32.xlu0 %v1196, 64
    %v1199 = vpop.permute.xlu0 %1198
    %v1201 = vmul.f32 %v1180, %v1199
    %vm1202 = vcmp.eq.s32.totalorder %v457, 5
    %vm1203 = vcmp.eq.s32.totalorder %v458, 5
    %vm1204 = vcmp.eq.s32.totalorder %v459, 5
    %vm1205 = vcmp.eq.s32.totalorder %v460, 5
    %v1208 = vunpack.c.l.s4 1966171168
    %v1209 = vunpack.c.0.s8 %v1208
    %v1210 = vlaneseq
    %v1211 = vshrl.u32 %v1210, 7
    %v1212 = vsub.s32 %v1209, %v1211
    %v1213 = vrot.slane %v1201, %v1212
    %v1214 = vcombine.high %v1213, %v1213
    %v1216 = vunpack.c.l.s4 1966171168
    %v1217 = vunpack.c.0.s8 %v1216
    %v1218 = vlaneseq
    %v1219 = vshrl.u32 %v1218, 7
    %v1220 = vsub.s32 %v1217, %v1219
    %v1221 = vrot.slane %v1213, %v1220
    %v1223 = vunpack.c.l.s4 1966171168
    %v1224 = vunpack.c.0.s8 %v1223
    %v1225 = vlaneseq
    %v1226 = vshrl.u32 %v1225, 7
    %v1227 = vsub.s32 %v1224, %v1226
    %v1228 = vrot.slane %v1214, %v1227
    %v1229 = vcombine.high %v1221, %v1221
    %v1230 = vcombine.high %v1228, %v1228
    %v1231 = vsel %vm1202, 1, 0
    %v1232 = vsel %vm1203, 1, 0
    %v1233 = vsel %vm1204, 1, 0
    %v1234 = vsel %vm1205, 1, 0
    %vm1235 = vcmp.eq.s32.totalorder %v1231, 1
    %vm1236 = vcmp.eq.s32.totalorder %v1232, 1
    %vm1237 = vcmp.eq.s32.totalorder %v1233, 1
    %vm1238 = vcmp.eq.s32.totalorder %v1234, 1
    %v1239 = vlaneseq
    %v1240 = vshrl.u32 %v1239, 7
    %v1241 = vsub.s32 0, %v1240
    %v1242 = vrot.slane %v1229, %v1241
    %v1243 = vlaneseq
    %v1244 = vshrl.u32 %v1243, 7
    %v1245 = vsub.s32 0, %v1244
    %v1246 = vrot.slane %v1230, %v1245
    %v1249 = vsel %vm1235, %v1242, %v1116
    %v1250 = vsel %vm1236, %v1242, %v1117
    %v1251 = vsel %vm1237, %v1242, %v1118
    %v1252 = vsel %vm1238, %v1242, %v1119
    %v1253 = vsel %vm1235, %v1246, %v1120
    %v1254 = vsel %vm1236, %v1246, %v1121
    %v1255 = vsel %vm1237, %v1246, %v1122
    %v1256 = vsel %vm1238, %v1246, %v1123
    %v1257 = vpack.c.bf16 %v1201, %v1201
    %v1259 = vrot.slane %v1257, 1
    %1260 = vrot.lane.b32.xlu0 %v1259, 32
    %v1261 = vpop.permute.xlu0 %1260
    %v1263 = vsel %vm378, %v1261, 0
    %1265 = vmatprep.subr.bf16.mxu0 0
    %1266 = vmatpush1.bf16.msra.mxu0 %v469
    %1267 = vmatprep.subr.bf16.mxu0 0
    %1268 = vmatpush1.bf16.msra.mxu0 %v470
    %1269 = vmatprep.subr.bf16.mxu0 0
    %1270 = vmatpush1.bf16.msra.mxu0 0
    %1271 = vmatprep.subr.bf16.mxu0 0
    %1272 = vmatpush1.bf16.msra.mxu0 0
    %1273 = vmatprep.subr.bf16.mxu0 0
    %1274 = vmatpush1.bf16.msra.mxu0 0
    %1275 = vmatprep.subr.bf16.mxu0 0
    %1276 = vmatpush1.bf16.msra.mxu0 0
    %1277 = vmatprep.subr.bf16.mxu0 0
    %1278 = vmatpush1.bf16.msra.mxu0 0
    %1279 = vmatprep.subr.bf16.mxu0 0
    %1280 = vmatpush1.bf16.msra.mxu0 0
    %1281 = vmatprep.subr.bf16.mxu0 0
    %1282 = vmatpush1.bf16.msra.mxu0 0
    %1283 = vmatprep.subr.bf16.mxu0 0
    %1284 = vmatpush1.bf16.msra.mxu0 0
    %1285 = vmatprep.subr.bf16.mxu0 0
    %1286 = vmatpush1.bf16.msra.mxu0 0
    %1287 = vmatprep.subr.bf16.mxu0 0
    %1288 = vmatpush1.bf16.msra.mxu0 0
    %1289 = vmatprep.subr.bf16.mxu0 0
    %1290 = vmatpush1.bf16.msra.mxu0 0
    %1291 = vmatprep.subr.bf16.mxu0 0
    %1292 = vmatpush1.bf16.msra.mxu0 0
    %1293 = vmatprep.subr.bf16.mxu0 0
    %1294 = vmatpush1.bf16.msra.mxu0 0
    %1295 = vmatprep.subr.bf16.mxu0 0
    %1296 = vmatpush1.bf16.msra.mxu0 0
    %1297 = vmatprep.mubr.bf16.mxu0 0
    %1298 = vmatmul.mubr.bf16.gmra.mrb[0].mxu0 %v1263
    %v1299 = vpop.f32.mrb[0].mxu0
    %v1300 = vadd.f32 0.0, %v1299
    %v1301 = vpop.f32.mrb[0].mxu0
    %v1302 = vpop.f32.mrb[0].mxu0
    %v1303 = vpop.f32.mrb[0].mxu0
    %1304 = vdwg.mxu0
    %v1306 = vrot.slane %v1300, 4
    %v1308 = vadd.f32 %v429, %v1306
    %v1309 = vxor.u32 %v1308, 2147483648
    %v1310 = vmul.f32 %v1309, 1.442695
    %v1311 = vpow.pop %v1310
    %v1312 = vadd.f32 %v1311, 1.0
    %v1313 = vrcp.pop %v1312
    %v1314 = vmul.f32 1.0, %v1313
    %v1315 = vtanh.pop %v1308
    %v1317 = vrot.slane %v1195, 6
    %v1319 = vmul.f32 %v1314, %v1317
    %1321 = vrot.lane.b32.xlu0 %v1315, 64
    %v1322 = vpop.permute.xlu0 %1321
    %v1324 = vmul.f32 %v1314, %v1322
    %1326 = vrot.lane.b32.xlu0 %v1324, 32
    %v1327 = vpop.permute.xlu0 %1326
    %v1329 = vadd.f32 %v1319, %v1327
    %v1330 = vtanh.pop %v1329
    %1332 = vrot.lane.b32.xlu0 %v1330, 64
    %v1333 = vpop.permute.xlu0 %1332
    %v1335 = vmul.f32 %v1314, %v1333
    %vm1336 = vcmp.eq.s32.totalorder %v457, 6
    %vm1337 = vcmp.eq.s32.totalorder %v458, 6
    %vm1338 = vcmp.eq.s32.totalorder %v459, 6
    %vm1339 = vcmp.eq.s32.totalorder %v460, 6
    %v1341 = vcombine.high %v1335, %v1335
    %v1343 = vunpack.c.l.s4 1966171168
    %v1344 = vunpack.c.0.s8 %v1343
    %v1345 = vlaneseq
    %v1346 = vshrl.u32 %v1345, 7
    %v1347 = vsub.s32 %v1344, %v1346
    %v1348 = vrot.slane %v1341, %v1347
    %v1349 = vcombine.high %v1348, %v1348
    %v1351 = vunpack.c.l.s4 1966171168
    %v1352 = vunpack.c.0.s8 %v1351
    %v1353 = vlaneseq
    %v1354 = vshrl.u32 %v1353, 7
    %v1355 = vsub.s32 %v1352, %v1354
    %v1356 = vrot.slane %v1348, %v1355
    %v1358 = vunpack.c.l.s4 1966171168
    %v1359 = vunpack.c.0.s8 %v1358
    %v1360 = vlaneseq
    %v1361 = vshrl.u32 %v1360, 7
    %v1362 = vsub.s32 %v1359, %v1361
    %v1363 = vrot.slane %v1349, %v1362
    %v1364 = vsel %vm1336, 1, 0
    %v1365 = vsel %vm1337, 1, 0
    %v1366 = vsel %vm1338, 1, 0
    %v1367 = vsel %vm1339, 1, 0
    %vm1368 = vcmp.eq.s32.totalorder %v1364, 1
    %vm1369 = vcmp.eq.s32.totalorder %v1365, 1
    %vm1370 = vcmp.eq.s32.totalorder %v1366, 1
    %vm1371 = vcmp.eq.s32.totalorder %v1367, 1
    %v1372 = vlaneseq
    %v1373 = vshrl.u32 %v1372, 7
    %v1374 = vsub.s32 0, %v1373
    %v1375 = vrot.slane %v1356, %v1374
    %v1376 = vlaneseq
    %v1377 = vshrl.u32 %v1376, 7
    %v1378 = vsub.s32 0, %v1377
    %v1379 = vrot.slane %v1363, %v1378
    %v1382 = vsel %vm1368, %v1375, %v1249
    %v1383 = vsel %vm1369, %v1375, %v1250
    %v1384 = vsel %vm1370, %v1375, %v1251
    %v1385 = vsel %vm1371, %v1375, %v1252
    %v1386 = vsel %vm1368, %v1379, %v1253
    %v1387 = vsel %vm1369, %v1379, %v1254
    %v1388 = vsel %vm1370, %v1379, %v1255
    %v1389 = vsel %vm1371, %v1379, %v1256
    %v1390 = vpack.c.bf16 %v1335, %v1335
    %v1392 = vrot.slane %v1390, 2
    %1393 = vrot.lane.b32.xlu0 %v1392, 32
    %v1394 = vpop.permute.xlu0 %1393
    %v1396 = vsel %vm378, %v1394, 0
    %1398 = vmatprep.subr.bf16.mxu0 0
    %1399 = vmatpush1.bf16.msra.mxu0 %v469
    %1400 = vmatprep.subr.bf16.mxu0 0
    %1401 = vmatpush1.bf16.msra.mxu0 %v470
    %1402 = vmatprep.subr.bf16.mxu0 0
    %1403 = vmatpush1.bf16.msra.mxu0 0
    %1404 = vmatprep.subr.bf16.mxu0 0
    %1405 = vmatpush1.bf16.msra.mxu0 0
    %1406 = vmatprep.subr.bf16.mxu0 0
    %1407 = vmatpush1.bf16.msra.mxu0 0
    %1408 = vmatprep.subr.bf16.mxu0 0
    %1409 = vmatpush1.bf16.msra.mxu0 0
    %1410 = vmatprep.subr.bf16.mxu0 0
    %1411 = vmatpush1.bf16.msra.mxu0 0
    %1412 = vmatprep.subr.bf16.mxu0 0
    %1413 = vmatpush1.bf16.msra.mxu0 0
    %1414 = vmatprep.subr.bf16.mxu0 0
    %1415 = vmatpush1.bf16.msra.mxu0 0
    %1416 = vmatprep.subr.bf16.mxu0 0
    %1417 = vmatpush1.bf16.msra.mxu0 0
    %1418 = vmatprep.subr.bf16.mxu0 0
    %1419 = vmatpush1.bf16.msra.mxu0 0
    %1420 = vmatprep.subr.bf16.mxu0 0
    %1421 = vmatpush1.bf16.msra.mxu0 0
    %1422 = vmatprep.subr.bf16.mxu0 0
    %1423 = vmatpush1.bf16.msra.mxu0 0
    %1424 = vmatprep.subr.bf16.mxu0 0
    %1425 = vmatpush1.bf16.msra.mxu0 0
    %1426 = vmatprep.subr.bf16.mxu0 0
    %1427 = vmatpush1.bf16.msra.mxu0 0
    %1428 = vmatprep.subr.bf16.mxu0 0
    %1429 = vmatpush1.bf16.msra.mxu0 0
    %1430 = vmatprep.mubr.bf16.mxu0 0
    %1431 = vmatmul.mubr.bf16.gmra.mrb[0].mxu0 %v1396
    %v1432 = vpop.f32.mrb[0].mxu0
    %v1433 = vadd.f32 0.0, %v1432
    %v1434 = vpop.f32.mrb[0].mxu0
    %v1435 = vpop.f32.mrb[0].mxu0
    %v1436 = vpop.f32.mrb[0].mxu0
    %1437 = vdwg.mxu0
    %v1439 = vrot.slane %v1433, 2
    %v1441 = vadd.f32 %v429, %v1439
    %v1442 = vxor.u32 %v1441, 2147483648
    %v1443 = vmul.f32 %v1442, 1.442695
    %v1444 = vpow.pop %v1443
    %v1445 = vadd.f32 %v1444, 1.0
    %v1446 = vrcp.pop %v1445
    %v1447 = vmul.f32 1.0, %v1446
    %v1448 = vtanh.pop %v1441
    %v1450 = vrot.slane %v1329, 6
    %v1452 = vmul.f32 %v1447, %v1450
    %1454 = vrot.lane.b32.xlu0 %v1448, 64
    %v1455 = vpop.permute.xlu0 %1454
    %v1457 = vmul.f32 %v1447, %v1455
    %1459 = vrot.lane.b32.xlu0 %v1457, 32
    %v1460 = vpop.permute.xlu0 %1459
    %v1462 = vadd.f32 %v1452, %v1460
    %v1463 = vtanh.pop %v1462
    %1465 = vrot.lane.b32.xlu0 %v1463, 64
    %v1466 = vpop.permute.xlu0 %1465
    %v1468 = vmul.f32 %v1447, %v1466
    %vm1469 = vcmp.eq.s32.totalorder %v457, 7
    %vm1470 = vcmp.eq.s32.totalorder %v458, 7
    %vm1471 = vcmp.eq.s32.totalorder %v459, 7
    %vm1472 = vcmp.eq.s32.totalorder %v460, 7
    %v1474 = vcombine.high %v1468, %v1468
    %v1476 = vunpack.c.l.s4 1966171168
    %v1477 = vunpack.c.0.s8 %v1476
    %v1478 = vlaneseq
    %v1479 = vshrl.u32 %v1478, 7
    %v1480 = vsub.s32 %v1477, %v1479
    %v1481 = vrot.slane %v1474, %v1480
    %v1482 = vcombine.high %v1481, %v1481
    %v1484 = vunpack.c.l.s4 1966171168
    %v1485 = vunpack.c.0.s8 %v1484
    %v1486 = vlaneseq
    %v1487 = vshrl.u32 %v1486, 7
    %v1488 = vsub.s32 %v1485, %v1487
    %v1489 = vrot.slane %v1481, %v1488
    %v1491 = vunpack.c.l.s4 1966171168
    %v1492 = vunpack.c.0.s8 %v1491
    %v1493 = vlaneseq
    %v1494 = vshrl.u32 %v1493, 7
    %v1495 = vsub.s32 %v1492, %v1494
    %v1496 = vrot.slane %v1482, %v1495
    %v1497 = vcombine.high %v1489, %v1489
    %v1498 = vcombine.high %v1496, %v1496
    %v1499 = vsel %vm1469, 1, 0
    %v1500 = vsel %vm1470, 1, 0
    %v1501 = vsel %vm1471, 1, 0
    %v1502 = vsel %vm1472, 1, 0
    %vm1503 = vcmp.eq.s32.totalorder %v1499, 1
    %vm1504 = vcmp.eq.s32.totalorder %v1500, 1
    %vm1505 = vcmp.eq.s32.totalorder %v1501, 1
    %vm1506 = vcmp.eq.s32.totalorder %v1502, 1
    %v1507 = vlaneseq
    %v1508 = vshrl.u32 %v1507, 7
    %v1509 = vsub.s32 0, %v1508
    %v1510 = vrot.slane %v1497, %v1509
    %v1511 = vlaneseq
    %v1512 = vshrl.u32 %v1511, 7
    %v1513 = vsub.s32 0, %v1512
    %v1514 = vrot.slane %v1498, %v1513
    %v1517 = vsel %vm1503, %v1510, %v1382
    %v1518 = vsel %vm1504, %v1510, %v1383
    %v1519 = vsel %vm1505, %v1510, %v1384
    %v1520 = vsel %vm1506, %v1510, %v1385
    %v1521 = vsel %vm1503, %v1514, %v1386
    %v1522 = vsel %vm1504, %v1514, %v1387
    %v1523 = vsel %vm1505, %v1514, %v1388
    %v1524 = vsel %vm1506, %v1514, %v1389
    %v1525 = vpack.c.bf16 %v1468, %v1468
    %v1527 = vrot.slane %v1525, 3
    %1528 = vrot.lane.b32.xlu0 %v1527, 32
    %v1529 = vpop.permute.xlu0 %1528
    %v1531 = vsel %vm378, %v1529, 0
    %1533 = vmatprep.subr.bf16.mxu0 0
    %1534 = vmatpush1.bf16.msra.mxu0 %v469
    %1535 = vmatprep.subr.bf16.mxu0 0
    %1536 = vmatpush1.bf16.msra.mxu0 %v470
    %1537 = vmatprep.subr.bf16.mxu0 0
    %1538 = vmatpush1.bf16.msra.mxu0 0
    %1539 = vmatprep.subr.bf16.mxu0 0
    %1540 = vmatpush1.bf16.msra.mxu0 0
    %1541 = vmatprep.subr.bf16.mxu0 0
    %1542 = vmatpush1.bf16.msra.mxu0 0
    %1543 = vmatprep.subr.bf16.mxu0 0
    %1544 = vmatpush1.bf16.msra.mxu0 0
    %1545 = vmatprep.subr.bf16.mxu0 0
    %1546 = vmatpush1.bf16.msra.mxu0 0
    %1547 = vmatprep.subr.bf16.mxu0 0
    %1548 = vmatpush1.bf16.msra.mxu0 0
    %1549 = vmatprep.subr.bf16.mxu0 0
    %1550 = vmatpush1.bf16.msra.mxu0 0
    %1551 = vmatprep.subr.bf16.mxu0 0
    %1552 = vmatpush1.bf16.msra.mxu0 0
    %1553 = vmatprep.subr.bf16.mxu0 0
    %1554 = vmatpush1.bf16.msra.mxu0 0
    %1555 = vmatprep.subr.bf16.mxu0 0
    %1556 = vmatpush1.bf16.msra.mxu0 0
    %1557 = vmatprep.subr.bf16.mxu0 0
    %1558 = vmatpush1.bf16.msra.mxu0 0
    %1559 = vmatprep.subr.bf16.mxu0 0
    %1560 = vmatpush1.bf16.msra.mxu0 0
    %1561 = vmatprep.subr.bf16.mxu0 0
    %1562 = vmatpush1.bf16.msra.mxu0 0
    %1563 = vmatprep.subr.bf16.mxu0 0
    %1564 = vmatpush1.bf16.msra.mxu0 0
    %1565 = vmatprep.mubr.bf16.mxu0 0
    %1566 = vmatmul.mubr.bf16.gmra.mrb[0].mxu0 %v1531
    %v1567 = vpop.f32.mrb[0].mxu0
    %v1568 = vadd.f32 0.0, %v1567
    %v1569 = vpop.f32.mrb[0].mxu0
    %v1570 = vpop.f32.mrb[0].mxu0
    %v1571 = vpop.f32.mrb[0].mxu0
    %1572 = vdwg.mxu0
    %v1573 = vadd.f32 %v434, %v1568
    %v1574 = vxor.u32 %v1573, 2147483648
    %v1575 = vmul.f32 %v1574, 1.442695
    %v1576 = vpow.pop %v1575
    %v1577 = vadd.f32 %v1576, 1.0
    %v1578 = vrcp.pop %v1577
    %v1579 = vmul.f32 1.0, %v1578
    %v1580 = vtanh.pop %v1573
    %v1582 = vrot.slane %v1462, 6
    %v1584 = vmul.f32 %v1579, %v1582
    %1586 = vrot.lane.b32.xlu0 %v1580, 64
    %v1587 = vpop.permute.xlu0 %1586
    %v1589 = vmul.f32 %v1579, %v1587
    %1591 = vrot.lane.b32.xlu0 %v1589, 32
    %v1592 = vpop.permute.xlu0 %1591
    %v1594 = vadd.f32 %v1584, %v1592
    %v1595 = vtanh.pop %v1594
    %1597 = vrot.lane.b32.xlu0 %v1595, 64
    %v1598 = vpop.permute.xlu0 %1597
    %v1600 = vmul.f32 %v1579, %v1598
    %vm1601 = vcmp.eq.s32.totalorder %v457, 8
    %vm1602 = vcmp.eq.s32.totalorder %v458, 8
    %vm1603 = vcmp.eq.s32.totalorder %v459, 8
    %vm1604 = vcmp.eq.s32.totalorder %v460, 8
    %v1607 = vunpack.c.l.s4 1966171168
    %v1608 = vunpack.c.0.s8 %v1607
    %v1609 = vlaneseq
    %v1610 = vshrl.u32 %v1609, 7
    %v1611 = vsub.s32 %v1608, %v1610
    %v1612 = vrot.slane %v1600, %v1611
    %v1613 = vcombine.high %v1612, %v1612
    %v1615 = vunpack.c.l.s4 1966171168
    %v1616 = vunpack.c.0.s8 %v1615
    %v1617 = vlaneseq
    %v1618 = vshrl.u32 %v1617, 7
    %v1619 = vsub.s32 %v1616, %v1618
    %v1620 = vrot.slane %v1612, %v1619
    %v1622 = vunpack.c.l.s4 1966171168
    %v1623 = vunpack.c.0.s8 %v1622
    %v1624 = vlaneseq
    %v1625 = vshrl.u32 %v1624, 7
    %v1626 = vsub.s32 %v1623, %v1625
    %v1627 = vrot.slane %v1613, %v1626
    %v1628 = vsel %vm1601, 1, 0
    %v1629 = vsel %vm1602, 1, 0
    %v1630 = vsel %vm1603, 1, 0
    %v1631 = vsel %vm1604, 1, 0
    %vm1632 = vcmp.eq.s32.totalorder %v1628, 1
    %vm1633 = vcmp.eq.s32.totalorder %v1629, 1
    %vm1634 = vcmp.eq.s32.totalorder %v1630, 1
    %vm1635 = vcmp.eq.s32.totalorder %v1631, 1
    %v1636 = vlaneseq
    %v1637 = vshrl.u32 %v1636, 7
    %v1638 = vsub.s32 0, %v1637
    %v1639 = vrot.slane %v1620, %v1638
    %v1640 = vlaneseq
    %v1641 = vshrl.u32 %v1640, 7
    %v1642 = vsub.s32 0, %v1641
    %v1643 = vrot.slane %v1627, %v1642
    %v1646 = vsel %vm1632, %v1639, %v1517
    %v1647 = vsel %vm1633, %v1639, %v1518
    %v1648 = vsel %vm1634, %v1639, %v1519
    %v1649 = vsel %vm1635, %v1639, %v1520
    %v1650 = vsel %vm1632, %v1643, %v1521
    %v1651 = vsel %vm1633, %v1643, %v1522
    %v1652 = vsel %vm1634, %v1643, %v1523
    %v1653 = vsel %vm1635, %v1643, %v1524
    %v1654 = vpack.c.bf16 %v1600, %v1600
    %1656 = vrot.lane.b32.xlu0 %v1654, 32
    %v1657 = vpop.permute.xlu0 %1656
    %v1659 = vsel %vm378, %v1657, 0
    %1661 = vmatprep.subr.bf16.mxu0 0
    %1662 = vmatpush1.bf16.msra.mxu0 %v469
    %1663 = vmatprep.subr.bf16.mxu0 0
    %1664 = vmatpush1.bf16.msra.mxu0 %v470
    %1665 = vmatprep.subr.bf16.mxu0 0
    %1666 = vmatpush1.bf16.msra.mxu0 0
    %1667 = vmatprep.subr.bf16.mxu0 0
    %1668 = vmatpush1.bf16.msra.mxu0 0
    %1669 = vmatprep.subr.bf16.mxu0 0
    %1670 = vmatpush1.bf16.msra.mxu0 0
    %1671 = vmatprep.subr.bf16.mxu0 0
    %1672 = vmatpush1.bf16.msra.mxu0 0
    %1673 = vmatprep.subr.bf16.mxu0 0
    %1674 = vmatpush1.bf16.msra.mxu0 0
    %1675 = vmatprep.subr.bf16.mxu0 0
    %1676 = vmatpush1.bf16.msra.mxu0 0
    %1677 = vmatprep.subr.bf16.mxu0 0
    %1678 = vmatpush1.bf16.msra.mxu0 0
    %1679 = vmatprep.subr.bf16.mxu0 0
    %1680 = vmatpush1.bf16.msra.mxu0 0
    %1681 = vmatprep.subr.bf16.mxu0 0
    %1682 = vmatpush1.bf16.msra.mxu0 0
    %1683 = vmatprep.subr.bf16.mxu0 0
    %1684 = vmatpush1.bf16.msra.mxu0 0
    %1685 = vmatprep.subr.bf16.mxu0 0
    %1686 = vmatpush1.bf16.msra.mxu0 0
    %1687 = vmatprep.subr.bf16.mxu0 0
    %1688 = vmatpush1.bf16.msra.mxu0 0
    %1689 = vmatprep.subr.bf16.mxu0 0
    %1690 = vmatpush1.bf16.msra.mxu0 0
    %1691 = vmatprep.subr.bf16.mxu0 0
    %1692 = vmatpush1.bf16.msra.mxu0 0
    %1693 = vmatprep.mubr.bf16.mxu0 0
    %1694 = vmatmul.mubr.bf16.gmra.mrb[0].mxu0 %v1659
    %v1695 = vpop.f32.mrb[0].mxu0
    %v1696 = vadd.f32 0.0, %v1695
    %v1697 = vpop.f32.mrb[0].mxu0
    %v1698 = vpop.f32.mrb[0].mxu0
    %v1699 = vpop.f32.mrb[0].mxu0
    %1700 = vdwg.mxu0
    %v1702 = vrot.slane %v1696, 6
    %v1704 = vadd.f32 %v434, %v1702
    %v1705 = vxor.u32 %v1704, 2147483648
    %v1706 = vmul.f32 %v1705, 1.442695
    %v1707 = vpow.pop %v1706
    %v1708 = vadd.f32 %v1707, 1.0
    %v1709 = vrcp.pop %v1708
    %v1710 = vmul.f32 1.0, %v1709
    %v1711 = vtanh.pop %v1704
    %v1713 = vrot.slane %v1594, 6
    %v1715 = vmul.f32 %v1710, %v1713
    %1717 = vrot.lane.b32.xlu0 %v1711, 64
    %v1718 = vpop.permute.xlu0 %1717
    %v1720 = vmul.f32 %v1710, %v1718
    %1722 = vrot.lane.b32.xlu0 %v1720, 32
    %v1723 = vpop.permute.xlu0 %1722
    %v1725 = vadd.f32 %v1715, %v1723
    %v1726 = vtanh.pop %v1725
    %1728 = vrot.lane.b32.xlu0 %v1726, 64
    %v1729 = vpop.permute.xlu0 %1728
    %v1731 = vmul.f32 %v1710, %v1729
    %vm1732 = vcmp.eq.s32.totalorder %v457, 9
    %vm1733 = vcmp.eq.s32.totalorder %v458, 9
    %vm1734 = vcmp.eq.s32.totalorder %v459, 9
    %vm1735 = vcmp.eq.s32.totalorder %v460, 9
    %v1738 = vunpack.c.l.s4 1966171168
    %v1739 = vunpack.c.0.s8 %v1738
    %v1740 = vlaneseq
    %v1741 = vshrl.u32 %v1740, 7
    %v1742 = vsub.s32 %v1739, %v1741
    %v1743 = vrot.slane %v1731, %v1742
    %v1744 = vcombine.high %v1743, %v1743
    %v1746 = vunpack.c.l.s4 1966171168
    %v1747 = vunpack.c.0.s8 %v1746
    %v1748 = vlaneseq
    %v1749 = vshrl.u32 %v1748, 7
    %v1750 = vsub.s32 %v1747, %v1749
    %v1751 = vrot.slane %v1743, %v1750
    %v1753 = vunpack.c.l.s4 1966171168
    %v1754 = vunpack.c.0.s8 %v1753
    %v1755 = vlaneseq
    %v1756 = vshrl.u32 %v1755, 7
    %v1757 = vsub.s32 %v1754, %v1756
    %v1758 = vrot.slane %v1744, %v1757
    %v1759 = vcombine.high %v1751, %v1751
    %v1760 = vcombine.high %v1758, %v1758
    %v1761 = vsel %vm1732, 1, 0
    %v1762 = vsel %vm1733, 1, 0
    %v1763 = vsel %vm1734, 1, 0
    %v1764 = vsel %vm1735, 1, 0
    %vm1765 = vcmp.eq.s32.totalorder %v1761, 1
    %vm1766 = vcmp.eq.s32.totalorder %v1762, 1
    %vm1767 = vcmp.eq.s32.totalorder %v1763, 1
    %vm1768 = vcmp.eq.s32.totalorder %v1764, 1
    %v1769 = vlaneseq
    %v1770 = vshrl.u32 %v1769, 7
    %v1771 = vsub.s32 0, %v1770
    %v1772 = vrot.slane %v1759, %v1771
    %v1773 = vlaneseq
    %v1774 = vshrl.u32 %v1773, 7
    %v1775 = vsub.s32 0, %v1774
    %v1776 = vrot.slane %v1760, %v1775
    %v1779 = vsel %vm1765, %v1772, %v1646
    %v1780 = vsel %vm1766, %v1772, %v1647
    %v1781 = vsel %vm1767, %v1772, %v1648
    %v1782 = vsel %vm1768, %v1772, %v1649
    %v1783 = vsel %vm1765, %v1776, %v1650
    %v1784 = vsel %vm1766, %v1776, %v1651
    %v1785 = vsel %vm1767, %v1776, %v1652
    %v1786 = vsel %vm1768, %v1776, %v1653
    %v1787 = vpack.c.bf16 %v1731, %v1731
    %v1789 = vrot.slane %v1787, 1
    %1790 = vrot.lane.b32.xlu0 %v1789, 32
    %v1791 = vpop.permute.xlu0 %1790
    %v1793 = vsel %vm378, %v1791, 0
    %1795 = vmatprep.subr.bf16.mxu0 0
    %1796 = vmatpush1.bf16.msra.mxu0 %v469
    %1797 = vmatprep.subr.bf16.mxu0 0
    %1798 = vmatpush1.bf16.msra.mxu0 %v470
    %1799 = vmatprep.subr.bf16.mxu0 0
    %1800 = vmatpush1.bf16.msra.mxu0 0
    %1801 = vmatprep.subr.bf16.mxu0 0
    %1802 = vmatpush1.bf16.msra.mxu0 0
    %1803 = vmatprep.subr.bf16.mxu0 0
    %1804 = vmatpush1.bf16.msra.mxu0 0
    %1805 = vmatprep.subr.bf16.mxu0 0
    %1806 = vmatpush1.bf16.msra.mxu0 0
    %1807 = vmatprep.subr.bf16.mxu0 0
    %1808 = vmatpush1.bf16.msra.mxu0 0
    %1809 = vmatprep.subr.bf16.mxu0 0
    %1810 = vmatpush1.bf16.msra.mxu0 0
    %1811 = vmatprep.subr.bf16.mxu0 0
    %1812 = vmatpush1.bf16.msra.mxu0 0
    %1813 = vmatprep.subr.bf16.mxu0 0
    %1814 = vmatpush1.bf16.msra.mxu0 0
    %1815 = vmatprep.subr.bf16.mxu0 0
    %1816 = vmatpush1.bf16.msra.mxu0 0
    %1817 = vmatprep.subr.bf16.mxu0 0
    %1818 = vmatpush1.bf16.msra.mxu0 0
    %1819 = vmatprep.subr.bf16.mxu0 0
    %1820 = vmatpush1.bf16.msra.mxu0 0
    %1821 = vmatprep.subr.bf16.mxu0 0
    %1822 = vmatpush1.bf16.msra.mxu0 0
    %1823 = vmatprep.subr.bf16.mxu0 0
    %1824 = vmatpush1.bf16.msra.mxu0 0
    %1825 = vmatprep.subr.bf16.mxu0 0
    %1826 = vmatpush1.bf16.msra.mxu0 0
    %1827 = vmatprep.mubr.bf16.mxu0 0
    %1828 = vmatmul.mubr.bf16.gmra.mrb[0].mxu0 %v1793
    %v1829 = vpop.f32.mrb[0].mxu0
    %v1830 = vadd.f32 0.0, %v1829
    %v1831 = vpop.f32.mrb[0].mxu0
    %v1832 = vpop.f32.mrb[0].mxu0
    %v1833 = vpop.f32.mrb[0].mxu0
    %1834 = vdwg.mxu0
    %v1836 = vrot.slane %v1830, 4
    %v1838 = vadd.f32 %v434, %v1836
    %v1839 = vxor.u32 %v1838, 2147483648
    %v1840 = vmul.f32 %v1839, 1.442695
    %v1841 = vpow.pop %v1840
    %v1842 = vadd.f32 %v1841, 1.0
    %v1843 = vrcp.pop %v1842
    %v1844 = vmul.f32 1.0, %v1843
    %v1845 = vtanh.pop %v1838
    %v1847 = vrot.slane %v1725, 6
    %v1849 = vmul.f32 %v1844, %v1847
    %1851 = vrot.lane.b32.xlu0 %v1845, 64
    %v1852 = vpop.permute.xlu0 %1851
    %v1854 = vmul.f32 %v1844, %v1852
    %1856 = vrot.lane.b32.xlu0 %v1854, 32
    %v1857 = vpop.permute.xlu0 %1856
    %v1859 = vadd.f32 %v1849, %v1857
    %v1860 = vtanh.pop %v1859
    %1862 = vrot.lane.b32.xlu0 %v1860, 64
    %v1863 = vpop.permute.xlu0 %1862
    %v1865 = vmul.f32 %v1844, %v1863
    %vm1866 = vcmp.eq.s32.totalorder %v457, 10
    %vm1867 = vcmp.eq.s32.totalorder %v458, 10
    %vm1868 = vcmp.eq.s32.totalorder %v459, 10
    %vm1869 = vcmp.eq.s32.totalorder %v460, 10
    %v1871 = vcombine.high %v1865, %v1865
    %v1873 = vunpack.c.l.s4 1966171168
    %v1874 = vunpack.c.0.s8 %v1873
    %v1875 = vlaneseq
    %v1876 = vshrl.u32 %v1875, 7
    %v1877 = vsub.s32 %v1874, %v1876
    %v1878 = vrot.slane %v1871, %v1877
    %v1879 = vcombine.high %v1878, %v1878
    %v1881 = vunpack.c.l.s4 1966171168
    %v1882 = vunpack.c.0.s8 %v1881
    %v1883 = vlaneseq
    %v1884 = vshrl.u32 %v1883, 7
    %v1885 = vsub.s32 %v1882, %v1884
    %v1886 = vrot.slane %v1878, %v1885
    %v1888 = vunpack.c.l.s4 1966171168
    %v1889 = vunpack.c.0.s8 %v1888
    %v1890 = vlaneseq
    %v1891 = vshrl.u32 %v1890, 7
    %v1892 = vsub.s32 %v1889, %v1891
    %v1893 = vrot.slane %v1879, %v1892
    %v1894 = vsel %vm1866, 1, 0
    %v1895 = vsel %vm1867, 1, 0
    %v1896 = vsel %vm1868, 1, 0
    %v1897 = vsel %vm1869, 1, 0
    %vm1898 = vcmp.eq.s32.totalorder %v1894, 1
    %vm1899 = vcmp.eq.s32.totalorder %v1895, 1
    %vm1900 = vcmp.eq.s32.totalorder %v1896, 1
    %vm1901 = vcmp.eq.s32.totalorder %v1897, 1
    %v1902 = vlaneseq
    %v1903 = vshrl.u32 %v1902, 7
    %v1904 = vsub.s32 0, %v1903
    %v1905 = vrot.slane %v1886, %v1904
    %v1906 = vlaneseq
    %v1907 = vshrl.u32 %v1906, 7
    %v1908 = vsub.s32 0, %v1907
    %v1909 = vrot.slane %v1893, %v1908
    %v1912 = vsel %vm1898, %v1905, %v1779
    %v1913 = vsel %vm1899, %v1905, %v1780
    %v1914 = vsel %vm1900, %v1905, %v1781
    %v1915 = vsel %vm1901, %v1905, %v1782
    %v1916 = vsel %vm1898, %v1909, %v1783
    %v1917 = vsel %vm1899, %v1909, %v1784
    %v1918 = vsel %vm1900, %v1909, %v1785
    %v1919 = vsel %vm1901, %v1909, %v1786
    %v1920 = vpack.c.bf16 %v1865, %v1865
    %v1922 = vrot.slane %v1920, 2
    %1923 = vrot.lane.b32.xlu0 %v1922, 32
    %v1924 = vpop.permute.xlu0 %1923
    %v1926 = vsel %vm378, %v1924, 0
    %1928 = vmatprep.subr.bf16.mxu0 0
    %1929 = vmatpush1.bf16.msra.mxu0 %v469
    %1930 = vmatprep.subr.bf16.mxu0 0
    %1931 = vmatpush1.bf16.msra.mxu0 %v470
    %1932 = vmatprep.subr.bf16.mxu0 0
    %1933 = vmatpush1.bf16.msra.mxu0 0
    %1934 = vmatprep.subr.bf16.mxu0 0
    %1935 = vmatpush1.bf16.msra.mxu0 0
    %1936 = vmatprep.subr.bf16.mxu0 0
    %1937 = vmatpush1.bf16.msra.mxu0 0
    %1938 = vmatprep.subr.bf16.mxu0 0
    %1939 = vmatpush1.bf16.msra.mxu0 0
    %1940 = vmatprep.subr.bf16.mxu0 0
    %1941 = vmatpush1.bf16.msra.mxu0 0
    %1942 = vmatprep.subr.bf16.mxu0 0
    %1943 = vmatpush1.bf16.msra.mxu0 0
    %1944 = vmatprep.subr.bf16.mxu0 0
    %1945 = vmatpush1.bf16.msra.mxu0 0
    %1946 = vmatprep.subr.bf16.mxu0 0
    %1947 = vmatpush1.bf16.msra.mxu0 0
    %1948 = vmatprep.subr.bf16.mxu0 0
    %1949 = vmatpush1.bf16.msra.mxu0 0
    %1950 = vmatprep.subr.bf16.mxu0 0
    %1951 = vmatpush1.bf16.msra.mxu0 0
    %1952 = vmatprep.subr.bf16.mxu0 0
    %1953 = vmatpush1.bf16.msra.mxu0 0
    %1954 = vmatprep.subr.bf16.mxu0 0
    %1955 = vmatpush1.bf16.msra.mxu0 0
    %1956 = vmatprep.subr.bf16.mxu0 0
    %1957 = vmatpush1.bf16.msra.mxu0 0
    %1958 = vmatprep.subr.bf16.mxu0 0
    %1959 = vmatpush1.bf16.msra.mxu0 0
    %1960 = vmatprep.mubr.bf16.mxu0 0
    %1961 = vmatmul.mubr.bf16.gmra.mrb[0].mxu0 %v1926
    %v1962 = vpop.f32.mrb[0].mxu0
    %v1963 = vadd.f32 0.0, %v1962
    %v1964 = vpop.f32.mrb[0].mxu0
    %v1965 = vpop.f32.mrb[0].mxu0
    %v1966 = vpop.f32.mrb[0].mxu0
    %1967 = vdwg.mxu0
    %v1969 = vrot.slane %v1963, 2
    %v1971 = vadd.f32 %v434, %v1969
    %v1972 = vxor.u32 %v1971, 2147483648
    %v1973 = vmul.f32 %v1972, 1.442695
    %v1974 = vpow.pop %v1973
    %v1975 = vadd.f32 %v1974, 1.0
    %v1976 = vrcp.pop %v1975
    %v1977 = vmul.f32 1.0, %v1976
    %v1978 = vtanh.pop %v1971
    %v1980 = vrot.slane %v1859, 6
    %v1982 = vmul.f32 %v1977, %v1980
    %1984 = vrot.lane.b32.xlu0 %v1978, 64
    %v1985 = vpop.permute.xlu0 %1984
    %v1987 = vmul.f32 %v1977, %v1985
    %1989 = vrot.lane.b32.xlu0 %v1987, 32
    %v1990 = vpop.permute.xlu0 %1989
    %v1992 = vadd.f32 %v1982, %v1990
    %v1993 = vtanh.pop %v1992
    %1995 = vrot.lane.b32.xlu0 %v1993, 64
    %v1996 = vpop.permute.xlu0 %1995
    %v1998 = vmul.f32 %v1977, %v1996
    %vm1999 = vcmp.eq.s32.totalorder %v457, 11
    %vm2000 = vcmp.eq.s32.totalorder %v458, 11
    %vm2001 = vcmp.eq.s32.totalorder %v459, 11
    %vm2002 = vcmp.eq.s32.totalorder %v460, 11
    %v2004 = vcombine.high %v1998, %v1998
    %v2006 = vunpack.c.l.s4 1966171168
    %v2007 = vunpack.c.0.s8 %v2006
    %v2008 = vlaneseq
    %v2009 = vshrl.u32 %v2008, 7
    %v2010 = vsub.s32 %v2007, %v2009
    %v2011 = vrot.slane %v2004, %v2010
    %v2012 = vcombine.high %v2011, %v2011
    %v2014 = vunpack.c.l.s4 1966171168
    %v2015 = vunpack.c.0.s8 %v2014
    %v2016 = vlaneseq
    %v2017 = vshrl.u32 %v2016, 7
    %v2018 = vsub.s32 %v2015, %v2017
    %v2019 = vrot.slane %v2011, %v2018
    %v2021 = vunpack.c.l.s4 1966171168
    %v2022 = vunpack.c.0.s8 %v2021
    %v2023 = vlaneseq
    %v2024 = vshrl.u32 %v2023, 7
    %v2025 = vsub.s32 %v2022, %v2024
    %v2026 = vrot.slane %v2012, %v2025
    %v2027 = vcombine.high %v2019, %v2019
    %v2028 = vcombine.high %v2026, %v2026
    %v2029 = vsel %vm1999, 1, 0
    %v2030 = vsel %vm2000, 1, 0
    %v2031 = vsel %vm2001, 1, 0
    %v2032 = vsel %vm2002, 1, 0
    %vm2033 = vcmp.eq.s32.totalorder %v2029, 1
    %vm2034 = vcmp.eq.s32.totalorder %v2030, 1
    %vm2035 = vcmp.eq.s32.totalorder %v2031, 1
    %vm2036 = vcmp.eq.s32.totalorder %v2032, 1
    %v2037 = vlaneseq
    %v2038 = vshrl.u32 %v2037, 7
    %v2039 = vsub.s32 0, %v2038
    %v2040 = vrot.slane %v2027, %v2039
    %v2041 = vlaneseq
    %v2042 = vshrl.u32 %v2041, 7
    %v2043 = vsub.s32 0, %v2042
    %v2044 = vrot.slane %v2028, %v2043
    %v2047 = vsel %vm2033, %v2040, %v1912
    %v2048 = vsel %vm2034, %v2040, %v1913
    %v2049 = vsel %vm2035, %v2040, %v1914
    %v2050 = vsel %vm2036, %v2040, %v1915
    %v2051 = vsel %vm2033, %v2044, %v1916
    %v2052 = vsel %vm2034, %v2044, %v1917
    %v2053 = vsel %vm2035, %v2044, %v1918
    %v2054 = vsel %vm2036, %v2044, %v1919
    %v2055 = vpack.c.bf16 %v1998, %v1998
    %v2057 = vrot.slane %v2055, 3
    %2058 = vrot.lane.b32.xlu0 %v2057, 32
    %v2059 = vpop.permute.xlu0 %2058
    %v2061 = vsel %vm378, %v2059, 0
    %2063 = vmatprep.subr.bf16.mxu0 0
    %2064 = vmatpush1.bf16.msra.mxu0 %v469
    %2065 = vmatprep.subr.bf16.mxu0 0
    %2066 = vmatpush1.bf16.msra.mxu0 %v470
    %2067 = vmatprep.subr.bf16.mxu0 0
    %2068 = vmatpush1.bf16.msra.mxu0 0
    %2069 = vmatprep.subr.bf16.mxu0 0
    %2070 = vmatpush1.bf16.msra.mxu0 0
    %2071 = vmatprep.subr.bf16.mxu0 0
    %2072 = vmatpush1.bf16.msra.mxu0 0
    %2073 = vmatprep.subr.bf16.mxu0 0
    %2074 = vmatpush1.bf16.msra.mxu0 0
    %2075 = vmatprep.subr.bf16.mxu0 0
    %2076 = vmatpush1.bf16.msra.mxu0 0
    %2077 = vmatprep.subr.bf16.mxu0 0
    %2078 = vmatpush1.bf16.msra.mxu0 0
    %2079 = vmatprep.subr.bf16.mxu0 0
    %2080 = vmatpush1.bf16.msra.mxu0 0
    %2081 = vmatprep.subr.bf16.mxu0 0
    %2082 = vmatpush1.bf16.msra.mxu0 0
    %2083 = vmatprep.subr.bf16.mxu0 0
    %2084 = vmatpush1.bf16.msra.mxu0 0
    %2085 = vmatprep.subr.bf16.mxu0 0
    %2086 = vmatpush1.bf16.msra.mxu0 0
    %2087 = vmatprep.subr.bf16.mxu0 0
    %2088 = vmatpush1.bf16.msra.mxu0 0
    %2089 = vmatprep.subr.bf16.mxu0 0
    %2090 = vmatpush1.bf16.msra.mxu0 0
    %2091 = vmatprep.subr.bf16.mxu0 0
    %2092 = vmatpush1.bf16.msra.mxu0 0
    %2093 = vmatprep.subr.bf16.mxu0 0
    %2094 = vmatpush1.bf16.msra.mxu0 0
    %2095 = vmatprep.mubr.bf16.mxu0 0
    %2096 = vmatmul.mubr.bf16.gmra.mrb[0].mxu0 %v2061
    %v2097 = vpop.f32.mrb[0].mxu0
    %v2098 = vadd.f32 0.0, %v2097
    %v2099 = vpop.f32.mrb[0].mxu0
    %v2100 = vpop.f32.mrb[0].mxu0
    %v2101 = vpop.f32.mrb[0].mxu0
    %2102 = vdwg.mxu0
    %v2103 = vadd.f32 %v437, %v2098
    %v2104 = vxor.u32 %v2103, 2147483648
    %v2105 = vmul.f32 %v2104, 1.442695
    %v2106 = vpow.pop %v2105
    %v2107 = vadd.f32 %v2106, 1.0
    %v2108 = vrcp.pop %v2107
    %v2109 = vmul.f32 1.0, %v2108
    %v2110 = vtanh.pop %v2103
    %v2112 = vrot.slane %v1992, 6
    %v2114 = vmul.f32 %v2109, %v2112
    %2116 = vrot.lane.b32.xlu0 %v2110, 64
    %v2117 = vpop.permute.xlu0 %2116
    %v2119 = vmul.f32 %v2109, %v2117
    %2121 = vrot.lane.b32.xlu0 %v2119, 32
    %v2122 = vpop.permute.xlu0 %2121
    %v2124 = vadd.f32 %v2114, %v2122
    %v2125 = vtanh.pop %v2124
    %2127 = vrot.lane.b32.xlu0 %v2125, 64
    %v2128 = vpop.permute.xlu0 %2127
    %v2130 = vmul.f32 %v2109, %v2128
    %vm2131 = vcmp.eq.s32.totalorder %v457, 12
    %vm2132 = vcmp.eq.s32.totalorder %v458, 12
    %vm2133 = vcmp.eq.s32.totalorder %v459, 12
    %vm2134 = vcmp.eq.s32.totalorder %v460, 12
    %v2137 = vunpack.c.l.s4 1966171168
    %v2138 = vunpack.c.0.s8 %v2137
    %v2139 = vlaneseq
    %v2140 = vshrl.u32 %v2139, 7
    %v2141 = vsub.s32 %v2138, %v2140
    %v2142 = vrot.slane %v2130, %v2141
    %v2143 = vcombine.high %v2142, %v2142
    %v2145 = vunpack.c.l.s4 1966171168
    %v2146 = vunpack.c.0.s8 %v2145
    %v2147 = vlaneseq
    %v2148 = vshrl.u32 %v2147, 7
    %v2149 = vsub.s32 %v2146, %v2148
    %v2150 = vrot.slane %v2142, %v2149
    %v2152 = vunpack.c.l.s4 1966171168
    %v2153 = vunpack.c.0.s8 %v2152
    %v2154 = vlaneseq
    %v2155 = vshrl.u32 %v2154, 7
    %v2156 = vsub.s32 %v2153, %v2155
    %v2157 = vrot.slane %v2143, %v2156
    %v2158 = vsel %vm2131, 1, 0
    %v2159 = vsel %vm2132, 1, 0
    %v2160 = vsel %vm2133, 1, 0
    %v2161 = vsel %vm2134, 1, 0
    %vm2162 = vcmp.eq.s32.totalorder %v2158, 1
    %vm2163 = vcmp.eq.s32.totalorder %v2159, 1
    %vm2164 = vcmp.eq.s32.totalorder %v2160, 1
    %vm2165 = vcmp.eq.s32.totalorder %v2161, 1
    %v2166 = vlaneseq
    %v2167 = vshrl.u32 %v2166, 7
    %v2168 = vsub.s32 0, %v2167
    %v2169 = vrot.slane %v2150, %v2168
    %v2170 = vlaneseq
    %v2171 = vshrl.u32 %v2170, 7
    %v2172 = vsub.s32 0, %v2171
    %v2173 = vrot.slane %v2157, %v2172
    %v2176 = vsel %vm2162, %v2169, %v2047
    %v2177 = vsel %vm2163, %v2169, %v2048
    %v2178 = vsel %vm2164, %v2169, %v2049
    %v2179 = vsel %vm2165, %v2169, %v2050
    %v2180 = vsel %vm2162, %v2173, %v2051
    %v2181 = vsel %vm2163, %v2173, %v2052
    %v2182 = vsel %vm2164, %v2173, %v2053
    %v2183 = vsel %vm2165, %v2173, %v2054
    %v2184 = vpack.c.bf16 %v2130, %v2130
    %2186 = vrot.lane.b32.xlu0 %v2184, 32
    %v2187 = vpop.permute.xlu0 %2186
    %v2189 = vsel %vm378, %v2187, 0
    %2191 = vmatprep.subr.bf16.mxu0 0
    %2192 = vmatpush1.bf16.msra.mxu0 %v469
    %2193 = vmatprep.subr.bf16.mxu0 0
    %2194 = vmatpush1.bf16.msra.mxu0 %v470
    %2195 = vmatprep.subr.bf16.mxu0 0
    %2196 = vmatpush1.bf16.msra.mxu0 0
    %2197 = vmatprep.subr.bf16.mxu0 0
    %2198 = vmatpush1.bf16.msra.mxu0 0
    %2199 = vmatprep.subr.bf16.mxu0 0
    %2200 = vmatpush1.bf16.msra.mxu0 0
    %2201 = vmatprep.subr.bf16.mxu0 0
    %2202 = vmatpush1.bf16.msra.mxu0 0
    %2203 = vmatprep.subr.bf16.mxu0 0
    %2204 = vmatpush1.bf16.msra.mxu0 0
    %2205 = vmatprep.subr.bf16.mxu0 0
    %2206 = vmatpush1.bf16.msra.mxu0 0
    %2207 = vmatprep.subr.bf16.mxu0 0
    %2208 = vmatpush1.bf16.msra.mxu0 0
    %2209 = vmatprep.subr.bf16.mxu0 0
    %2210 = vmatpush1.bf16.msra.mxu0 0
    %2211 = vmatprep.subr.bf16.mxu0 0
    %2212 = vmatpush1.bf16.msra.mxu0 0
    %2213 = vmatprep.subr.bf16.mxu0 0
    %2214 = vmatpush1.bf16.msra.mxu0 0
    %2215 = vmatprep.subr.bf16.mxu0 0
    %2216 = vmatpush1.bf16.msra.mxu0 0
    %2217 = vmatprep.subr.bf16.mxu0 0
    %2218 = vmatpush1.bf16.msra.mxu0 0
    %2219 = vmatprep.subr.bf16.mxu0 0
    %2220 = vmatpush1.bf16.msra.mxu0 0
    %2221 = vmatprep.subr.bf16.mxu0 0
    %2222 = vmatpush1.bf16.msra.mxu0 0
    %2223 = vmatprep.mubr.bf16.mxu0 0
    %2224 = vmatmul.mubr.bf16.gmra.mrb[0].mxu0 %v2189
    %v2225 = vpop.f32.mrb[0].mxu0
    %v2226 = vadd.f32 0.0, %v2225
    %v2227 = vpop.f32.mrb[0].mxu0
    %v2228 = vpop.f32.mrb[0].mxu0
    %v2229 = vpop.f32.mrb[0].mxu0
    %2230 = vdwg.mxu0
    %v2232 = vrot.slane %v2226, 6
    %v2234 = vadd.f32 %v437, %v2232
    %v2235 = vxor.u32 %v2234, 2147483648
    %v2236 = vmul.f32 %v2235, 1.442695
    %v2237 = vpow.pop %v2236
    %v2238 = vadd.f32 %v2237, 1.0
    %v2239 = vrcp.pop %v2238
    %v2240 = vmul.f32 1.0, %v2239
    %v2241 = vtanh.pop %v2234
    %v2243 = vrot.slane %v2124, 6
    %v2245 = vmul.f32 %v2240, %v2243
    %2247 = vrot.lane.b32.xlu0 %v2241, 64
    %v2248 = vpop.permute.xlu0 %2247
    %v2250 = vmul.f32 %v2240, %v2248
    %2252 = vrot.lane.b32.xlu0 %v2250, 32
    %v2253 = vpop.permute.xlu0 %2252
    %v2255 = vadd.f32 %v2245, %v2253
    %v2256 = vtanh.pop %v2255
    %2258 = vrot.lane.b32.xlu0 %v2256, 64
    %v2259 = vpop.permute.xlu0 %2258
    %v2261 = vmul.f32 %v2240, %v2259
    %vm2262 = vcmp.eq.s32.totalorder %v457, 13
    %vm2263 = vcmp.eq.s32.totalorder %v458, 13
    %vm2264 = vcmp.eq.s32.totalorder %v459, 13
    %vm2265 = vcmp.eq.s32.totalorder %v460, 13
    %v2268 = vunpack.c.l.s4 1966171168
    %v2269 = vunpack.c.0.s8 %v2268
    %v2270 = vlaneseq
    %v2271 = vshrl.u32 %v2270, 7
    %v2272 = vsub.s32 %v2269, %v2271
    %v2273 = vrot.slane %v2261, %v2272
    %v2274 = vcombine.high %v2273, %v2273
    %v2276 = vunpack.c.l.s4 1966171168
    %v2277 = vunpack.c.0.s8 %v2276
    %v2278 = vlaneseq
    %v2279 = vshrl.u32 %v2278, 7
    %v2280 = vsub.s32 %v2277, %v2279
    %v2281 = vrot.slane %v2273, %v2280
    %v2283 = vunpack.c.l.s4 1966171168
    %v2284 = vunpack.c.0.s8 %v2283
    %v2285 = vlaneseq
    %v2286 = vshrl.u32 %v2285, 7
    %v2287 = vsub.s32 %v2284, %v2286
    %v2288 = vrot.slane %v2274, %v2287
    %v2289 = vcombine.high %v2281, %v2281
    %v2290 = vcombine.high %v2288, %v2288
    %v2291 = vsel %vm2262, 1, 0
    %v2292 = vsel %vm2263, 1, 0
    %v2293 = vsel %vm2264, 1, 0
    %v2294 = vsel %vm2265, 1, 0
    %vm2295 = vcmp.eq.s32.totalorder %v2291, 1
    %vm2296 = vcmp.eq.s32.totalorder %v2292, 1
    %vm2297 = vcmp.eq.s32.totalorder %v2293, 1
    %vm2298 = vcmp.eq.s32.totalorder %v2294, 1
    %v2299 = vlaneseq
    %v2300 = vshrl.u32 %v2299, 7
    %v2301 = vsub.s32 0, %v2300
    %v2302 = vrot.slane %v2289, %v2301
    %v2303 = vlaneseq
    %v2304 = vshrl.u32 %v2303, 7
    %v2305 = vsub.s32 0, %v2304
    %v2306 = vrot.slane %v2290, %v2305
    %v2309 = vsel %vm2295, %v2302, %v2176
    %v2310 = vsel %vm2296, %v2302, %v2177
    %v2311 = vsel %vm2297, %v2302, %v2178
    %v2312 = vsel %vm2298, %v2302, %v2179
    %v2313 = vsel %vm2295, %v2306, %v2180
    %v2314 = vsel %vm2296, %v2306, %v2181
    %v2315 = vsel %vm2297, %v2306, %v2182
    %v2316 = vsel %vm2298, %v2306, %v2183
    %v2317 = vpack.c.bf16 %v2261, %v2261
    %v2319 = vrot.slane %v2317, 1
    %2320 = vrot.lane.b32.xlu0 %v2319, 32
    %v2321 = vpop.permute.xlu0 %2320
    %v2323 = vsel %vm378, %v2321, 0
    %2325 = vmatprep.subr.bf16.mxu0 0
    %2326 = vmatpush1.bf16.msra.mxu0 %v469
    %2327 = vmatprep.subr.bf16.mxu0 0
    %2328 = vmatpush1.bf16.msra.mxu0 %v470
    %2329 = vmatprep.subr.bf16.mxu0 0
    %2330 = vmatpush1.bf16.msra.mxu0 0
    %2331 = vmatprep.subr.bf16.mxu0 0
    %2332 = vmatpush1.bf16.msra.mxu0 0
    %2333 = vmatprep.subr.bf16.mxu0 0
    %2334 = vmatpush1.bf16.msra.mxu0 0
    %2335 = vmatprep.subr.bf16.mxu0 0
    %2336 = vmatpush1.bf16.msra.mxu0 0
    %2337 = vmatprep.subr.bf16.mxu0 0
    %2338 = vmatpush1.bf16.msra.mxu0 0
    %2339 = vmatprep.subr.bf16.mxu0 0
    %2340 = vmatpush1.bf16.msra.mxu0 0
    %2341 = vmatprep.subr.bf16.mxu0 0
    %2342 = vmatpush1.bf16.msra.mxu0 0
    %2343 = vmatprep.subr.bf16.mxu0 0
    %2344 = vmatpush1.bf16.msra.mxu0 0
    %2345 = vmatprep.subr.bf16.mxu0 0
    %2346 = vmatpush1.bf16.msra.mxu0 0
    %2347 = vmatprep.subr.bf16.mxu0 0
    %2348 = vmatpush1.bf16.msra.mxu0 0
    %2349 = vmatprep.subr.bf16.mxu0 0
    %2350 = vmatpush1.bf16.msra.mxu0 0
    %2351 = vmatprep.subr.bf16.mxu0 0
    %2352 = vmatpush1.bf16.msra.mxu0 0
    %2353 = vmatprep.subr.bf16.mxu0 0
    %2354 = vmatpush1.bf16.msra.mxu0 0
    %2355 = vmatprep.subr.bf16.mxu0 0
    %2356 = vmatpush1.bf16.msra.mxu0 0
    %2357 = vmatprep.mubr.bf16.mxu0 0
    %2358 = vmatmul.mubr.bf16.gmra.mrb[0].mxu0 %v2323
    %v2359 = vpop.f32.mrb[0].mxu0
    %v2360 = vadd.f32 0.0, %v2359
    %v2361 = vpop.f32.mrb[0].mxu0
    %v2362 = vpop.f32.mrb[0].mxu0
    %v2363 = vpop.f32.mrb[0].mxu0
    %2364 = vdwg.mxu0
    %v2366 = vrot.slane %v2360, 4
    %v2368 = vadd.f32 %v437, %v2366
    %v2369 = vxor.u32 %v2368, 2147483648
    %v2370 = vmul.f32 %v2369, 1.442695
    %v2371 = vpow.pop %v2370
    %v2372 = vadd.f32 %v2371, 1.0
    %v2373 = vrcp.pop %v2372
    %v2374 = vmul.f32 1.0, %v2373
    %v2375 = vtanh.pop %v2368
    %v2377 = vrot.slane %v2255, 6
    %v2379 = vmul.f32 %v2374, %v2377
    %2381 = vrot.lane.b32.xlu0 %v2375, 64
    %v2382 = vpop.permute.xlu0 %2381
    %v2384 = vmul.f32 %v2374, %v2382
    %2386 = vrot.lane.b32.xlu0 %v2384, 32
    %v2387 = vpop.permute.xlu0 %2386
    %v2389 = vadd.f32 %v2379, %v2387
    %v2390 = vtanh.pop %v2389
    %2392 = vrot.lane.b32.xlu0 %v2390, 64
    %v2393 = vpop.permute.xlu0 %2392
    %v2395 = vmul.f32 %v2374, %v2393
    %vm2396 = vcmp.eq.s32.totalorder %v457, 14
    %vm2397 = vcmp.eq.s32.totalorder %v458, 14
    %vm2398 = vcmp.eq.s32.totalorder %v459, 14
    %vm2399 = vcmp.eq.s32.totalorder %v460, 14
    %v2401 = vcombine.high %v2395, %v2395
    %v2403 = vunpack.c.l.s4 1966171168
    %v2404 = vunpack.c.0.s8 %v2403
    %v2405 = vlaneseq
    %v2406 = vshrl.u32 %v2405, 7
    %v2407 = vsub.s32 %v2404, %v2406
    %v2408 = vrot.slane %v2401, %v2407
    %v2409 = vcombine.high %v2408, %v2408
    %v2411 = vunpack.c.l.s4 1966171168
    %v2412 = vunpack.c.0.s8 %v2411
    %v2413 = vlaneseq
    %v2414 = vshrl.u32 %v2413, 7
    %v2415 = vsub.s32 %v2412, %v2414
    %v2416 = vrot.slane %v2408, %v2415
    %v2418 = vunpack.c.l.s4 1966171168
    %v2419 = vunpack.c.0.s8 %v2418
    %v2420 = vlaneseq
    %v2421 = vshrl.u32 %v2420, 7
    %v2422 = vsub.s32 %v2419, %v2421
    %v2423 = vrot.slane %v2409, %v2422
    %v2424 = vsel %vm2396, 1, 0
    %v2425 = vsel %vm2397, 1, 0
    %v2426 = vsel %vm2398, 1, 0
    %v2427 = vsel %vm2399, 1, 0
    %vm2428 = vcmp.eq.s32.totalorder %v2424, 1
    %vm2429 = vcmp.eq.s32.totalorder %v2425, 1
    %vm2430 = vcmp.eq.s32.totalorder %v2426, 1
    %vm2431 = vcmp.eq.s32.totalorder %v2427, 1
    %v2432 = vlaneseq
    %v2433 = vshrl.u32 %v2432, 7
    %v2434 = vsub.s32 0, %v2433
    %v2435 = vrot.slane %v2416, %v2434
    %v2436 = vlaneseq
    %v2437 = vshrl.u32 %v2436, 7
    %v2438 = vsub.s32 0, %v2437
    %v2439 = vrot.slane %v2423, %v2438
    %v2442 = vsel %vm2428, %v2435, %v2309
    %v2443 = vsel %vm2429, %v2435, %v2310
    %v2444 = vsel %vm2430, %v2435, %v2311
    %v2445 = vsel %vm2431, %v2435, %v2312
    %v2446 = vsel %vm2428, %v2439, %v2313
    %v2447 = vsel %vm2429, %v2439, %v2314
    %v2448 = vsel %vm2430, %v2439, %v2315
    %v2449 = vsel %vm2431, %v2439, %v2316
    %v2450 = vpack.c.bf16 %v2395, %v2395
    %v2452 = vrot.slane %v2450, 2
    %2453 = vrot.lane.b32.xlu0 %v2452, 32
    %v2454 = vpop.permute.xlu0 %2453
    %v2456 = vsel %vm378, %v2454, 0
    %2458 = vmatprep.subr.bf16.mxu0 0
    %2459 = vmatpush1.bf16.msra.mxu0 %v469
    %2460 = vmatprep.subr.bf16.mxu0 0
    %2461 = vmatpush1.bf16.msra.mxu0 %v470
    %2462 = vmatprep.subr.bf16.mxu0 0
    %2463 = vmatpush1.bf16.msra.mxu0 0
    %2464 = vmatprep.subr.bf16.mxu0 0
    %2465 = vmatpush1.bf16.msra.mxu0 0
    %2466 = vmatprep.subr.bf16.mxu0 0
    %2467 = vmatpush1.bf16.msra.mxu0 0
    %2468 = vmatprep.subr.bf16.mxu0 0
    %2469 = vmatpush1.bf16.msra.mxu0 0
    %2470 = vmatprep.subr.bf16.mxu0 0
    %2471 = vmatpush1.bf16.msra.mxu0 0
    %2472 = vmatprep.subr.bf16.mxu0 0
    %2473 = vmatpush1.bf16.msra.mxu0 0
    %2474 = vmatprep.subr.bf16.mxu0 0
    %2475 = vmatpush1.bf16.msra.mxu0 0
    %2476 = vmatprep.subr.bf16.mxu0 0
    %2477 = vmatpush1.bf16.msra.mxu0 0
    %2478 = vmatprep.subr.bf16.mxu0 0
    %2479 = vmatpush1.bf16.msra.mxu0 0
    %2480 = vmatprep.subr.bf16.mxu0 0
    %2481 = vmatpush1.bf16.msra.mxu0 0
    %2482 = vmatprep.subr.bf16.mxu0 0
    %2483 = vmatpush1.bf16.msra.mxu0 0
    %2484 = vmatprep.subr.bf16.mxu0 0
    %2485 = vmatpush1.bf16.msra.mxu0 0
    %2486 = vmatprep.subr.bf16.mxu0 0
    %2487 = vmatpush1.bf16.msra.mxu0 0
    %2488 = vmatprep.subr.bf16.mxu0 0
    %2489 = vmatpush1.bf16.msra.mxu0 0
    %2490 = vmatprep.mubr.bf16.mxu0 0
    %2491 = vmatmul.mubr.bf16.gmra.mrb[0].mxu0 %v2456
    %v2492 = vpop.f32.mrb[0].mxu0
    %v2493 = vadd.f32 0.0, %v2492
    %v2494 = vpop.f32.mrb[0].mxu0
    %v2495 = vpop.f32.mrb[0].mxu0
    %v2496 = vpop.f32.mrb[0].mxu0
    %2497 = vdwg.mxu0
    %v2499 = vrot.slane %v2493, 2
    %v2501 = vadd.f32 %v437, %v2499
    %v2502 = vxor.u32 %v2501, 2147483648
    %v2503 = vmul.f32 %v2502, 1.442695
    %v2504 = vpow.pop %v2503
    %v2505 = vadd.f32 %v2504, 1.0
    %v2506 = vrcp.pop %v2505
    %v2507 = vmul.f32 1.0, %v2506
    %v2508 = vtanh.pop %v2501
    %v2510 = vrot.slane %v2389, 6
    %v2512 = vmul.f32 %v2507, %v2510
    %2514 = vrot.lane.b32.xlu0 %v2508, 64
    %v2515 = vpop.permute.xlu0 %2514
    %v2517 = vmul.f32 %v2507, %v2515
    %2519 = vrot.lane.b32.xlu0 %v2517, 32
    %v2520 = vpop.permute.xlu0 %2519
    %v2522 = vadd.f32 %v2512, %v2520
    %v2523 = vtanh.pop %v2522
    %2525 = vrot.lane.b32.xlu0 %v2523, 64
    %v2526 = vpop.permute.xlu0 %2525
    %v2528 = vmul.f32 %v2507, %v2526
    %vm2529 = vcmp.eq.s32.totalorder %v457, 15
    %vm2530 = vcmp.eq.s32.totalorder %v458, 15
    %vm2531 = vcmp.eq.s32.totalorder %v459, 15
    %vm2532 = vcmp.eq.s32.totalorder %v460, 15
    %v2534 = vcombine.high %v2528, %v2528
    %v2536 = vunpack.c.l.s4 1966171168
    %v2537 = vunpack.c.0.s8 %v2536
    %v2538 = vlaneseq
    %v2539 = vshrl.u32 %v2538, 7
    %v2540 = vsub.s32 %v2537, %v2539
    %v2541 = vrot.slane %v2534, %v2540
    %v2542 = vcombine.high %v2541, %v2541
    %v2544 = vunpack.c.l.s4 1966171168
    %v2545 = vunpack.c.0.s8 %v2544
    %v2546 = vlaneseq
    %v2547 = vshrl.u32 %v2546, 7
    %v2548 = vsub.s32 %v2545, %v2547
    %v2549 = vrot.slane %v2541, %v2548
    %v2551 = vunpack.c.l.s4 1966171168
    %v2552 = vunpack.c.0.s8 %v2551
    %v2553 = vlaneseq
    %v2554 = vshrl.u32 %v2553, 7
    %v2555 = vsub.s32 %v2552, %v2554
    %v2556 = vrot.slane %v2542, %v2555
    %v2557 = vcombine.high %v2549, %v2549
    %v2558 = vcombine.high %v2556, %v2556
    %v2559 = vsel %vm2529, 1, 0
    %v2560 = vsel %vm2530, 1, 0
    %v2561 = vsel %vm2531, 1, 0
    %v2562 = vsel %vm2532, 1, 0
    %vm2563 = vcmp.eq.s32.totalorder %v2559, 1
    %vm2564 = vcmp.eq.s32.totalorder %v2560, 1
    %vm2565 = vcmp.eq.s32.totalorder %v2561, 1
    %vm2566 = vcmp.eq.s32.totalorder %v2562, 1
    %v2567 = vlaneseq
    %v2568 = vshrl.u32 %v2567, 7
    %v2569 = vsub.s32 0, %v2568
    %v2570 = vrot.slane %v2557, %v2569
    %v2571 = vlaneseq
    %v2572 = vshrl.u32 %v2571, 7
    %v2573 = vsub.s32 0, %v2572
    %v2574 = vrot.slane %v2558, %v2573
    %v2577 = vsel %vm2563, %v2570, %v2442
    %v2578 = vsel %vm2564, %v2570, %v2443
    %v2579 = vsel %vm2565, %v2570, %v2444
    %v2580 = vsel %vm2566, %v2570, %v2445
    %v2581 = vsel %vm2563, %v2574, %v2446
    %v2582 = vsel %vm2564, %v2574, %v2447
    %v2583 = vsel %vm2565, %v2574, %v2448
    %v2584 = vsel %vm2566, %v2574, %v2449
    %v2585 = vpack.c.bf16 %v2528, %v2528
    %v2587 = vrot.slane %v2585, 3
    %2588 = vrot.lane.b32.xlu0 %v2587, 32
    %v2589 = vpop.permute.xlu0 %2588
    %v2591 = vsel %vm378, %v2589, 0
    %2593 = vmatprep.subr.bf16.mxu0 0
    %2594 = vmatpush1.bf16.msra.mxu0 %v469
    %2595 = vmatprep.subr.bf16.mxu0 0
    %2596 = vmatpush1.bf16.msra.mxu0 %v470
    %2597 = vmatprep.subr.bf16.mxu0 0
    %2598 = vmatpush1.bf16.msra.mxu0 0
    %2599 = vmatprep.subr.bf16.mxu0 0
    %2600 = vmatpush1.bf16.msra.mxu0 0
    %2601 = vmatprep.subr.bf16.mxu0 0
    %2602 = vmatpush1.bf16.msra.mxu0 0
    %2603 = vmatprep.subr.bf16.mxu0 0
    %2604 = vmatpush1.bf16.msra.mxu0 0
    %2605 = vmatprep.subr.bf16.mxu0 0
    %2606 = vmatpush1.bf16.msra.mxu0 0
    %2607 = vmatprep.subr.bf16.mxu0 0
    %2608 = vmatpush1.bf16.msra.mxu0 0
    %2609 = vmatprep.subr.bf16.mxu0 0
    %2610 = vmatpush1.bf16.msra.mxu0 0
    %2611 = vmatprep.subr.bf16.mxu0 0
    %2612 = vmatpush1.bf16.msra.mxu0 0
    %2613 = vmatprep.subr.bf16.mxu0 0
    %2614 = vmatpush1.bf16.msra.mxu0 0
    %2615 = vmatprep.subr.bf16.mxu0 0
    %2616 = vmatpush1.bf16.msra.mxu0 0
    %2617 = vmatprep.subr.bf16.mxu0 0
    %2618 = vmatpush1.bf16.msra.mxu0 0
    %2619 = vmatprep.subr.bf16.mxu0 0
    %2620 = vmatpush1.bf16.msra.mxu0 0
    %2621 = vmatprep.subr.bf16.mxu0 0
    %2622 = vmatpush1.bf16.msra.mxu0 0
    %2623 = vmatprep.subr.bf16.mxu0 0
    %2624 = vmatpush1.bf16.msra.mxu0 0
    %2625 = vmatprep.mubr.bf16.mxu0 0
    %2626 = vmatmul.mubr.bf16.gmra.mrb[0].mxu0 %v2591
    %v2627 = vpop.f32.mrb[0].mxu0
    %v2628 = vadd.f32 0.0, %v2627
    %v2629 = vpop.f32.mrb[0].mxu0
    %v2630 = vpop.f32.mrb[0].mxu0
    %v2631 = vpop.f32.mrb[0].mxu0
    %2632 = vdwg.mxu0
    %v2633 = vadd.f32 %v442, %v2628
    %v2634 = vxor.u32 %v2633, 2147483648
    %v2635 = vmul.f32 %v2634, 1.442695
    %v2636 = vpow.pop %v2635
    %v2637 = vadd.f32 %v2636, 1.0
    %v2638 = vrcp.pop %v2637
    %v2639 = vmul.f32 1.0, %v2638
    %v2640 = vtanh.pop %v2633
    %v2642 = vrot.slane %v2522, 6
    %v2644 = vmul.f32 %v2639, %v2642
    %2646 = vrot.lane.b32.xlu0 %v2640, 64
    %v2647 = vpop.permute.xlu0 %2646
    %v2649 = vmul.f32 %v2639, %v2647
    %2651 = vrot.lane.b32.xlu0 %v2649, 32
    %v2652 = vpop.permute.xlu0 %2651
    %v2654 = vadd.f32 %v2644, %v2652
    %v2655 = vtanh.pop %v2654
    %2657 = vrot.lane.b32.xlu0 %v2655, 64
    %v2658 = vpop.permute.xlu0 %2657
    %v2660 = vmul.f32 %v2639, %v2658
    %vm2661 = vcmp.eq.s32.totalorder %v457, 16
    %vm2662 = vcmp.eq.s32.totalorder %v458, 16
    %vm2663 = vcmp.eq.s32.totalorder %v459, 16
    %vm2664 = vcmp.eq.s32.totalorder %v460, 16
    %v2667 = vunpack.c.l.s4 1966171168
    %v2668 = vunpack.c.0.s8 %v2667
    %v2669 = vlaneseq
    %v2670 = vshrl.u32 %v2669, 7
    %v2671 = vsub.s32 %v2668, %v2670
    %v2672 = vrot.slane %v2660, %v2671
    %v2673 = vcombine.high %v2672, %v2672
    %v2675 = vunpack.c.l.s4 1966171168
    %v2676 = vunpack.c.0.s8 %v2675
    %v2677 = vlaneseq
    %v2678 = vshrl.u32 %v2677, 7
    %v2679 = vsub.s32 %v2676, %v2678
    %v2680 = vrot.slane %v2672, %v2679
    %v2682 = vunpack.c.l.s4 1966171168
    %v2683 = vunpack.c.0.s8 %v2682
    %v2684 = vlaneseq
    %v2685 = vshrl.u32 %v2684, 7
    %v2686 = vsub.s32 %v2683, %v2685
    %v2687 = vrot.slane %v2673, %v2686
    %v2688 = vsel %vm2661, 1, 0
    %v2689 = vsel %vm2662, 1, 0
    %v2690 = vsel %vm2663, 1, 0
    %v2691 = vsel %vm2664, 1, 0
    %vm2692 = vcmp.eq.s32.totalorder %v2688, 1
    %vm2693 = vcmp.eq.s32.totalorder %v2689, 1
    %vm2694 = vcmp.eq.s32.totalorder %v2690, 1
    %vm2695 = vcmp.eq.s32.totalorder %v2691, 1
    %v2696 = vlaneseq
    %v2697 = vshrl.u32 %v2696, 7
    %v2698 = vsub.s32 0, %v2697
    %v2699 = vrot.slane %v2680, %v2698
    %v2700 = vlaneseq
    %v2701 = vshrl.u32 %v2700, 7
    %v2702 = vsub.s32 0, %v2701
    %v2703 = vrot.slane %v2687, %v2702
    %v2706 = vsel %vm2692, %v2699, %v2577
    %v2707 = vsel %vm2693, %v2699, %v2578
    %v2708 = vsel %vm2694, %v2699, %v2579
    %v2709 = vsel %vm2695, %v2699, %v2580
    %v2710 = vsel %vm2692, %v2703, %v2581
    %v2711 = vsel %vm2693, %v2703, %v2582
    %v2712 = vsel %vm2694, %v2703, %v2583
    %v2713 = vsel %vm2695, %v2703, %v2584
    %v2714 = vpack.c.bf16 %v2660, %v2660
    %2716 = vrot.lane.b32.xlu0 %v2714, 32
    %v2717 = vpop.permute.xlu0 %2716
    %v2719 = vsel %vm378, %v2717, 0
    %2721 = vmatprep.subr.bf16.mxu0 0
    %2722 = vmatpush1.bf16.msra.mxu0 %v469
    %2723 = vmatprep.subr.bf16.mxu0 0
    %2724 = vmatpush1.bf16.msra.mxu0 %v470
    %2725 = vmatprep.subr.bf16.mxu0 0
    %2726 = vmatpush1.bf16.msra.mxu0 0
    %2727 = vmatprep.subr.bf16.mxu0 0
    %2728 = vmatpush1.bf16.msra.mxu0 0
    %2729 = vmatprep.subr.bf16.mxu0 0
    %2730 = vmatpush1.bf16.msra.mxu0 0
    %2731 = vmatprep.subr.bf16.mxu0 0
    %2732 = vmatpush1.bf16.msra.mxu0 0
    %2733 = vmatprep.subr.bf16.mxu0 0
    %2734 = vmatpush1.bf16.msra.mxu0 0
    %2735 = vmatprep.subr.bf16.mxu0 0
    %2736 = vmatpush1.bf16.msra.mxu0 0
    %2737 = vmatprep.subr.bf16.mxu0 0
    %2738 = vmatpush1.bf16.msra.mxu0 0
    %2739 = vmatprep.subr.bf16.mxu0 0
    %2740 = vmatpush1.bf16.msra.mxu0 0
    %2741 = vmatprep.subr.bf16.mxu0 0
    %2742 = vmatpush1.bf16.msra.mxu0 0
    %2743 = vmatprep.subr.bf16.mxu0 0
    %2744 = vmatpush1.bf16.msra.mxu0 0
    %2745 = vmatprep.subr.bf16.mxu0 0
    %2746 = vmatpush1.bf16.msra.mxu0 0
    %2747 = vmatprep.subr.bf16.mxu0 0
    %2748 = vmatpush1.bf16.msra.mxu0 0
    %2749 = vmatprep.subr.bf16.mxu0 0
    %2750 = vmatpush1.bf16.msra.mxu0 0
    %2751 = vmatprep.subr.bf16.mxu0 0
    %2752 = vmatpush1.bf16.msra.mxu0 0
    %2753 = vmatprep.mubr.bf16.mxu0 0
    %2754 = vmatmul.mubr.bf16.gmra.mrb[0].mxu0 %v2719
    %v2755 = vpop.f32.mrb[0].mxu0
    %v2756 = vadd.f32 0.0, %v2755
    %v2757 = vpop.f32.mrb[0].mxu0
    %v2758 = vpop.f32.mrb[0].mxu0
    %v2759 = vpop.f32.mrb[0].mxu0
    %2760 = vdwg.mxu0
    %v2762 = vrot.slane %v2756, 6
    %v2764 = vadd.f32 %v442, %v2762
    %v2765 = vxor.u32 %v2764, 2147483648
    %v2766 = vmul.f32 %v2765, 1.442695
    %v2767 = vpow.pop %v2766
    %v2768 = vadd.f32 %v2767, 1.0
    %v2769 = vrcp.pop %v2768
    %v2770 = vmul.f32 1.0, %v2769
    %v2771 = vtanh.pop %v2764
    %v2773 = vrot.slane %v2654, 6
    %v2775 = vmul.f32 %v2770, %v2773
    %2777 = vrot.lane.b32.xlu0 %v2771, 64
    %v2778 = vpop.permute.xlu0 %2777
    %v2780 = vmul.f32 %v2770, %v2778
    %2782 = vrot.lane.b32.xlu0 %v2780, 32
    %v2783 = vpop.permute.xlu0 %2782
    %v2785 = vadd.f32 %v2775, %v2783
    %v2786 = vtanh.pop %v2785
    %2788 = vrot.lane.b32.xlu0 %v2786, 64
    %v2789 = vpop.permute.xlu0 %2788
    %v2791 = vmul.f32 %v2770, %v2789
    %vm2792 = vcmp.eq.s32.totalorder %v457, 17
    %vm2793 = vcmp.eq.s32.totalorder %v458, 17
    %vm2794 = vcmp.eq.s32.totalorder %v459, 17
    %vm2795 = vcmp.eq.s32.totalorder %v460, 17
    %v2798 = vunpack.c.l.s4 1966171168
    %v2799 = vunpack.c.0.s8 %v2798
    %v2800 = vlaneseq
    %v2801 = vshrl.u32 %v2800, 7
    %v2802 = vsub.s32 %v2799, %v2801
    %v2803 = vrot.slane %v2791, %v2802
    %v2804 = vcombine.high %v2803, %v2803
    %v2806 = vunpack.c.l.s4 1966171168
    %v2807 = vunpack.c.0.s8 %v2806
    %v2808 = vlaneseq
    %v2809 = vshrl.u32 %v2808, 7
    %v2810 = vsub.s32 %v2807, %v2809
    %v2811 = vrot.slane %v2803, %v2810
    %v2813 = vunpack.c.l.s4 1966171168
    %v2814 = vunpack.c.0.s8 %v2813
    %v2815 = vlaneseq
    %v2816 = vshrl.u32 %v2815, 7
    %v2817 = vsub.s32 %v2814, %v2816
    %v2818 = vrot.slane %v2804, %v2817
    %v2819 = vcombine.high %v2811, %v2811
    %v2820 = vcombine.high %v2818, %v2818
    %v2821 = vsel %vm2792, 1, 0
    %v2822 = vsel %vm2793, 1, 0
    %v2823 = vsel %vm2794, 1, 0
    %v2824 = vsel %vm2795, 1, 0
    %vm2825 = vcmp.eq.s32.totalorder %v2821, 1
    %vm2826 = vcmp.eq.s32.totalorder %v2822, 1
    %vm2827 = vcmp.eq.s32.totalorder %v2823, 1
    %vm2828 = vcmp.eq.s32.totalorder %v2824, 1
    %v2829 = vlaneseq
    %v2830 = vshrl.u32 %v2829, 7
    %v2831 = vsub.s32 0, %v2830
    %v2832 = vrot.slane %v2819, %v2831
    %v2833 = vlaneseq
    %v2834 = vshrl.u32 %v2833, 7
    %v2835 = vsub.s32 0, %v2834
    %v2836 = vrot.slane %v2820, %v2835
    %v2839 = vsel %vm2825, %v2832, %v2706
    %v2840 = vsel %vm2826, %v2832, %v2707
    %v2841 = vsel %vm2827, %v2832, %v2708
    %v2842 = vsel %vm2828, %v2832, %v2709
    %v2843 = vsel %vm2825, %v2836, %v2710
    %v2844 = vsel %vm2826, %v2836, %v2711
    %v2845 = vsel %vm2827, %v2836, %v2712
    %v2846 = vsel %vm2828, %v2836, %v2713
    %v2847 = vpack.c.bf16 %v2791, %v2791
    %v2849 = vrot.slane %v2847, 1
    %2850 = vrot.lane.b32.xlu0 %v2849, 32
    %v2851 = vpop.permute.xlu0 %2850
    %v2853 = vsel %vm378, %v2851, 0
    %2855 = vmatprep.subr.bf16.mxu0 0
    %2856 = vmatpush1.bf16.msra.mxu0 %v469
    %2857 = vmatprep.subr.bf16.mxu0 0
    %2858 = vmatpush1.bf16.msra.mxu0 %v470
    %2859 = vmatprep.subr.bf16.mxu0 0
    %2860 = vmatpush1.bf16.msra.mxu0 0
    %2861 = vmatprep.subr.bf16.mxu0 0
    %2862 = vmatpush1.bf16.msra.mxu0 0
    %2863 = vmatprep.subr.bf16.mxu0 0
    %2864 = vmatpush1.bf16.msra.mxu0 0
    %2865 = vmatprep.subr.bf16.mxu0 0
    %2866 = vmatpush1.bf16.msra.mxu0 0
    %2867 = vmatprep.subr.bf16.mxu0 0
    %2868 = vmatpush1.bf16.msra.mxu0 0
    %2869 = vmatprep.subr.bf16.mxu0 0
    %2870 = vmatpush1.bf16.msra.mxu0 0
    %2871 = vmatprep.subr.bf16.mxu0 0
    %2872 = vmatpush1.bf16.msra.mxu0 0
    %2873 = vmatprep.subr.bf16.mxu0 0
    %2874 = vmatpush1.bf16.msra.mxu0 0
    %2875 = vmatprep.subr.bf16.mxu0 0
    %2876 = vmatpush1.bf16.msra.mxu0 0
    %2877 = vmatprep.subr.bf16.mxu0 0
    %2878 = vmatpush1.bf16.msra.mxu0 0
    %2879 = vmatprep.subr.bf16.mxu0 0
    %2880 = vmatpush1.bf16.msra.mxu0 0
    %2881 = vmatprep.subr.bf16.mxu0 0
    %2882 = vmatpush1.bf16.msra.mxu0 0
    %2883 = vmatprep.subr.bf16.mxu0 0
    %2884 = vmatpush1.bf16.msra.mxu0 0
    %2885 = vmatprep.subr.bf16.mxu0 0
    %2886 = vmatpush1.bf16.msra.mxu0 0
    %2887 = vmatprep.mubr.bf16.mxu0 0
    %2888 = vmatmul.mubr.bf16.gmra.mrb[0].mxu0 %v2853
    %v2889 = vpop.f32.mrb[0].mxu0
    %v2890 = vadd.f32 0.0, %v2889
    %v2891 = vpop.f32.mrb[0].mxu0
    %v2892 = vpop.f32.mrb[0].mxu0
    %v2893 = vpop.f32.mrb[0].mxu0
    %2894 = vdwg.mxu0
    %v2896 = vrot.slane %v2890, 4
    %v2898 = vadd.f32 %v442, %v2896
    %v2899 = vxor.u32 %v2898, 2147483648
    %v2900 = vmul.f32 %v2899, 1.442695
    %v2901 = vpow.pop %v2900
    %v2902 = vadd.f32 %v2901, 1.0
    %v2903 = vrcp.pop %v2902
    %v2904 = vmul.f32 1.0, %v2903
    %v2905 = vtanh.pop %v2898
    %v2907 = vrot.slane %v2785, 6
    %v2909 = vmul.f32 %v2904, %v2907
    %2911 = vrot.lane.b32.xlu0 %v2905, 64
    %v2912 = vpop.permute.xlu0 %2911
    %v2914 = vmul.f32 %v2904, %v2912
    %2916 = vrot.lane.b32.xlu0 %v2914, 32
    %v2917 = vpop.permute.xlu0 %2916
    %v2919 = vadd.f32 %v2909, %v2917
    %v2920 = vtanh.pop %v2919
    %2922 = vrot.lane.b32.xlu0 %v2920, 64
    %v2923 = vpop.permute.xlu0 %2922
    %v2925 = vmul.f32 %v2904, %v2923
    %vm2926 = vcmp.eq.s32.totalorder %v457, 18
    %vm2927 = vcmp.eq.s32.totalorder %v458, 18
    %vm2928 = vcmp.eq.s32.totalorder %v459, 18
    %vm2929 = vcmp.eq.s32.totalorder %v460, 18
    %v2931 = vcombine.high %v2925, %v2925
    %v2933 = vunpack.c.l.s4 1966171168
    %v2934 = vunpack.c.0.s8 %v2933
    %v2935 = vlaneseq
    %v2936 = vshrl.u32 %v2935, 7
    %v2937 = vsub.s32 %v2934, %v2936
    %v2938 = vrot.slane %v2931, %v2937
    %v2939 = vcombine.high %v2938, %v2938
    %v2941 = vunpack.c.l.s4 1966171168
    %v2942 = vunpack.c.0.s8 %v2941
    %v2943 = vlaneseq
    %v2944 = vshrl.u32 %v2943, 7
    %v2945 = vsub.s32 %v2942, %v2944
    %v2946 = vrot.slane %v2938, %v2945
    %v2948 = vunpack.c.l.s4 1966171168
    %v2949 = vunpack.c.0.s8 %v2948
    %v2950 = vlaneseq
    %v2951 = vshrl.u32 %v2950, 7
    %v2952 = vsub.s32 %v2949, %v2951
    %v2953 = vrot.slane %v2939, %v2952
    %v2954 = vsel %vm2926, 1, 0
    %v2955 = vsel %vm2927, 1, 0
    %v2956 = vsel %vm2928, 1, 0
    %v2957 = vsel %vm2929, 1, 0
    %vm2958 = vcmp.eq.s32.totalorder %v2954, 1
    %vm2959 = vcmp.eq.s32.totalorder %v2955, 1
    %vm2960 = vcmp.eq.s32.totalorder %v2956, 1
    %vm2961 = vcmp.eq.s32.totalorder %v2957, 1
    %v2962 = vlaneseq
    %v2963 = vshrl.u32 %v2962, 7
    %v2964 = vsub.s32 0, %v2963
    %v2965 = vrot.slane %v2946, %v2964
    %v2966 = vlaneseq
    %v2967 = vshrl.u32 %v2966, 7
    %v2968 = vsub.s32 0, %v2967
    %v2969 = vrot.slane %v2953, %v2968
    %v2972 = vsel %vm2958, %v2965, %v2839
    %v2973 = vsel %vm2959, %v2965, %v2840
    %v2974 = vsel %vm2960, %v2965, %v2841
    %v2975 = vsel %vm2961, %v2965, %v2842
    %v2976 = vsel %vm2958, %v2969, %v2843
    %v2977 = vsel %vm2959, %v2969, %v2844
    %v2978 = vsel %vm2960, %v2969, %v2845
    %v2979 = vsel %vm2961, %v2969, %v2846
    %v2980 = vpack.c.bf16 %v2925, %v2925
    %v2982 = vrot.slane %v2980, 2
    %2983 = vrot.lane.b32.xlu0 %v2982, 32
    %v2984 = vpop.permute.xlu0 %2983
    %v2986 = vsel %vm378, %v2984, 0
    %2988 = vmatprep.subr.bf16.mxu0 0
    %2989 = vmatpush1.bf16.msra.mxu0 %v469
    %2990 = vmatprep.subr.bf16.mxu0 0
    %2991 = vmatpush1.bf16.msra.mxu0 %v470
    %2992 = vmatprep.subr.bf16.mxu0 0
    %2993 = vmatpush1.bf16.msra.mxu0 0
    %2994 = vmatprep.subr.bf16.mxu0 0
    %2995 = vmatpush1.bf16.msra.mxu0 0
    %2996 = vmatprep.subr.bf16.mxu0 0
    %2997 = vmatpush1.bf16.msra.mxu0 0
    %2998 = vmatprep.subr.bf16.mxu0 0
    %2999 = vmatpush1.bf16.msra.mxu0 0
    %3000 = vmatprep.subr.bf16.mxu0 0
    %3001 = vmatpush1.bf16.msra.mxu0 0
    %3002 = vmatprep.subr.bf16.mxu0 0
    %3003 = vmatpush1.bf16.msra.mxu0 0
    %3004 = vmatprep.subr.bf16.mxu0 0
    %3005 = vmatpush1.bf16.msra.mxu0 0
    %3006 = vmatprep.subr.bf16.mxu0 0
    %3007 = vmatpush1.bf16.msra.mxu0 0
    %3008 = vmatprep.subr.bf16.mxu0 0
    %3009 = vmatpush1.bf16.msra.mxu0 0
    %3010 = vmatprep.subr.bf16.mxu0 0
    %3011 = vmatpush1.bf16.msra.mxu0 0
    %3012 = vmatprep.subr.bf16.mxu0 0
    %3013 = vmatpush1.bf16.msra.mxu0 0
    %3014 = vmatprep.subr.bf16.mxu0 0
    %3015 = vmatpush1.bf16.msra.mxu0 0
    %3016 = vmatprep.subr.bf16.mxu0 0
    %3017 = vmatpush1.bf16.msra.mxu0 0
    %3018 = vmatprep.subr.bf16.mxu0 0
    %3019 = vmatpush1.bf16.msra.mxu0 0
    %3020 = vmatprep.mubr.bf16.mxu0 0
    %3021 = vmatmul.mubr.bf16.gmra.mrb[0].mxu0 %v2986
    %v3022 = vpop.f32.mrb[0].mxu0
    %v3023 = vadd.f32 0.0, %v3022
    %v3024 = vpop.f32.mrb[0].mxu0
    %v3025 = vpop.f32.mrb[0].mxu0
    %v3026 = vpop.f32.mrb[0].mxu0
    %3027 = vdwg.mxu0
    %v3029 = vrot.slane %v3023, 2
    %v3031 = vadd.f32 %v442, %v3029
    %v3032 = vxor.u32 %v3031, 2147483648
    %v3033 = vmul.f32 %v3032, 1.442695
    %v3034 = vpow.pop %v3033
    %v3035 = vadd.f32 %v3034, 1.0
    %v3036 = vrcp.pop %v3035
    %v3037 = vmul.f32 1.0, %v3036
    %v3038 = vtanh.pop %v3031
    %v3040 = vrot.slane %v2919, 6
    %v3042 = vmul.f32 %v3037, %v3040
    %3044 = vrot.lane.b32.xlu0 %v3038, 64
    %v3045 = vpop.permute.xlu0 %3044
    %v3047 = vmul.f32 %v3037, %v3045
    %3049 = vrot.lane.b32.xlu0 %v3047, 32
    %v3050 = vpop.permute.xlu0 %3049
    %v3052 = vadd.f32 %v3042, %v3050
    %v3053 = vtanh.pop %v3052
    %3055 = vrot.lane.b32.xlu0 %v3053, 64
    %v3056 = vpop.permute.xlu0 %3055
    %v3058 = vmul.f32 %v3037, %v3056
    %vm3059 = vcmp.eq.s32.totalorder %v457, 19
    %vm3060 = vcmp.eq.s32.totalorder %v458, 19
    %vm3061 = vcmp.eq.s32.totalorder %v459, 19
    %vm3062 = vcmp.eq.s32.totalorder %v460, 19
    %v3064 = vcombine.high %v3058, %v3058
    %v3066 = vunpack.c.l.s4 1966171168
    %v3067 = vunpack.c.0.s8 %v3066
    %v3068 = vlaneseq
    %v3069 = vshrl.u32 %v3068, 7
    %v3070 = vsub.s32 %v3067, %v3069
    %v3071 = vrot.slane %v3064, %v3070
    %v3072 = vcombine.high %v3071, %v3071
    %v3074 = vunpack.c.l.s4 1966171168
    %v3075 = vunpack.c.0.s8 %v3074
    %v3076 = vlaneseq
    %v3077 = vshrl.u32 %v3076, 7
    %v3078 = vsub.s32 %v3075, %v3077
    %v3079 = vrot.slane %v3071, %v3078
    %v3081 = vunpack.c.l.s4 1966171168
    %v3082 = vunpack.c.0.s8 %v3081
    %v3083 = vlaneseq
    %v3084 = vshrl.u32 %v3083, 7
    %v3085 = vsub.s32 %v3082, %v3084
    %v3086 = vrot.slane %v3072, %v3085
    %v3087 = vcombine.high %v3079, %v3079
    %v3088 = vcombine.high %v3086, %v3086
    %v3089 = vsel %vm3059, 1, 0
    %v3090 = vsel %vm3060, 1, 0
    %v3091 = vsel %vm3061, 1, 0
    %v3092 = vsel %vm3062, 1, 0
    %vm3093 = vcmp.eq.s32.totalorder %v3089, 1
    %vm3094 = vcmp.eq.s32.totalorder %v3090, 1
    %vm3095 = vcmp.eq.s32.totalorder %v3091, 1
    %vm3096 = vcmp.eq.s32.totalorder %v3092, 1
    %v3097 = vlaneseq
    %v3098 = vshrl.u32 %v3097, 7
    %v3099 = vsub.s32 0, %v3098
    %v3100 = vrot.slane %v3087, %v3099
    %v3101 = vlaneseq
    %v3102 = vshrl.u32 %v3101, 7
    %v3103 = vsub.s32 0, %v3102
    %v3104 = vrot.slane %v3088, %v3103
    %v3107 = vsel %vm3093, %v3100, %v2972
    %v3108 = vsel %vm3094, %v3100, %v2973
    %v3109 = vsel %vm3095, %v3100, %v2974
    %v3110 = vsel %vm3096, %v3100, %v2975
    %v3111 = vsel %vm3093, %v3104, %v2976
    %v3112 = vsel %vm3094, %v3104, %v2977
    %v3113 = vsel %vm3095, %v3104, %v2978
    %v3114 = vsel %vm3096, %v3104, %v2979
    %v3115 = vpack.c.bf16 %v3058, %v3058
    %v3117 = vrot.slane %v3115, 3
    %3118 = vrot.lane.b32.xlu0 %v3117, 32
    %v3119 = vpop.permute.xlu0 %3118
    %v3121 = vsel %vm378, %v3119, 0
    %3123 = vmatprep.subr.bf16.mxu0 0
    %3124 = vmatpush1.bf16.msra.mxu0 %v469
    %3125 = vmatprep.subr.bf16.mxu0 0
    %3126 = vmatpush1.bf16.msra.mxu0 %v470
    %3127 = vmatprep.subr.bf16.mxu0 0
    %3128 = vmatpush1.bf16.msra.mxu0 0
    %3129 = vmatprep.subr.bf16.mxu0 0
    %3130 = vmatpush1.bf16.msra.mxu0 0
    %3131 = vmatprep.subr.bf16.mxu0 0
    %3132 = vmatpush1.bf16.msra.mxu0 0
    %3133 = vmatprep.subr.bf16.mxu0 0
    %3134 = vmatpush1.bf16.msra.mxu0 0
    %3135 = vmatprep.subr.bf16.mxu0 0
    %3136 = vmatpush1.bf16.msra.mxu0 0
    %3137 = vmatprep.subr.bf16.mxu0 0
    %3138 = vmatpush1.bf16.msra.mxu0 0
    %3139 = vmatprep.subr.bf16.mxu0 0
    %3140 = vmatpush1.bf16.msra.mxu0 0
    %3141 = vmatprep.subr.bf16.mxu0 0
    %3142 = vmatpush1.bf16.msra.mxu0 0
    %3143 = vmatprep.subr.bf16.mxu0 0
    %3144 = vmatpush1.bf16.msra.mxu0 0
    %3145 = vmatprep.subr.bf16.mxu0 0
    %3146 = vmatpush1.bf16.msra.mxu0 0
    %3147 = vmatprep.subr.bf16.mxu0 0
    %3148 = vmatpush1.bf16.msra.mxu0 0
    %3149 = vmatprep.subr.bf16.mxu0 0
    %3150 = vmatpush1.bf16.msra.mxu0 0
    %3151 = vmatprep.subr.bf16.mxu0 0
    %3152 = vmatpush1.bf16.msra.mxu0 0
    %3153 = vmatprep.subr.bf16.mxu0 0
    %3154 = vmatpush1.bf16.msra.mxu0 0
    %3155 = vmatprep.mubr.bf16.mxu0 0
    %3156 = vmatmul.mubr.bf16.gmra.mrb[0].mxu0 %v3121
    %v3157 = vpop.f32.mrb[0].mxu0
    %v3158 = vadd.f32 0.0, %v3157
    %v3159 = vpop.f32.mrb[0].mxu0
    %v3160 = vpop.f32.mrb[0].mxu0
    %v3161 = vpop.f32.mrb[0].mxu0
    %3162 = vdwg.mxu0
    %v3163 = vadd.f32 %v445, %v3158
    %v3164 = vxor.u32 %v3163, 2147483648
    %v3165 = vmul.f32 %v3164, 1.442695
    %v3166 = vpow.pop %v3165
    %v3167 = vadd.f32 %v3166, 1.0
    %v3168 = vrcp.pop %v3167
    %v3169 = vmul.f32 1.0, %v3168
    %v3170 = vtanh.pop %v3163
    %v3172 = vrot.slane %v3052, 6
    %v3174 = vmul.f32 %v3169, %v3172
    %3176 = vrot.lane.b32.xlu0 %v3170, 64
    %v3177 = vpop.permute.xlu0 %3176
    %v3179 = vmul.f32 %v3169, %v3177
    %3181 = vrot.lane.b32.xlu0 %v3179, 32
    %v3182 = vpop.permute.xlu0 %3181
    %v3184 = vadd.f32 %v3174, %v3182
    %v3185 = vtanh.pop %v3184
    %3187 = vrot.lane.b32.xlu0 %v3185, 64
    %v3188 = vpop.permute.xlu0 %3187
    %v3190 = vmul.f32 %v3169, %v3188
    %vm3191 = vcmp.eq.s32.totalorder %v457, 20
    %vm3192 = vcmp.eq.s32.totalorder %v458, 20
    %vm3193 = vcmp.eq.s32.totalorder %v459, 20
    %vm3194 = vcmp.eq.s32.totalorder %v460, 20
    %v3197 = vunpack.c.l.s4 1966171168
    %v3198 = vunpack.c.0.s8 %v3197
    %v3199 = vlaneseq
    %v3200 = vshrl.u32 %v3199, 7
    %v3201 = vsub.s32 %v3198, %v3200
    %v3202 = vrot.slane %v3190, %v3201
    %v3203 = vcombine.high %v3202, %v3202
    %v3205 = vunpack.c.l.s4 1966171168
    %v3206 = vunpack.c.0.s8 %v3205
    %v3207 = vlaneseq
    %v3208 = vshrl.u32 %v3207, 7
    %v3209 = vsub.s32 %v3206, %v3208
    %v3210 = vrot.slane %v3202, %v3209
    %v3212 = vunpack.c.l.s4 1966171168
    %v3213 = vunpack.c.0.s8 %v3212
    %v3214 = vlaneseq
    %v3215 = vshrl.u32 %v3214, 7
    %v3216 = vsub.s32 %v3213, %v3215
    %v3217 = vrot.slane %v3203, %v3216
    %v3218 = vsel %vm3191, 1, 0
    %v3219 = vsel %vm3192, 1, 0
    %v3220 = vsel %vm3193, 1, 0
    %v3221 = vsel %vm3194, 1, 0
    %vm3222 = vcmp.eq.s32.totalorder %v3218, 1
    %vm3223 = vcmp.eq.s32.totalorder %v3219, 1
    %vm3224 = vcmp.eq.s32.totalorder %v3220, 1
    %vm3225 = vcmp.eq.s32.totalorder %v3221, 1
    %v3226 = vlaneseq
    %v3227 = vshrl.u32 %v3226, 7
    %v3228 = vsub.s32 0, %v3227
    %v3229 = vrot.slane %v3210, %v3228
    %v3230 = vlaneseq
    %v3231 = vshrl.u32 %v3230, 7
    %v3232 = vsub.s32 0, %v3231
    %v3233 = vrot.slane %v3217, %v3232
    %v3236 = vsel %vm3222, %v3229, %v3107
    %v3237 = vsel %vm3223, %v3229, %v3108
    %v3238 = vsel %vm3224, %v3229, %v3109
    %v3239 = vsel %vm3225, %v3229, %v3110
    %v3240 = vsel %vm3222, %v3233, %v3111
    %v3241 = vsel %vm3223, %v3233, %v3112
    %v3242 = vsel %vm3224, %v3233, %v3113
    %v3243 = vsel %vm3225, %v3233, %v3114
    %v3244 = vpack.c.bf16 %v3190, %v3190
    %3246 = vrot.lane.b32.xlu0 %v3244, 32
    %v3247 = vpop.permute.xlu0 %3246
    %v3249 = vsel %vm378, %v3247, 0
    %3251 = vmatprep.subr.bf16.mxu0 0
    %3252 = vmatpush1.bf16.msra.mxu0 %v469
    %3253 = vmatprep.subr.bf16.mxu0 0
    %3254 = vmatpush1.bf16.msra.mxu0 %v470
    %3255 = vmatprep.subr.bf16.mxu0 0
    %3256 = vmatpush1.bf16.msra.mxu0 0
    %3257 = vmatprep.subr.bf16.mxu0 0
    %3258 = vmatpush1.bf16.msra.mxu0 0
    %3259 = vmatprep.subr.bf16.mxu0 0
    %3260 = vmatpush1.bf16.msra.mxu0 0
    %3261 = vmatprep.subr.bf16.mxu0 0
    %3262 = vmatpush1.bf16.msra.mxu0 0
    %3263 = vmatprep.subr.bf16.mxu0 0
    %3264 = vmatpush1.bf16.msra.mxu0 0
    %3265 = vmatprep.subr.bf16.mxu0 0
    %3266 = vmatpush1.bf16.msra.mxu0 0
    %3267 = vmatprep.subr.bf16.mxu0 0
    %3268 = vmatpush1.bf16.msra.mxu0 0
    %3269 = vmatprep.subr.bf16.mxu0 0
    %3270 = vmatpush1.bf16.msra.mxu0 0
    %3271 = vmatprep.subr.bf16.mxu0 0
    %3272 = vmatpush1.bf16.msra.mxu0 0
    %3273 = vmatprep.subr.bf16.mxu0 0
    %3274 = vmatpush1.bf16.msra.mxu0 0
    %3275 = vmatprep.subr.bf16.mxu0 0
    %3276 = vmatpush1.bf16.msra.mxu0 0
    %3277 = vmatprep.subr.bf16.mxu0 0
    %3278 = vmatpush1.bf16.msra.mxu0 0
    %3279 = vmatprep.subr.bf16.mxu0 0
    %3280 = vmatpush1.bf16.msra.mxu0 0
    %3281 = vmatprep.subr.bf16.mxu0 0
    %3282 = vmatpush1.bf16.msra.mxu0 0
    %3283 = vmatprep.mubr.bf16.mxu0 0
    %3284 = vmatmul.mubr.bf16.gmra.mrb[0].mxu0 %v3249
    %v3285 = vpop.f32.mrb[0].mxu0
    %v3286 = vadd.f32 0.0, %v3285
    %v3287 = vpop.f32.mrb[0].mxu0
    %v3288 = vpop.f32.mrb[0].mxu0
    %v3289 = vpop.f32.mrb[0].mxu0
    %3290 = vdwg.mxu0
    %v3292 = vrot.slane %v3286, 6
    %v3294 = vadd.f32 %v445, %v3292
    %v3295 = vxor.u32 %v3294, 2147483648
    %v3296 = vmul.f32 %v3295, 1.442695
    %v3297 = vpow.pop %v3296
    %v3298 = vadd.f32 %v3297, 1.0
    %v3299 = vrcp.pop %v3298
    %v3300 = vmul.f32 1.0, %v3299
    %v3301 = vtanh.pop %v3294
    %v3303 = vrot.slane %v3184, 6
    %v3305 = vmul.f32 %v3300, %v3303
    %3307 = vrot.lane.b32.xlu0 %v3301, 64
    %v3308 = vpop.permute.xlu0 %3307
    %v3310 = vmul.f32 %v3300, %v3308
    %3312 = vrot.lane.b32.xlu0 %v3310, 32
    %v3313 = vpop.permute.xlu0 %3312
    %v3315 = vadd.f32 %v3305, %v3313
    %v3316 = vtanh.pop %v3315
    %3318 = vrot.lane.b32.xlu0 %v3316, 64
    %v3319 = vpop.permute.xlu0 %3318
    %v3321 = vmul.f32 %v3300, %v3319
    %vm3322 = vcmp.eq.s32.totalorder %v457, 21
    %vm3323 = vcmp.eq.s32.totalorder %v458, 21
    %vm3324 = vcmp.eq.s32.totalorder %v459, 21
    %vm3325 = vcmp.eq.s32.totalorder %v460, 21
    %v3328 = vunpack.c.l.s4 1966171168
    %v3329 = vunpack.c.0.s8 %v3328
    %v3330 = vlaneseq
    %v3331 = vshrl.u32 %v3330, 7
    %v3332 = vsub.s32 %v3329, %v3331
    %v3333 = vrot.slane %v3321, %v3332
    %v3334 = vcombine.high %v3333, %v3333
    %v3336 = vunpack.c.l.s4 1966171168
    %v3337 = vunpack.c.0.s8 %v3336
    %v3338 = vlaneseq
    %v3339 = vshrl.u32 %v3338, 7
    %v3340 = vsub.s32 %v3337, %v3339
    %v3341 = vrot.slane %v3333, %v3340
    %v3343 = vunpack.c.l.s4 1966171168
    %v3344 = vunpack.c.0.s8 %v3343
    %v3345 = vlaneseq
    %v3346 = vshrl.u32 %v3345, 7
    %v3347 = vsub.s32 %v3344, %v3346
    %v3348 = vrot.slane %v3334, %v3347
    %v3349 = vcombine.high %v3341, %v3341
    %v3350 = vcombine.high %v3348, %v3348
    %v3351 = vsel %vm3322, 1, 0
    %v3352 = vsel %vm3323, 1, 0
    %v3353 = vsel %vm3324, 1, 0
    %v3354 = vsel %vm3325, 1, 0
    %vm3355 = vcmp.eq.s32.totalorder %v3351, 1
    %vm3356 = vcmp.eq.s32.totalorder %v3352, 1
    %vm3357 = vcmp.eq.s32.totalorder %v3353, 1
    %vm3358 = vcmp.eq.s32.totalorder %v3354, 1
    %v3359 = vlaneseq
    %v3360 = vshrl.u32 %v3359, 7
    %v3361 = vsub.s32 0, %v3360
    %v3362 = vrot.slane %v3349, %v3361
    %v3363 = vlaneseq
    %v3364 = vshrl.u32 %v3363, 7
    %v3365 = vsub.s32 0, %v3364
    %v3366 = vrot.slane %v3350, %v3365
    %v3369 = vsel %vm3355, %v3362, %v3236
    %v3370 = vsel %vm3356, %v3362, %v3237
    %v3371 = vsel %vm3357, %v3362, %v3238
    %v3372 = vsel %vm3358, %v3362, %v3239
    %v3373 = vsel %vm3355, %v3366, %v3240
    %v3374 = vsel %vm3356, %v3366, %v3241
    %v3375 = vsel %vm3357, %v3366, %v3242
    %v3376 = vsel %vm3358, %v3366, %v3243
    %v3377 = vpack.c.bf16 %v3321, %v3321
    %v3379 = vrot.slane %v3377, 1
    %3380 = vrot.lane.b32.xlu0 %v3379, 32
    %v3381 = vpop.permute.xlu0 %3380
    %v3383 = vsel %vm378, %v3381, 0
    %3385 = vmatprep.subr.bf16.mxu0 0
    %3386 = vmatpush1.bf16.msra.mxu0 %v469
    %3387 = vmatprep.subr.bf16.mxu0 0
    %3388 = vmatpush1.bf16.msra.mxu0 %v470
    %3389 = vmatprep.subr.bf16.mxu0 0
    %3390 = vmatpush1.bf16.msra.mxu0 0
    %3391 = vmatprep.subr.bf16.mxu0 0
    %3392 = vmatpush1.bf16.msra.mxu0 0
    %3393 = vmatprep.subr.bf16.mxu0 0
    %3394 = vmatpush1.bf16.msra.mxu0 0
    %3395 = vmatprep.subr.bf16.mxu0 0
    %3396 = vmatpush1.bf16.msra.mxu0 0
    %3397 = vmatprep.subr.bf16.mxu0 0
    %3398 = vmatpush1.bf16.msra.mxu0 0
    %3399 = vmatprep.subr.bf16.mxu0 0
    %3400 = vmatpush1.bf16.msra.mxu0 0
    %3401 = vmatprep.subr.bf16.mxu0 0
    %3402 = vmatpush1.bf16.msra.mxu0 0
    %3403 = vmatprep.subr.bf16.mxu0 0
    %3404 = vmatpush1.bf16.msra.mxu0 0
    %3405 = vmatprep.subr.bf16.mxu0 0
    %3406 = vmatpush1.bf16.msra.mxu0 0
    %3407 = vmatprep.subr.bf16.mxu0 0
    %3408 = vmatpush1.bf16.msra.mxu0 0
    %3409 = vmatprep.subr.bf16.mxu0 0
    %3410 = vmatpush1.bf16.msra.mxu0 0
    %3411 = vmatprep.subr.bf16.mxu0 0
    %3412 = vmatpush1.bf16.msra.mxu0 0
    %3413 = vmatprep.subr.bf16.mxu0 0
    %3414 = vmatpush1.bf16.msra.mxu0 0
    %3415 = vmatprep.subr.bf16.mxu0 0
    %3416 = vmatpush1.bf16.msra.mxu0 0
    %3417 = vmatprep.mubr.bf16.mxu0 0
    %3418 = vmatmul.mubr.bf16.gmra.mrb[0].mxu0 %v3383
    %v3419 = vpop.f32.mrb[0].mxu0
    %v3420 = vadd.f32 0.0, %v3419
    %v3421 = vpop.f32.mrb[0].mxu0
    %v3422 = vpop.f32.mrb[0].mxu0
    %v3423 = vpop.f32.mrb[0].mxu0
    %3424 = vdwg.mxu0
    %v3426 = vrot.slane %v3420, 4
    %v3428 = vadd.f32 %v445, %v3426
    %v3429 = vxor.u32 %v3428, 2147483648
    %v3430 = vmul.f32 %v3429, 1.442695
    %v3431 = vpow.pop %v3430
    %v3432 = vadd.f32 %v3431, 1.0
    %v3433 = vrcp.pop %v3432
    %v3434 = vmul.f32 1.0, %v3433
    %v3435 = vtanh.pop %v3428
    %v3437 = vrot.slane %v3315, 6
    %v3439 = vmul.f32 %v3434, %v3437
    %3441 = vrot.lane.b32.xlu0 %v3435, 64
    %v3442 = vpop.permute.xlu0 %3441
    %v3444 = vmul.f32 %v3434, %v3442
    %3446 = vrot.lane.b32.xlu0 %v3444, 32
    %v3447 = vpop.permute.xlu0 %3446
    %v3449 = vadd.f32 %v3439, %v3447
    %v3450 = vtanh.pop %v3449
    %3452 = vrot.lane.b32.xlu0 %v3450, 64
    %v3453 = vpop.permute.xlu0 %3452
    %v3455 = vmul.f32 %v3434, %v3453
    %vm3456 = vcmp.eq.s32.totalorder %v457, 22
    %vm3457 = vcmp.eq.s32.totalorder %v458, 22
    %vm3458 = vcmp.eq.s32.totalorder %v459, 22
    %vm3459 = vcmp.eq.s32.totalorder %v460, 22
    %v3461 = vcombine.high %v3455, %v3455
    %v3463 = vunpack.c.l.s4 1966171168
    %v3464 = vunpack.c.0.s8 %v3463
    %v3465 = vlaneseq
    %v3466 = vshrl.u32 %v3465, 7
    %v3467 = vsub.s32 %v3464, %v3466
    %v3468 = vrot.slane %v3461, %v3467
    %v3469 = vcombine.high %v3468, %v3468
    %v3471 = vunpack.c.l.s4 1966171168
    %v3472 = vunpack.c.0.s8 %v3471
    %v3473 = vlaneseq
    %v3474 = vshrl.u32 %v3473, 7
    %v3475 = vsub.s32 %v3472, %v3474
    %v3476 = vrot.slane %v3468, %v3475
    %v3478 = vunpack.c.l.s4 1966171168
    %v3479 = vunpack.c.0.s8 %v3478
    %v3480 = vlaneseq
    %v3481 = vshrl.u32 %v3480, 7
    %v3482 = vsub.s32 %v3479, %v3481
    %v3483 = vrot.slane %v3469, %v3482
    %v3484 = vsel %vm3456, 1, 0
    %v3485 = vsel %vm3457, 1, 0
    %v3486 = vsel %vm3458, 1, 0
    %v3487 = vsel %vm3459, 1, 0
    %vm3488 = vcmp.eq.s32.totalorder %v3484, 1
    %vm3489 = vcmp.eq.s32.totalorder %v3485, 1
    %vm3490 = vcmp.eq.s32.totalorder %v3486, 1
    %vm3491 = vcmp.eq.s32.totalorder %v3487, 1
    %v3492 = vlaneseq
    %v3493 = vshrl.u32 %v3492, 7
    %v3494 = vsub.s32 0, %v3493
    %v3495 = vrot.slane %v3476, %v3494
    %v3496 = vlaneseq
    %v3497 = vshrl.u32 %v3496, 7
    %v3498 = vsub.s32 0, %v3497
    %v3499 = vrot.slane %v3483, %v3498
    %v3502 = vsel %vm3488, %v3495, %v3369
    %v3503 = vsel %vm3489, %v3495, %v3370
    %v3504 = vsel %vm3490, %v3495, %v3371
    %v3505 = vsel %vm3491, %v3495, %v3372
    %v3506 = vsel %vm3488, %v3499, %v3373
    %v3507 = vsel %vm3489, %v3499, %v3374
    %v3508 = vsel %vm3490, %v3499, %v3375
    %v3509 = vsel %vm3491, %v3499, %v3376
    %v3510 = vpack.c.bf16 %v3455, %v3455
    %v3512 = vrot.slane %v3510, 2
    %3513 = vrot.lane.b32.xlu0 %v3512, 32
    %v3514 = vpop.permute.xlu0 %3513
    %v3516 = vsel %vm378, %v3514, 0
    %3518 = vmatprep.subr.bf16.mxu0 0
    %3519 = vmatpush1.bf16.msra.mxu0 %v469
    %3520 = vmatprep.subr.bf16.mxu0 0
    %3521 = vmatpush1.bf16.msra.mxu0 %v470
    %3522 = vmatprep.subr.bf16.mxu0 0
    %3523 = vmatpush1.bf16.msra.mxu0 0
    %3524 = vmatprep.subr.bf16.mxu0 0
    %3525 = vmatpush1.bf16.msra.mxu0 0
    %3526 = vmatprep.subr.bf16.mxu0 0
    %3527 = vmatpush1.bf16.msra.mxu0 0
    %3528 = vmatprep.subr.bf16.mxu0 0
    %3529 = vmatpush1.bf16.msra.mxu0 0
    %3530 = vmatprep.subr.bf16.mxu0 0
    %3531 = vmatpush1.bf16.msra.mxu0 0
    %3532 = vmatprep.subr.bf16.mxu0 0
    %3533 = vmatpush1.bf16.msra.mxu0 0
    %3534 = vmatprep.subr.bf16.mxu0 0
    %3535 = vmatpush1.bf16.msra.mxu0 0
    %3536 = vmatprep.subr.bf16.mxu0 0
    %3537 = vmatpush1.bf16.msra.mxu0 0
    %3538 = vmatprep.subr.bf16.mxu0 0
    %3539 = vmatpush1.bf16.msra.mxu0 0
    %3540 = vmatprep.subr.bf16.mxu0 0
    %3541 = vmatpush1.bf16.msra.mxu0 0
    %3542 = vmatprep.subr.bf16.mxu0 0
    %3543 = vmatpush1.bf16.msra.mxu0 0
    %3544 = vmatprep.subr.bf16.mxu0 0
    %3545 = vmatpush1.bf16.msra.mxu0 0
    %3546 = vmatprep.subr.bf16.mxu0 0
    %3547 = vmatpush1.bf16.msra.mxu0 0
    %3548 = vmatprep.subr.bf16.mxu0 0
    %3549 = vmatpush1.bf16.msra.mxu0 0
    %3550 = vmatprep.mubr.bf16.mxu0 0
    %3551 = vmatmul.mubr.bf16.gmra.mrb[0].mxu0 %v3516
    %v3552 = vpop.f32.mrb[0].mxu0
    %v3553 = vadd.f32 0.0, %v3552
    %v3554 = vpop.f32.mrb[0].mxu0
    %v3555 = vpop.f32.mrb[0].mxu0
    %v3556 = vpop.f32.mrb[0].mxu0
    %3557 = vdwg.mxu0
    %v3559 = vrot.slane %v3553, 2
    %v3561 = vadd.f32 %v445, %v3559
    %v3562 = vxor.u32 %v3561, 2147483648
    %v3563 = vmul.f32 %v3562, 1.442695
    %v3564 = vpow.pop %v3563
    %v3565 = vadd.f32 %v3564, 1.0
    %v3566 = vrcp.pop %v3565
    %v3567 = vmul.f32 1.0, %v3566
    %v3568 = vtanh.pop %v3561
    %v3570 = vrot.slane %v3449, 6
    %v3572 = vmul.f32 %v3567, %v3570
    %3574 = vrot.lane.b32.xlu0 %v3568, 64
    %v3575 = vpop.permute.xlu0 %3574
    %v3577 = vmul.f32 %v3567, %v3575
    %3579 = vrot.lane.b32.xlu0 %v3577, 32
    %v3580 = vpop.permute.xlu0 %3579
    %v3582 = vadd.f32 %v3572, %v3580
    %v3583 = vtanh.pop %v3582
    %3585 = vrot.lane.b32.xlu0 %v3583, 64
    %v3586 = vpop.permute.xlu0 %3585
    %v3588 = vmul.f32 %v3567, %v3586
    %vm3589 = vcmp.eq.s32.totalorder %v457, 23
    %vm3590 = vcmp.eq.s32.totalorder %v458, 23
    %vm3591 = vcmp.eq.s32.totalorder %v459, 23
    %vm3592 = vcmp.eq.s32.totalorder %v460, 23
    %v3594 = vcombine.high %v3588, %v3588
    %v3596 = vunpack.c.l.s4 1966171168
    %v3597 = vunpack.c.0.s8 %v3596
    %v3598 = vlaneseq
    %v3599 = vshrl.u32 %v3598, 7
    %v3600 = vsub.s32 %v3597, %v3599
    %v3601 = vrot.slane %v3594, %v3600
    %v3602 = vcombine.high %v3601, %v3601
    %v3604 = vunpack.c.l.s4 1966171168
    %v3605 = vunpack.c.0.s8 %v3604
    %v3606 = vlaneseq
    %v3607 = vshrl.u32 %v3606, 7
    %v3608 = vsub.s32 %v3605, %v3607
    %v3609 = vrot.slane %v3601, %v3608
    %v3611 = vunpack.c.l.s4 1966171168
    %v3612 = vunpack.c.0.s8 %v3611
    %v3613 = vlaneseq
    %v3614 = vshrl.u32 %v3613, 7
    %v3615 = vsub.s32 %v3612, %v3614
    %v3616 = vrot.slane %v3602, %v3615
    %v3617 = vcombine.high %v3609, %v3609
    %v3618 = vcombine.high %v3616, %v3616
    %v3619 = vsel %vm3589, 1, 0
    %v3620 = vsel %vm3590, 1, 0
    %v3621 = vsel %vm3591, 1, 0
    %v3622 = vsel %vm3592, 1, 0
    %vm3623 = vcmp.eq.s32.totalorder %v3619, 1
    %vm3624 = vcmp.eq.s32.totalorder %v3620, 1
    %vm3625 = vcmp.eq.s32.totalorder %v3621, 1
    %vm3626 = vcmp.eq.s32.totalorder %v3622, 1
    %v3627 = vlaneseq
    %v3628 = vshrl.u32 %v3627, 7
    %v3629 = vsub.s32 0, %v3628
    %v3630 = vrot.slane %v3617, %v3629
    %v3631 = vlaneseq
    %v3632 = vshrl.u32 %v3631, 7
    %v3633 = vsub.s32 0, %v3632
    %v3634 = vrot.slane %v3618, %v3633
    %v3637 = vsel %vm3623, %v3630, %v3502
    %v3638 = vsel %vm3624, %v3630, %v3503
    %v3639 = vsel %vm3625, %v3630, %v3504
    %v3640 = vsel %vm3626, %v3630, %v3505
    %v3641 = vsel %vm3623, %v3634, %v3506
    %v3642 = vsel %vm3624, %v3634, %v3507
    %v3643 = vsel %vm3625, %v3634, %v3508
    %v3644 = vsel %vm3626, %v3634, %v3509
    %v3645 = vpack.c.bf16 %v3588, %v3588
    %v3647 = vrot.slane %v3645, 3
    %3648 = vrot.lane.b32.xlu0 %v3647, 32
    %v3649 = vpop.permute.xlu0 %3648
    %v3651 = vsel %vm378, %v3649, 0
    %3653 = vmatprep.subr.bf16.mxu0 0
    %3654 = vmatpush1.bf16.msra.mxu0 %v469
    %3655 = vmatprep.subr.bf16.mxu0 0
    %3656 = vmatpush1.bf16.msra.mxu0 %v470
    %3657 = vmatprep.subr.bf16.mxu0 0
    %3658 = vmatpush1.bf16.msra.mxu0 0
    %3659 = vmatprep.subr.bf16.mxu0 0
    %3660 = vmatpush1.bf16.msra.mxu0 0
    %3661 = vmatprep.subr.bf16.mxu0 0
    %3662 = vmatpush1.bf16.msra.mxu0 0
    %3663 = vmatprep.subr.bf16.mxu0 0
    %3664 = vmatpush1.bf16.msra.mxu0 0
    %3665 = vmatprep.subr.bf16.mxu0 0
    %3666 = vmatpush1.bf16.msra.mxu0 0
    %3667 = vmatprep.subr.bf16.mxu0 0
    %3668 = vmatpush1.bf16.msra.mxu0 0
    %3669 = vmatprep.subr.bf16.mxu0 0
    %3670 = vmatpush1.bf16.msra.mxu0 0
    %3671 = vmatprep.subr.bf16.mxu0 0
    %3672 = vmatpush1.bf16.msra.mxu0 0
    %3673 = vmatprep.subr.bf16.mxu0 0
    %3674 = vmatpush1.bf16.msra.mxu0 0
    %3675 = vmatprep.subr.bf16.mxu0 0
    %3676 = vmatpush1.bf16.msra.mxu0 0
    %3677 = vmatprep.subr.bf16.mxu0 0
    %3678 = vmatpush1.bf16.msra.mxu0 0
    %3679 = vmatprep.subr.bf16.mxu0 0
    %3680 = vmatpush1.bf16.msra.mxu0 0
    %3681 = vmatprep.subr.bf16.mxu0 0
    %3682 = vmatpush1.bf16.msra.mxu0 0
    %3683 = vmatprep.subr.bf16.mxu0 0
    %3684 = vmatpush1.bf16.msra.mxu0 0
    %3685 = vmatprep.mubr.bf16.mxu0 0
    %3686 = vmatmul.mubr.bf16.gmra.mrb[0].mxu0 %v3651
    %v3687 = vpop.f32.mrb[0].mxu0
    %v3688 = vadd.f32 0.0, %v3687
    %v3689 = vpop.f32.mrb[0].mxu0
    %v3690 = vpop.f32.mrb[0].mxu0
    %v3691 = vpop.f32.mrb[0].mxu0
    %3692 = vdwg.mxu0
    %v3693 = vadd.f32 %v450, %v3688
    %v3694 = vxor.u32 %v3693, 2147483648
    %v3695 = vmul.f32 %v3694, 1.442695
    %v3696 = vpow.pop %v3695
    %v3697 = vadd.f32 %v3696, 1.0
    %v3698 = vrcp.pop %v3697
    %v3699 = vmul.f32 1.0, %v3698
    %v3700 = vtanh.pop %v3693
    %v3702 = vrot.slane %v3582, 6
    %v3704 = vmul.f32 %v3699, %v3702
    %3706 = vrot.lane.b32.xlu0 %v3700, 64
    %v3707 = vpop.permute.xlu0 %3706
    %v3709 = vmul.f32 %v3699, %v3707
    %3711 = vrot.lane.b32.xlu0 %v3709, 32
    %v3712 = vpop.permute.xlu0 %3711
    %v3714 = vadd.f32 %v3704, %v3712
    %v3715 = vtanh.pop %v3714
    %3717 = vrot.lane.b32.xlu0 %v3715, 64
    %v3718 = vpop.permute.xlu0 %3717
    %v3720 = vmul.f32 %v3699, %v3718
    %vm3721 = vcmp.eq.s32.totalorder %v457, 24
    %vm3722 = vcmp.eq.s32.totalorder %v458, 24
    %vm3723 = vcmp.eq.s32.totalorder %v459, 24
    %vm3724 = vcmp.eq.s32.totalorder %v460, 24
    %v3727 = vunpack.c.l.s4 1966171168
    %v3728 = vunpack.c.0.s8 %v3727
    %v3729 = vlaneseq
    %v3730 = vshrl.u32 %v3729, 7
    %v3731 = vsub.s32 %v3728, %v3730
    %v3732 = vrot.slane %v3720, %v3731
    %v3733 = vcombine.high %v3732, %v3732
    %v3735 = vunpack.c.l.s4 1966171168
    %v3736 = vunpack.c.0.s8 %v3735
    %v3737 = vlaneseq
    %v3738 = vshrl.u32 %v3737, 7
    %v3739 = vsub.s32 %v3736, %v3738
    %v3740 = vrot.slane %v3732, %v3739
    %v3742 = vunpack.c.l.s4 1966171168
    %v3743 = vunpack.c.0.s8 %v3742
    %v3744 = vlaneseq
    %v3745 = vshrl.u32 %v3744, 7
    %v3746 = vsub.s32 %v3743, %v3745
    %v3747 = vrot.slane %v3733, %v3746
    %v3748 = vsel %vm3721, 1, 0
    %v3749 = vsel %vm3722, 1, 0
    %v3750 = vsel %vm3723, 1, 0
    %v3751 = vsel %vm3724, 1, 0
    %vm3752 = vcmp.eq.s32.totalorder %v3748, 1
    %vm3753 = vcmp.eq.s32.totalorder %v3749, 1
    %vm3754 = vcmp.eq.s32.totalorder %v3750, 1
    %vm3755 = vcmp.eq.s32.totalorder %v3751, 1
    %v3756 = vlaneseq
    %v3757 = vshrl.u32 %v3756, 7
    %v3758 = vsub.s32 0, %v3757
    %v3759 = vrot.slane %v3740, %v3758
    %v3760 = vlaneseq
    %v3761 = vshrl.u32 %v3760, 7
    %v3762 = vsub.s32 0, %v3761
    %v3763 = vrot.slane %v3747, %v3762
    %v3766 = vsel %vm3752, %v3759, %v3637
    %v3767 = vsel %vm3753, %v3759, %v3638
    %v3768 = vsel %vm3754, %v3759, %v3639
    %v3769 = vsel %vm3755, %v3759, %v3640
    %v3770 = vsel %vm3752, %v3763, %v3641
    %v3771 = vsel %vm3753, %v3763, %v3642
    %v3772 = vsel %vm3754, %v3763, %v3643
    %v3773 = vsel %vm3755, %v3763, %v3644
    %v3774 = vpack.c.bf16 %v3720, %v3720
    %3776 = vrot.lane.b32.xlu0 %v3774, 32
    %v3777 = vpop.permute.xlu0 %3776
    %v3779 = vsel %vm378, %v3777, 0
    %3781 = vmatprep.subr.bf16.mxu0 0
    %3782 = vmatpush1.bf16.msra.mxu0 %v469
    %3783 = vmatprep.subr.bf16.mxu0 0
    %3784 = vmatpush1.bf16.msra.mxu0 %v470
    %3785 = vmatprep.subr.bf16.mxu0 0
    %3786 = vmatpush1.bf16.msra.mxu0 0
    %3787 = vmatprep.subr.bf16.mxu0 0
    %3788 = vmatpush1.bf16.msra.mxu0 0
    %3789 = vmatprep.subr.bf16.mxu0 0
    %3790 = vmatpush1.bf16.msra.mxu0 0
    %3791 = vmatprep.subr.bf16.mxu0 0
    %3792 = vmatpush1.bf16.msra.mxu0 0
    %3793 = vmatprep.subr.bf16.mxu0 0
    %3794 = vmatpush1.bf16.msra.mxu0 0
    %3795 = vmatprep.subr.bf16.mxu0 0
    %3796 = vmatpush1.bf16.msra.mxu0 0
    %3797 = vmatprep.subr.bf16.mxu0 0
    %3798 = vmatpush1.bf16.msra.mxu0 0
    %3799 = vmatprep.subr.bf16.mxu0 0
    %3800 = vmatpush1.bf16.msra.mxu0 0
    %3801 = vmatprep.subr.bf16.mxu0 0
    %3802 = vmatpush1.bf16.msra.mxu0 0
    %3803 = vmatprep.subr.bf16.mxu0 0
    %3804 = vmatpush1.bf16.msra.mxu0 0
    %3805 = vmatprep.subr.bf16.mxu0 0
    %3806 = vmatpush1.bf16.msra.mxu0 0
    %3807 = vmatprep.subr.bf16.mxu0 0
    %3808 = vmatpush1.bf16.msra.mxu0 0
    %3809 = vmatprep.subr.bf16.mxu0 0
    %3810 = vmatpush1.bf16.msra.mxu0 0
    %3811 = vmatprep.subr.bf16.mxu0 0
    %3812 = vmatpush1.bf16.msra.mxu0 0
    %3813 = vmatprep.mubr.bf16.mxu0 0
    %3814 = vmatmul.mubr.bf16.gmra.mrb[0].mxu0 %v3779
    %v3815 = vpop.f32.mrb[0].mxu0
    %v3816 = vadd.f32 0.0, %v3815
    %v3817 = vpop.f32.mrb[0].mxu0
    %v3818 = vpop.f32.mrb[0].mxu0
    %v3819 = vpop.f32.mrb[0].mxu0
    %3820 = vdwg.mxu0
    %v3822 = vrot.slane %v3816, 6
    %v3824 = vadd.f32 %v450, %v3822
    %v3825 = vxor.u32 %v3824, 2147483648
    %v3826 = vmul.f32 %v3825, 1.442695
    %v3827 = vpow.pop %v3826
    %v3828 = vadd.f32 %v3827, 1.0
    %v3829 = vrcp.pop %v3828
    %v3830 = vmul.f32 1.0, %v3829
    %v3831 = vtanh.pop %v3824
    %v3833 = vrot.slane %v3714, 6
    %v3835 = vmul.f32 %v3830, %v3833
    %3837 = vrot.lane.b32.xlu0 %v3831, 64
    %v3838 = vpop.permute.xlu0 %3837
    %v3840 = vmul.f32 %v3830, %v3838
    %3842 = vrot.lane.b32.xlu0 %v3840, 32
    %v3843 = vpop.permute.xlu0 %3842
    %v3845 = vadd.f32 %v3835, %v3843
    %v3846 = vtanh.pop %v3845
    %3848 = vrot.lane.b32.xlu0 %v3846, 64
    %v3849 = vpop.permute.xlu0 %3848
    %v3851 = vmul.f32 %v3830, %v3849
    %vm3852 = vcmp.eq.s32.totalorder %v457, 25
    %vm3853 = vcmp.eq.s32.totalorder %v458, 25
    %vm3854 = vcmp.eq.s32.totalorder %v459, 25
    %vm3855 = vcmp.eq.s32.totalorder %v460, 25
    %v3858 = vunpack.c.l.s4 1966171168
    %v3859 = vunpack.c.0.s8 %v3858
    %v3860 = vlaneseq
    %v3861 = vshrl.u32 %v3860, 7
    %v3862 = vsub.s32 %v3859, %v3861
    %v3863 = vrot.slane %v3851, %v3862
    %v3864 = vcombine.high %v3863, %v3863
    %v3866 = vunpack.c.l.s4 1966171168
    %v3867 = vunpack.c.0.s8 %v3866
    %v3868 = vlaneseq
    %v3869 = vshrl.u32 %v3868, 7
    %v3870 = vsub.s32 %v3867, %v3869
    %v3871 = vrot.slane %v3863, %v3870
    %v3873 = vunpack.c.l.s4 1966171168
    %v3874 = vunpack.c.0.s8 %v3873
    %v3875 = vlaneseq
    %v3876 = vshrl.u32 %v3875, 7
    %v3877 = vsub.s32 %v3874, %v3876
    %v3878 = vrot.slane %v3864, %v3877
    %v3879 = vcombine.high %v3871, %v3871
    %v3880 = vcombine.high %v3878, %v3878
    %v3881 = vsel %vm3852, 1, 0
    %v3882 = vsel %vm3853, 1, 0
    %v3883 = vsel %vm3854, 1, 0
    %v3884 = vsel %vm3855, 1, 0
    %vm3885 = vcmp.eq.s32.totalorder %v3881, 1
    %vm3886 = vcmp.eq.s32.totalorder %v3882, 1
    %vm3887 = vcmp.eq.s32.totalorder %v3883, 1
    %vm3888 = vcmp.eq.s32.totalorder %v3884, 1
    %v3889 = vlaneseq
    %v3890 = vshrl.u32 %v3889, 7
    %v3891 = vsub.s32 0, %v3890
    %v3892 = vrot.slane %v3879, %v3891
    %v3893 = vlaneseq
    %v3894 = vshrl.u32 %v3893, 7
    %v3895 = vsub.s32 0, %v3894
    %v3896 = vrot.slane %v3880, %v3895
    %v3899 = vsel %vm3885, %v3892, %v3766
    %v3900 = vsel %vm3886, %v3892, %v3767
    %v3901 = vsel %vm3887, %v3892, %v3768
    %v3902 = vsel %vm3888, %v3892, %v3769
    %v3903 = vsel %vm3885, %v3896, %v3770
    %v3904 = vsel %vm3886, %v3896, %v3771
    %v3905 = vsel %vm3887, %v3896, %v3772
    %v3906 = vsel %vm3888, %v3896, %v3773
    %v3907 = vpack.c.bf16 %v3851, %v3851
    %v3909 = vrot.slane %v3907, 1
    %3910 = vrot.lane.b32.xlu0 %v3909, 32
    %v3911 = vpop.permute.xlu0 %3910
    %v3913 = vsel %vm378, %v3911, 0
    %3915 = vmatprep.subr.bf16.mxu0 0
    %3916 = vmatpush1.bf16.msra.mxu0 %v469
    %3917 = vmatprep.subr.bf16.mxu0 0
    %3918 = vmatpush1.bf16.msra.mxu0 %v470
    %3919 = vmatprep.subr.bf16.mxu0 0
    %3920 = vmatpush1.bf16.msra.mxu0 0
    %3921 = vmatprep.subr.bf16.mxu0 0
    %3922 = vmatpush1.bf16.msra.mxu0 0
    %3923 = vmatprep.subr.bf16.mxu0 0
    %3924 = vmatpush1.bf16.msra.mxu0 0
    %3925 = vmatprep.subr.bf16.mxu0 0
    %3926 = vmatpush1.bf16.msra.mxu0 0
    %3927 = vmatprep.subr.bf16.mxu0 0
    %3928 = vmatpush1.bf16.msra.mxu0 0
    %3929 = vmatprep.subr.bf16.mxu0 0
    %3930 = vmatpush1.bf16.msra.mxu0 0
    %3931 = vmatprep.subr.bf16.mxu0 0
    %3932 = vmatpush1.bf16.msra.mxu0 0
    %3933 = vmatprep.subr.bf16.mxu0 0
    %3934 = vmatpush1.bf16.msra.mxu0 0
    %3935 = vmatprep.subr.bf16.mxu0 0
    %3936 = vmatpush1.bf16.msra.mxu0 0
    %3937 = vmatprep.subr.bf16.mxu0 0
    %3938 = vmatpush1.bf16.msra.mxu0 0
    %3939 = vmatprep.subr.bf16.mxu0 0
    %3940 = vmatpush1.bf16.msra.mxu0 0
    %3941 = vmatprep.subr.bf16.mxu0 0
    %3942 = vmatpush1.bf16.msra.mxu0 0
    %3943 = vmatprep.subr.bf16.mxu0 0
    %3944 = vmatpush1.bf16.msra.mxu0 0
    %3945 = vmatprep.subr.bf16.mxu0 0
    %3946 = vmatpush1.bf16.msra.mxu0 0
    %3947 = vmatprep.mubr.bf16.mxu0 0
    %3948 = vmatmul.mubr.bf16.gmra.mrb[0].mxu0 %v3913
    %v3949 = vpop.f32.mrb[0].mxu0
    %v3950 = vadd.f32 0.0, %v3949
    %v3951 = vpop.f32.mrb[0].mxu0
    %v3952 = vpop.f32.mrb[0].mxu0
    %v3953 = vpop.f32.mrb[0].mxu0
    %3954 = vdwg.mxu0
    %v3956 = vrot.slane %v3950, 4
    %v3958 = vadd.f32 %v450, %v3956
    %v3959 = vxor.u32 %v3958, 2147483648
    %v3960 = vmul.f32 %v3959, 1.442695
    %v3961 = vpow.pop %v3960
    %v3962 = vadd.f32 %v3961, 1.0
    %v3963 = vrcp.pop %v3962
    %v3964 = vmul.f32 1.0, %v3963
    %v3965 = vtanh.pop %v3958
    %v3967 = vrot.slane %v3845, 6
    %v3969 = vmul.f32 %v3964, %v3967
    %3971 = vrot.lane.b32.xlu0 %v3965, 64
    %v3972 = vpop.permute.xlu0 %3971
    %v3974 = vmul.f32 %v3964, %v3972
    %3976 = vrot.lane.b32.xlu0 %v3974, 32
    %v3977 = vpop.permute.xlu0 %3976
    %v3979 = vadd.f32 %v3969, %v3977
    %v3980 = vtanh.pop %v3979
    %3982 = vrot.lane.b32.xlu0 %v3980, 64
    %v3983 = vpop.permute.xlu0 %3982
    %v3985 = vmul.f32 %v3964, %v3983
    %vm3986 = vcmp.eq.s32.totalorder %v457, 26
    %vm3987 = vcmp.eq.s32.totalorder %v458, 26
    %vm3988 = vcmp.eq.s32.totalorder %v459, 26
    %vm3989 = vcmp.eq.s32.totalorder %v460, 26
    %v3991 = vcombine.high %v3985, %v3985
    %v3993 = vunpack.c.l.s4 1966171168
    %v3994 = vunpack.c.0.s8 %v3993
    %v3995 = vlaneseq
    %v3996 = vshrl.u32 %v3995, 7
    %v3997 = vsub.s32 %v3994, %v3996
    %v3998 = vrot.slane %v3991, %v3997
    %v3999 = vcombine.high %v3998, %v3998
    %v4001 = vunpack.c.l.s4 1966171168
    %v4002 = vunpack.c.0.s8 %v4001
    %v4003 = vlaneseq
    %v4004 = vshrl.u32 %v4003, 7
    %v4005 = vsub.s32 %v4002, %v4004
    %v4006 = vrot.slane %v3998, %v4005
    %v4008 = vunpack.c.l.s4 1966171168
    %v4009 = vunpack.c.0.s8 %v4008
    %v4010 = vlaneseq
    %v4011 = vshrl.u32 %v4010, 7
    %v4012 = vsub.s32 %v4009, %v4011
    %v4013 = vrot.slane %v3999, %v4012
    %v4014 = vsel %vm3986, 1, 0
    %v4015 = vsel %vm3987, 1, 0
    %v4016 = vsel %vm3988, 1, 0
    %v4017 = vsel %vm3989, 1, 0
    %vm4018 = vcmp.eq.s32.totalorder %v4014, 1
    %vm4019 = vcmp.eq.s32.totalorder %v4015, 1
    %vm4020 = vcmp.eq.s32.totalorder %v4016, 1
    %vm4021 = vcmp.eq.s32.totalorder %v4017, 1
    %v4022 = vlaneseq
    %v4023 = vshrl.u32 %v4022, 7
    %v4024 = vsub.s32 0, %v4023
    %v4025 = vrot.slane %v4006, %v4024
    %v4026 = vlaneseq
    %v4027 = vshrl.u32 %v4026, 7
    %v4028 = vsub.s32 0, %v4027
    %v4029 = vrot.slane %v4013, %v4028
    %v4032 = vsel %vm4018, %v4025, %v3899
    %v4033 = vsel %vm4019, %v4025, %v3900
    %v4034 = vsel %vm4020, %v4025, %v3901
    %v4035 = vsel %vm4021, %v4025, %v3902
    %v4036 = vsel %vm4018, %v4029, %v3903
    %v4037 = vsel %vm4019, %v4029, %v3904
    %v4038 = vsel %vm4020, %v4029, %v3905
    %v4039 = vsel %vm4021, %v4029, %v3906
    %v4040 = vpack.c.bf16 %v3985, %v3985
    %v4042 = vrot.slane %v4040, 2
    %4043 = vrot.lane.b32.xlu0 %v4042, 32
    %v4044 = vpop.permute.xlu0 %4043
    %v4046 = vsel %vm378, %v4044, 0
    %4048 = vmatprep.subr.bf16.mxu0 0
    %4049 = vmatpush1.bf16.msra.mxu0 %v469
    %4050 = vmatprep.subr.bf16.mxu0 0
    %4051 = vmatpush1.bf16.msra.mxu0 %v470
    %4052 = vmatprep.subr.bf16.mxu0 0
    %4053 = vmatpush1.bf16.msra.mxu0 0
    %4054 = vmatprep.subr.bf16.mxu0 0
    %4055 = vmatpush1.bf16.msra.mxu0 0
    %4056 = vmatprep.subr.bf16.mxu0 0
    %4057 = vmatpush1.bf16.msra.mxu0 0
    %4058 = vmatprep.subr.bf16.mxu0 0
    %4059 = vmatpush1.bf16.msra.mxu0 0
    %4060 = vmatprep.subr.bf16.mxu0 0
    %4061 = vmatpush1.bf16.msra.mxu0 0
    %4062 = vmatprep.subr.bf16.mxu0 0
    %4063 = vmatpush1.bf16.msra.mxu0 0
    %4064 = vmatprep.subr.bf16.mxu0 0
    %4065 = vmatpush1.bf16.msra.mxu0 0
    %4066 = vmatprep.subr.bf16.mxu0 0
    %4067 = vmatpush1.bf16.msra.mxu0 0
    %4068 = vmatprep.subr.bf16.mxu0 0
    %4069 = vmatpush1.bf16.msra.mxu0 0
    %4070 = vmatprep.subr.bf16.mxu0 0
    %4071 = vmatpush1.bf16.msra.mxu0 0
    %4072 = vmatprep.subr.bf16.mxu0 0
    %4073 = vmatpush1.bf16.msra.mxu0 0
    %4074 = vmatprep.subr.bf16.mxu0 0
    %4075 = vmatpush1.bf16.msra.mxu0 0
    %4076 = vmatprep.subr.bf16.mxu0 0
    %4077 = vmatpush1.bf16.msra.mxu0 0
    %4078 = vmatprep.subr.bf16.mxu0 0
    %4079 = vmatpush1.bf16.msra.mxu0 0
    %4080 = vmatprep.mubr.bf16.mxu0 0
    %4081 = vmatmul.mubr.bf16.gmra.mrb[0].mxu0 %v4046
    %v4082 = vpop.f32.mrb[0].mxu0
    %v4083 = vadd.f32 0.0, %v4082
    %v4084 = vpop.f32.mrb[0].mxu0
    %v4085 = vpop.f32.mrb[0].mxu0
    %v4086 = vpop.f32.mrb[0].mxu0
    %4087 = vdwg.mxu0
    %v4089 = vrot.slane %v4083, 2
    %v4091 = vadd.f32 %v450, %v4089
    %v4092 = vxor.u32 %v4091, 2147483648
    %v4093 = vmul.f32 %v4092, 1.442695
    %v4094 = vpow.pop %v4093
    %v4095 = vadd.f32 %v4094, 1.0
    %v4096 = vrcp.pop %v4095
    %v4097 = vmul.f32 1.0, %v4096
    %v4098 = vtanh.pop %v4091
    %v4100 = vrot.slane %v3979, 6
    %v4102 = vmul.f32 %v4097, %v4100
    %4104 = vrot.lane.b32.xlu0 %v4098, 64
    %v4105 = vpop.permute.xlu0 %4104
    %v4107 = vmul.f32 %v4097, %v4105
    %4109 = vrot.lane.b32.xlu0 %v4107, 32
    %v4110 = vpop.permute.xlu0 %4109
    %v4112 = vadd.f32 %v4102, %v4110
    %v4113 = vtanh.pop %v4112
    %4115 = vrot.lane.b32.xlu0 %v4113, 64
    %v4116 = vpop.permute.xlu0 %4115
    %v4118 = vmul.f32 %v4097, %v4116
    %vm4119 = vcmp.eq.s32.totalorder %v457, 27
    %vm4120 = vcmp.eq.s32.totalorder %v458, 27
    %vm4121 = vcmp.eq.s32.totalorder %v459, 27
    %vm4122 = vcmp.eq.s32.totalorder %v460, 27
    %v4124 = vcombine.high %v4118, %v4118
    %v4126 = vunpack.c.l.s4 1966171168
    %v4127 = vunpack.c.0.s8 %v4126
    %v4128 = vlaneseq
    %v4129 = vshrl.u32 %v4128, 7
    %v4130 = vsub.s32 %v4127, %v4129
    %v4131 = vrot.slane %v4124, %v4130
    %v4132 = vcombine.high %v4131, %v4131
    %v4134 = vunpack.c.l.s4 1966171168
    %v4135 = vunpack.c.0.s8 %v4134
    %v4136 = vlaneseq
    %v4137 = vshrl.u32 %v4136, 7
    %v4138 = vsub.s32 %v4135, %v4137
    %v4139 = vrot.slane %v4131, %v4138
    %v4141 = vunpack.c.l.s4 1966171168
    %v4142 = vunpack.c.0.s8 %v4141
    %v4143 = vlaneseq
    %v4144 = vshrl.u32 %v4143, 7
    %v4145 = vsub.s32 %v4142, %v4144
    %v4146 = vrot.slane %v4132, %v4145
    %v4147 = vcombine.high %v4139, %v4139
    %v4148 = vcombine.high %v4146, %v4146
    %v4149 = vsel %vm4119, 1, 0
    %v4150 = vsel %vm4120, 1, 0
    %v4151 = vsel %vm4121, 1, 0
    %v4152 = vsel %vm4122, 1, 0
    %vm4153 = vcmp.eq.s32.totalorder %v4149, 1
    %vm4154 = vcmp.eq.s32.totalorder %v4150, 1
    %vm4155 = vcmp.eq.s32.totalorder %v4151, 1
    %vm4156 = vcmp.eq.s32.totalorder %v4152, 1
    %v4157 = vlaneseq
    %v4158 = vshrl.u32 %v4157, 7
    %v4159 = vsub.s32 0, %v4158
    %v4160 = vrot.slane %v4147, %v4159
    %v4161 = vlaneseq
    %v4162 = vshrl.u32 %v4161, 7
    %v4163 = vsub.s32 0, %v4162
    %v4164 = vrot.slane %v4148, %v4163
    %v4167 = vsel %vm4153, %v4160, %v4032
    %v4168 = vsel %vm4154, %v4160, %v4033
    %v4169 = vsel %vm4155, %v4160, %v4034
    %v4170 = vsel %vm4156, %v4160, %v4035
    %v4171 = vsel %vm4153, %v4164, %v4036
    %v4172 = vsel %vm4154, %v4164, %v4037
    %v4173 = vsel %vm4155, %v4164, %v4038
    %v4174 = vsel %vm4156, %v4164, %v4039
    %v4175 = vpack.c.bf16 %v4118, %v4118
    %v4177 = vrot.slane %v4175, 3
    %4178 = vrot.lane.b32.xlu0 %v4177, 32
    %v4179 = vpop.permute.xlu0 %4178
    %v4181 = vsel %vm378, %v4179, 0
    %4183 = vmatprep.subr.bf16.mxu0 0
    %4184 = vmatpush1.bf16.msra.mxu0 %v469
    %4185 = vmatprep.subr.bf16.mxu0 0
    %4186 = vmatpush1.bf16.msra.mxu0 %v470
    %4187 = vmatprep.subr.bf16.mxu0 0
    %4188 = vmatpush1.bf16.msra.mxu0 0
    %4189 = vmatprep.subr.bf16.mxu0 0
    %4190 = vmatpush1.bf16.msra.mxu0 0
    %4191 = vmatprep.subr.bf16.mxu0 0
    %4192 = vmatpush1.bf16.msra.mxu0 0
    %4193 = vmatprep.subr.bf16.mxu0 0
    %4194 = vmatpush1.bf16.msra.mxu0 0
    %4195 = vmatprep.subr.bf16.mxu0 0
    %4196 = vmatpush1.bf16.msra.mxu0 0
    %4197 = vmatprep.subr.bf16.mxu0 0
    %4198 = vmatpush1.bf16.msra.mxu0 0
    %4199 = vmatprep.subr.bf16.mxu0 0
    %4200 = vmatpush1.bf16.msra.mxu0 0
    %4201 = vmatprep.subr.bf16.mxu0 0
    %4202 = vmatpush1.bf16.msra.mxu0 0
    %4203 = vmatprep.subr.bf16.mxu0 0
    %4204 = vmatpush1.bf16.msra.mxu0 0
    %4205 = vmatprep.subr.bf16.mxu0 0
    %4206 = vmatpush1.bf16.msra.mxu0 0
    %4207 = vmatprep.subr.bf16.mxu0 0
    %4208 = vmatpush1.bf16.msra.mxu0 0
    %4209 = vmatprep.subr.bf16.mxu0 0
    %4210 = vmatpush1.bf16.msra.mxu0 0
    %4211 = vmatprep.subr.bf16.mxu0 0
    %4212 = vmatpush1.bf16.msra.mxu0 0
    %4213 = vmatprep.subr.bf16.mxu0 0
    %4214 = vmatpush1.bf16.msra.mxu0 0
    %4215 = vmatprep.mubr.bf16.mxu0 0
    %4216 = vmatmul.mubr.bf16.gmra.mrb[0].mxu0 %v4181
    %v4217 = vpop.f32.mrb[0].mxu0
    %v4218 = vadd.f32 0.0, %v4217
    %v4219 = vpop.f32.mrb[0].mxu0
    %v4220 = vpop.f32.mrb[0].mxu0
    %v4221 = vpop.f32.mrb[0].mxu0
    %4222 = vdwg.mxu0
    %v4223 = vadd.f32 %v453, %v4218
    %v4224 = vxor.u32 %v4223, 2147483648
    %v4225 = vmul.f32 %v4224, 1.442695
    %v4226 = vpow.pop %v4225
    %v4227 = vadd.f32 %v4226, 1.0
    %v4228 = vrcp.pop %v4227
    %v4229 = vmul.f32 1.0, %v4228
    %v4230 = vtanh.pop %v4223
    %v4232 = vrot.slane %v4112, 6
    %v4234 = vmul.f32 %v4229, %v4232
    %4236 = vrot.lane.b32.xlu0 %v4230, 64
    %v4237 = vpop.permute.xlu0 %4236
    %v4239 = vmul.f32 %v4229, %v4237
    %4241 = vrot.lane.b32.xlu0 %v4239, 32
    %v4242 = vpop.permute.xlu0 %4241
    %v4244 = vadd.f32 %v4234, %v4242
    %v4245 = vtanh.pop %v4244
    %4247 = vrot.lane.b32.xlu0 %v4245, 64
    %v4248 = vpop.permute.xlu0 %4247
    %v4250 = vmul.f32 %v4229, %v4248
    %vm4251 = vcmp.eq.s32.totalorder %v457, 28
    %vm4252 = vcmp.eq.s32.totalorder %v458, 28
    %vm4253 = vcmp.eq.s32.totalorder %v459, 28
    %vm4254 = vcmp.eq.s32.totalorder %v460, 28
    %v4257 = vunpack.c.l.s4 1966171168
    %v4258 = vunpack.c.0.s8 %v4257
    %v4259 = vlaneseq
    %v4260 = vshrl.u32 %v4259, 7
    %v4261 = vsub.s32 %v4258, %v4260
    %v4262 = vrot.slane %v4250, %v4261
    %v4263 = vcombine.high %v4262, %v4262
    %v4265 = vunpack.c.l.s4 1966171168
    %v4266 = vunpack.c.0.s8 %v4265
    %v4267 = vlaneseq
    %v4268 = vshrl.u32 %v4267, 7
    %v4269 = vsub.s32 %v4266, %v4268
    %v4270 = vrot.slane %v4262, %v4269
    %v4272 = vunpack.c.l.s4 1966171168
    %v4273 = vunpack.c.0.s8 %v4272
    %v4274 = vlaneseq
    %v4275 = vshrl.u32 %v4274, 7
    %v4276 = vsub.s32 %v4273, %v4275
    %v4277 = vrot.slane %v4263, %v4276
    %v4278 = vsel %vm4251, 1, 0
    %v4279 = vsel %vm4252, 1, 0
    %v4280 = vsel %vm4253, 1, 0
    %v4281 = vsel %vm4254, 1, 0
    %vm4282 = vcmp.eq.s32.totalorder %v4278, 1
    %vm4283 = vcmp.eq.s32.totalorder %v4279, 1
    %vm4284 = vcmp.eq.s32.totalorder %v4280, 1
    %vm4285 = vcmp.eq.s32.totalorder %v4281, 1
    %v4286 = vlaneseq
    %v4287 = vshrl.u32 %v4286, 7
    %v4288 = vsub.s32 0, %v4287
    %v4289 = vrot.slane %v4270, %v4288
    %v4290 = vlaneseq
    %v4291 = vshrl.u32 %v4290, 7
    %v4292 = vsub.s32 0, %v4291
    %v4293 = vrot.slane %v4277, %v4292
    %v4296 = vsel %vm4282, %v4289, %v4167
    %v4297 = vsel %vm4283, %v4289, %v4168
    %v4298 = vsel %vm4284, %v4289, %v4169
    %v4299 = vsel %vm4285, %v4289, %v4170
    %v4300 = vsel %vm4282, %v4293, %v4171
    %v4301 = vsel %vm4283, %v4293, %v4172
    %v4302 = vsel %vm4284, %v4293, %v4173
    %v4303 = vsel %vm4285, %v4293, %v4174
    %v4304 = vpack.c.bf16 %v4250, %v4250
    %4306 = vrot.lane.b32.xlu0 %v4304, 32
    %v4307 = vpop.permute.xlu0 %4306
    %v4309 = vsel %vm378, %v4307, 0
    %4311 = vmatprep.subr.bf16.mxu0 0
    %4312 = vmatpush1.bf16.msra.mxu0 %v469
    %4313 = vmatprep.subr.bf16.mxu0 0
    %4314 = vmatpush1.bf16.msra.mxu0 %v470
    %4315 = vmatprep.subr.bf16.mxu0 0
    %4316 = vmatpush1.bf16.msra.mxu0 0
    %4317 = vmatprep.subr.bf16.mxu0 0
    %4318 = vmatpush1.bf16.msra.mxu0 0
    %4319 = vmatprep.subr.bf16.mxu0 0
    %4320 = vmatpush1.bf16.msra.mxu0 0
    %4321 = vmatprep.subr.bf16.mxu0 0
    %4322 = vmatpush1.bf16.msra.mxu0 0
    %4323 = vmatprep.subr.bf16.mxu0 0
    %4324 = vmatpush1.bf16.msra.mxu0 0
    %4325 = vmatprep.subr.bf16.mxu0 0
    %4326 = vmatpush1.bf16.msra.mxu0 0
    %4327 = vmatprep.subr.bf16.mxu0 0
    %4328 = vmatpush1.bf16.msra.mxu0 0
    %4329 = vmatprep.subr.bf16.mxu0 0
    %4330 = vmatpush1.bf16.msra.mxu0 0
    %4331 = vmatprep.subr.bf16.mxu0 0
    %4332 = vmatpush1.bf16.msra.mxu0 0
    %4333 = vmatprep.subr.bf16.mxu0 0
    %4334 = vmatpush1.bf16.msra.mxu0 0
    %4335 = vmatprep.subr.bf16.mxu0 0
    %4336 = vmatpush1.bf16.msra.mxu0 0
    %4337 = vmatprep.subr.bf16.mxu0 0
    %4338 = vmatpush1.bf16.msra.mxu0 0
    %4339 = vmatprep.subr.bf16.mxu0 0
    %4340 = vmatpush1.bf16.msra.mxu0 0
    %4341 = vmatprep.subr.bf16.mxu0 0
    %4342 = vmatpush1.bf16.msra.mxu0 0
    %4343 = vmatprep.mubr.bf16.mxu0 0
    %4344 = vmatmul.mubr.bf16.gmra.mrb[0].mxu0 %v4309
    %v4345 = vpop.f32.mrb[0].mxu0
    %v4346 = vadd.f32 0.0, %v4345
    %v4347 = vpop.f32.mrb[0].mxu0
    %v4348 = vpop.f32.mrb[0].mxu0
    %v4349 = vpop.f32.mrb[0].mxu0
    %4350 = vdwg.mxu0
    %v4352 = vrot.slane %v4346, 6
    %v4354 = vadd.f32 %v453, %v4352
    %v4355 = vxor.u32 %v4354, 2147483648
    %v4356 = vmul.f32 %v4355, 1.442695
    %v4357 = vpow.pop %v4356
    %v4358 = vadd.f32 %v4357, 1.0
    %v4359 = vrcp.pop %v4358
    %v4360 = vmul.f32 1.0, %v4359
    %v4361 = vtanh.pop %v4354
    %v4363 = vrot.slane %v4244, 6
    %v4365 = vmul.f32 %v4360, %v4363
    %4367 = vrot.lane.b32.xlu0 %v4361, 64
    %v4368 = vpop.permute.xlu0 %4367
    %v4370 = vmul.f32 %v4360, %v4368
    %4372 = vrot.lane.b32.xlu0 %v4370, 32
    %v4373 = vpop.permute.xlu0 %4372
    %v4375 = vadd.f32 %v4365, %v4373
    %v4376 = vtanh.pop %v4375
    %4378 = vrot.lane.b32.xlu0 %v4376, 64
    %v4379 = vpop.permute.xlu0 %4378
    %v4381 = vmul.f32 %v4360, %v4379
    %vm4382 = vcmp.eq.s32.totalorder %v457, 29
    %vm4383 = vcmp.eq.s32.totalorder %v458, 29
    %vm4384 = vcmp.eq.s32.totalorder %v459, 29
    %vm4385 = vcmp.eq.s32.totalorder %v460, 29
    %v4388 = vunpack.c.l.s4 1966171168
    %v4389 = vunpack.c.0.s8 %v4388
    %v4390 = vlaneseq
    %v4391 = vshrl.u32 %v4390, 7
    %v4392 = vsub.s32 %v4389, %v4391
    %v4393 = vrot.slane %v4381, %v4392
    %v4394 = vcombine.high %v4393, %v4393
    %v4396 = vunpack.c.l.s4 1966171168
    %v4397 = vunpack.c.0.s8 %v4396
    %v4398 = vlaneseq
    %v4399 = vshrl.u32 %v4398, 7
    %v4400 = vsub.s32 %v4397, %v4399
    %v4401 = vrot.slane %v4393, %v4400
    %v4403 = vunpack.c.l.s4 1966171168
    %v4404 = vunpack.c.0.s8 %v4403
    %v4405 = vlaneseq
    %v4406 = vshrl.u32 %v4405, 7
    %v4407 = vsub.s32 %v4404, %v4406
    %v4408 = vrot.slane %v4394, %v4407
    %v4409 = vcombine.high %v4401, %v4401
    %v4410 = vcombine.high %v4408, %v4408
    %v4411 = vsel %vm4382, 1, 0
    %v4412 = vsel %vm4383, 1, 0
    %v4413 = vsel %vm4384, 1, 0
    %v4414 = vsel %vm4385, 1, 0
    %vm4415 = vcmp.eq.s32.totalorder %v4411, 1
    %vm4416 = vcmp.eq.s32.totalorder %v4412, 1
    %vm4417 = vcmp.eq.s32.totalorder %v4413, 1
    %vm4418 = vcmp.eq.s32.totalorder %v4414, 1
    %v4419 = vlaneseq
    %v4420 = vshrl.u32 %v4419, 7
    %v4421 = vsub.s32 0, %v4420
    %v4422 = vrot.slane %v4409, %v4421
    %v4423 = vlaneseq
    %v4424 = vshrl.u32 %v4423, 7
    %v4425 = vsub.s32 0, %v4424
    %v4426 = vrot.slane %v4410, %v4425
    %v4429 = vsel %vm4415, %v4422, %v4296
    %v4430 = vsel %vm4416, %v4422, %v4297
    %v4431 = vsel %vm4417, %v4422, %v4298
    %v4432 = vsel %vm4418, %v4422, %v4299
    %v4433 = vsel %vm4415, %v4426, %v4300
    %v4434 = vsel %vm4416, %v4426, %v4301
    %v4435 = vsel %vm4417, %v4426, %v4302
    %v4436 = vsel %vm4418, %v4426, %v4303
    %v4437 = vpack.c.bf16 %v4381, %v4381
    %v4439 = vrot.slane %v4437, 1
    %4440 = vrot.lane.b32.xlu0 %v4439, 32
    %v4441 = vpop.permute.xlu0 %4440
    %v4443 = vsel %vm378, %v4441, 0
    %4445 = vmatprep.subr.bf16.mxu0 0
    %4446 = vmatpush1.bf16.msra.mxu0 %v469
    %4447 = vmatprep.subr.bf16.mxu0 0
    %4448 = vmatpush1.bf16.msra.mxu0 %v470
    %4449 = vmatprep.subr.bf16.mxu0 0
    %4450 = vmatpush1.bf16.msra.mxu0 0
    %4451 = vmatprep.subr.bf16.mxu0 0
    %4452 = vmatpush1.bf16.msra.mxu0 0
    %4453 = vmatprep.subr.bf16.mxu0 0
    %4454 = vmatpush1.bf16.msra.mxu0 0
    %4455 = vmatprep.subr.bf16.mxu0 0
    %4456 = vmatpush1.bf16.msra.mxu0 0
    %4457 = vmatprep.subr.bf16.mxu0 0
    %4458 = vmatpush1.bf16.msra.mxu0 0
    %4459 = vmatprep.subr.bf16.mxu0 0
    %4460 = vmatpush1.bf16.msra.mxu0 0
    %4461 = vmatprep.subr.bf16.mxu0 0
    %4462 = vmatpush1.bf16.msra.mxu0 0
    %4463 = vmatprep.subr.bf16.mxu0 0
    %4464 = vmatpush1.bf16.msra.mxu0 0
    %4465 = vmatprep.subr.bf16.mxu0 0
    %4466 = vmatpush1.bf16.msra.mxu0 0
    %4467 = vmatprep.subr.bf16.mxu0 0
    %4468 = vmatpush1.bf16.msra.mxu0 0
    %4469 = vmatprep.subr.bf16.mxu0 0
    %4470 = vmatpush1.bf16.msra.mxu0 0
    %4471 = vmatprep.subr.bf16.mxu0 0
    %4472 = vmatpush1.bf16.msra.mxu0 0
    %4473 = vmatprep.subr.bf16.mxu0 0
    %4474 = vmatpush1.bf16.msra.mxu0 0
    %4475 = vmatprep.subr.bf16.mxu0 0
    %4476 = vmatpush1.bf16.msra.mxu0 0
    %4477 = vmatprep.mubr.bf16.mxu0 0
    %4478 = vmatmul.mubr.bf16.gmra.mrb[0].mxu0 %v4443
    %v4479 = vpop.f32.mrb[0].mxu0
    %v4480 = vadd.f32 0.0, %v4479
    %v4481 = vpop.f32.mrb[0].mxu0
    %v4482 = vpop.f32.mrb[0].mxu0
    %v4483 = vpop.f32.mrb[0].mxu0
    %4484 = vdwg.mxu0
    %v4486 = vrot.slane %v4480, 4
    %v4488 = vadd.f32 %v453, %v4486
    %v4489 = vxor.u32 %v4488, 2147483648
    %v4490 = vmul.f32 %v4489, 1.442695
    %v4491 = vpow.pop %v4490
    %v4492 = vadd.f32 %v4491, 1.0
    %v4493 = vrcp.pop %v4492
    %v4494 = vmul.f32 1.0, %v4493
    %v4495 = vtanh.pop %v4488
    %v4497 = vrot.slane %v4375, 6
    %v4499 = vmul.f32 %v4494, %v4497
    %4501 = vrot.lane.b32.xlu0 %v4495, 64
    %v4502 = vpop.permute.xlu0 %4501
    %v4504 = vmul.f32 %v4494, %v4502
    %4506 = vrot.lane.b32.xlu0 %v4504, 32
    %v4507 = vpop.permute.xlu0 %4506
    %v4509 = vadd.f32 %v4499, %v4507
    %v4510 = vtanh.pop %v4509
    %4512 = vrot.lane.b32.xlu0 %v4510, 64
    %v4513 = vpop.permute.xlu0 %4512
    %v4515 = vmul.f32 %v4494, %v4513
    %vm4516 = vcmp.eq.s32.totalorder %v457, 30
    %vm4517 = vcmp.eq.s32.totalorder %v458, 30
    %vm4518 = vcmp.eq.s32.totalorder %v459, 30
    %vm4519 = vcmp.eq.s32.totalorder %v460, 30
    %v4521 = vcombine.high %v4515, %v4515
    %v4523 = vunpack.c.l.s4 1966171168
    %v4524 = vunpack.c.0.s8 %v4523
    %v4525 = vlaneseq
    %v4526 = vshrl.u32 %v4525, 7
    %v4527 = vsub.s32 %v4524, %v4526
    %v4528 = vrot.slane %v4521, %v4527
    %v4529 = vcombine.high %v4528, %v4528
    %v4531 = vunpack.c.l.s4 1966171168
    %v4532 = vunpack.c.0.s8 %v4531
    %v4533 = vlaneseq
    %v4534 = vshrl.u32 %v4533, 7
    %v4535 = vsub.s32 %v4532, %v4534
    %v4536 = vrot.slane %v4528, %v4535
    %v4538 = vunpack.c.l.s4 1966171168
    %v4539 = vunpack.c.0.s8 %v4538
    %v4540 = vlaneseq
    %v4541 = vshrl.u32 %v4540, 7
    %v4542 = vsub.s32 %v4539, %v4541
    %v4543 = vrot.slane %v4529, %v4542
    %v4544 = vsel %vm4516, 1, 0
    %v4545 = vsel %vm4517, 1, 0
    %v4546 = vsel %vm4518, 1, 0
    %v4547 = vsel %vm4519, 1, 0
    %vm4548 = vcmp.eq.s32.totalorder %v4544, 1
    %vm4549 = vcmp.eq.s32.totalorder %v4545, 1
    %vm4550 = vcmp.eq.s32.totalorder %v4546, 1
    %vm4551 = vcmp.eq.s32.totalorder %v4547, 1
    %v4552 = vlaneseq
    %v4553 = vshrl.u32 %v4552, 7
    %v4554 = vsub.s32 0, %v4553
    %v4555 = vrot.slane %v4536, %v4554
    %v4556 = vlaneseq
    %v4557 = vshrl.u32 %v4556, 7
    %v4558 = vsub.s32 0, %v4557
    %v4559 = vrot.slane %v4543, %v4558
    %v4562 = vsel %vm4548, %v4555, %v4429
    %v4563 = vsel %vm4549, %v4555, %v4430
    %v4564 = vsel %vm4550, %v4555, %v4431
    %v4565 = vsel %vm4551, %v4555, %v4432
    %v4566 = vsel %vm4548, %v4559, %v4433
    %v4567 = vsel %vm4549, %v4559, %v4434
    %v4568 = vsel %vm4550, %v4559, %v4435
    %v4569 = vsel %vm4551, %v4559, %v4436
    %v4570 = vpack.c.bf16 %v4515, %v4515
    %v4572 = vrot.slane %v4570, 2
    %4573 = vrot.lane.b32.xlu0 %v4572, 32
    %v4574 = vpop.permute.xlu0 %4573
    %v4576 = vsel %vm378, %v4574, 0
    %4578 = vmatprep.subr.bf16.mxu0 0
    %4579 = vmatpush1.bf16.msra.mxu0 %v469
    %4580 = vmatprep.subr.bf16.mxu0 0
    %4581 = vmatpush1.bf16.msra.mxu0 %v470
    %4582 = vmatprep.subr.bf16.mxu0 0
    %4583 = vmatpush1.bf16.msra.mxu0 0
    %4584 = vmatprep.subr.bf16.mxu0 0
    %4585 = vmatpush1.bf16.msra.mxu0 0
    %4586 = vmatprep.subr.bf16.mxu0 0
    %4587 = vmatpush1.bf16.msra.mxu0 0
    %4588 = vmatprep.subr.bf16.mxu0 0
    %4589 = vmatpush1.bf16.msra.mxu0 0
    %4590 = vmatprep.subr.bf16.mxu0 0
    %4591 = vmatpush1.bf16.msra.mxu0 0
    %4592 = vmatprep.subr.bf16.mxu0 0
    %4593 = vmatpush1.bf16.msra.mxu0 0
    %4594 = vmatprep.subr.bf16.mxu0 0
    %4595 = vmatpush1.bf16.msra.mxu0 0
    %4596 = vmatprep.subr.bf16.mxu0 0
    %4597 = vmatpush1.bf16.msra.mxu0 0
    %4598 = vmatprep.subr.bf16.mxu0 0
    %4599 = vmatpush1.bf16.msra.mxu0 0
    %4600 = vmatprep.subr.bf16.mxu0 0
    %4601 = vmatpush1.bf16.msra.mxu0 0
    %4602 = vmatprep.subr.bf16.mxu0 0
    %4603 = vmatpush1.bf16.msra.mxu0 0
    %4604 = vmatprep.subr.bf16.mxu0 0
    %4605 = vmatpush1.bf16.msra.mxu0 0
    %4606 = vmatprep.subr.bf16.mxu0 0
    %4607 = vmatpush1.bf16.msra.mxu0 0
    %4608 = vmatprep.subr.bf16.mxu0 0
    %4609 = vmatpush1.bf16.msra.mxu0 0
    %4610 = vmatprep.mubr.bf16.mxu0 0
    %4611 = vmatmul.mubr.bf16.gmra.mrb[0].mxu0 %v4576
    %v4612 = vpop.f32.mrb[0].mxu0
    %v4613 = vadd.f32 0.0, %v4612
    %v4614 = vpop.f32.mrb[0].mxu0
    %v4615 = vpop.f32.mrb[0].mxu0
    %v4616 = vpop.f32.mrb[0].mxu0
    %4617 = vdwg.mxu0
    %v4619 = vrot.slane %v4613, 2
    %v4621 = vadd.f32 %v453, %v4619
    %v4622 = vxor.u32 %v4621, 2147483648
    %v4623 = vmul.f32 %v4622, 1.442695
    %v4624 = vpow.pop %v4623
    %v4625 = vadd.f32 %v4624, 1.0
    %v4626 = vrcp.pop %v4625
    %v4627 = vmul.f32 1.0, %v4626
    %v4628 = vtanh.pop %v4621
    %v4630 = vrot.slane %v4509, 6
    %v4632 = vmul.f32 %v4627, %v4630
    %4634 = vrot.lane.b32.xlu0 %v4628, 64
    %v4635 = vpop.permute.xlu0 %4634
    %v4637 = vmul.f32 %v4627, %v4635
    %4639 = vrot.lane.b32.xlu0 %v4637, 32
    %v4640 = vpop.permute.xlu0 %4639
    %v4642 = vadd.f32 %v4632, %v4640
    %v4643 = vtanh.pop %v4642
    %4645 = vrot.lane.b32.xlu0 %v4643, 64
    %v4646 = vpop.permute.xlu0 %4645
    %v4648 = vmul.f32 %v4627, %v4646
    %vm4649 = vcmp.eq.s32.totalorder %v457, 31
    %vm4650 = vcmp.eq.s32.totalorder %v458, 31
    %vm4651 = vcmp.eq.s32.totalorder %v459, 31
    %vm4652 = vcmp.eq.s32.totalorder %v460, 31
    %v4654 = vcombine.high %v4648, %v4648
    %v4656 = vunpack.c.l.s4 1966171168
    %v4657 = vunpack.c.0.s8 %v4656
    %v4658 = vlaneseq
    %v4659 = vshrl.u32 %v4658, 7
    %v4660 = vsub.s32 %v4657, %v4659
    %v4661 = vrot.slane %v4654, %v4660
    %v4662 = vcombine.high %v4661, %v4661
    %v4664 = vunpack.c.l.s4 1966171168
    %v4665 = vunpack.c.0.s8 %v4664
    %v4666 = vlaneseq
    %v4667 = vshrl.u32 %v4666, 7
    %v4668 = vsub.s32 %v4665, %v4667
    %v4669 = vrot.slane %v4661, %v4668
    %v4671 = vunpack.c.l.s4 1966171168
    %v4672 = vunpack.c.0.s8 %v4671
    %v4673 = vlaneseq
    %v4674 = vshrl.u32 %v4673, 7
    %v4675 = vsub.s32 %v4672, %v4674
    %v4676 = vrot.slane %v4662, %v4675
    %v4677 = vcombine.high %v4669, %v4669
    %v4678 = vcombine.high %v4676, %v4676
    %v4679 = vsel %vm4649, 1, 0
    %v4680 = vsel %vm4650, 1, 0
    %v4681 = vsel %vm4651, 1, 0
    %v4682 = vsel %vm4652, 1, 0
    %vm4683 = vcmp.eq.s32.totalorder %v4679, 1
    %vm4684 = vcmp.eq.s32.totalorder %v4680, 1
    %vm4685 = vcmp.eq.s32.totalorder %v4681, 1
    %vm4686 = vcmp.eq.s32.totalorder %v4682, 1
    %v4687 = vlaneseq
    %v4688 = vshrl.u32 %v4687, 7
    %v4689 = vsub.s32 0, %v4688
    %v4690 = vrot.slane %v4677, %v4689
    %v4691 = vlaneseq
    %v4692 = vshrl.u32 %v4691, 7
    %v4693 = vsub.s32 0, %v4692
    %v4694 = vrot.slane %v4678, %v4693
    %v4697 = vsel %vm4683, %v4690, %v4562
    %v4698 = vsel %vm4684, %v4690, %v4563
    %v4699 = vsel %vm4685, %v4690, %v4564
    %v4700 = vsel %vm4686, %v4690, %v4565
    %v4701 = vsel %vm4683, %v4694, %v4566
    %v4702 = vsel %vm4684, %v4694, %v4567
    %v4703 = vsel %vm4685, %v4694, %v4568
    %v4704 = vsel %vm4686, %v4694, %v4569
    %vm4705 = vcmp.eq.s32.totalorder %v457, %v57
    %v4706 = vsel %vm4705, 1, 0
    %v4707 = vcvt.s32.f32 %v4706
    %v4708 = vld [vmem:[%s2] sm:$0xff]
    %v4709 = vld [vmem:[%s2 + $0x8] sm:$0xff]
    %v4710 = vadd.f32 %v4708, %v4707
    %v4711 = vadd.f32 %v4709, %v4707
    %vm4712 = vcmask 64512
    %v4713 = vsel %vm4712, %v4710, 0.0
    %4714 = vadd.xlane.f32.xlu0 %v4713
    %v4715 = vpop.xlane.xlu0 %4714
    %v4716 = vsel %vm4712, %v4711, 0.0
    %4717 = vadd.xlane.f32.xlu0 %v4716
    %v4718 = vpop.xlane.xlu0 %4717
    %vm4719 = vcmp.gt.f32.partialorder %v4715, 0.0
    %vm4720 = vcmp.gt.f32.partialorder %v4718, 0.0
    %v4721 = vrsqrt.pop %v4715
    %v4722 = vrsqrt.pop %v4718
    %v4723 = vsel %vm4719, %v4721, 0.0
    %v4724 = vsel %vm4720, %v4722, 0.0
    %v4725 = vld [vmem:[%s0] sm:$0xff]
    %v4726 = vld [vmem:[%s0 + $0x8] sm:$0xff]
    %v4727 = vmul.f32 %v4723, %v4725
    %v4728 = vmul.f32 %v4724, %v4726
    %v4729 = vpack.c.bf16 %v4727, %v4727
    %v4730 = vpack.c.bf16 %v4728, %v4728
    %v4731 = vpack.c.bf16 %v4710, %v4710
    %v4732 = vpack.c.bf16 %v4711, %v4711
    %v4734 = vsel %vm4712, %v4731, 0
    %vm4736 = vcmask 1043456
    %v4738 = vsel %vm4736, %v4729, 0
    %4740 = vmatprep.subr.bf16.mxu0 0
    %4741 = vmatpush1.bf16.msra.mxu0 %v4738
    %4742 = vmatprep.subr.bf16.mxu0 0
    %4743 = vmatpush1.bf16.msra.mxu0 0
    %4744 = vmatprep.subr.bf16.mxu0 0
    %4745 = vmatpush1.bf16.msra.mxu0 0
    %4746 = vmatprep.subr.bf16.mxu0 0
    %4747 = vmatpush1.bf16.msra.mxu0 0
    %4748 = vmatprep.subr.bf16.mxu0 0
    %4749 = vmatpush1.bf16.msra.mxu0 0
    %4750 = vmatprep.subr.bf16.mxu0 0
    %4751 = vmatpush1.bf16.msra.mxu0 0
    %4752 = vmatprep.subr.bf16.mxu0 0
    %4753 = vmatpush1.bf16.msra.mxu0 0
    %4754 = vmatprep.subr.bf16.mxu0 0
    %4755 = vmatpush1.bf16.msra.mxu0 0
    %4756 = vmatprep.subr.bf16.mxu0 0
    %4757 = vmatpush1.bf16.msra.mxu0 0
    %4758 = vmatprep.subr.bf16.mxu0 0
    %4759 = vmatpush1.bf16.msra.mxu0 0
    %4760 = vmatprep.subr.bf16.mxu0 0
    %4761 = vmatpush1.bf16.msra.mxu0 0
    %4762 = vmatprep.subr.bf16.mxu0 0
    %4763 = vmatpush1.bf16.msra.mxu0 0
    %4764 = vmatprep.subr.bf16.mxu0 0
    %4765 = vmatpush1.bf16.msra.mxu0 0
    %4766 = vmatprep.subr.bf16.mxu0 0
    %4767 = vmatpush1.bf16.msra.mxu0 0
    %4768 = vmatprep.subr.bf16.mxu0 0
    %4769 = vmatpush1.bf16.msra.mxu0 0
    %4770 = vmatprep.subr.bf16.mxu0 0
    %4771 = vmatpush1.bf16.msra.mxu0 0
    %4772 = vmatprep.mubr.bf16.mxu0 0
    %4773 = vmatmul.mubr.bf16.gmra.mrb[0].mxu0 %v4734
    %v4774 = vpop.f32.mrb[0].mxu0
    %v4775 = vadd.f32 0.0, %v4774
    %v4776 = vpop.f32.mrb[0].mxu0
    %v4777 = vpop.f32.mrb[0].mxu0
    %v4778 = vpop.f32.mrb[0].mxu0
    %4779 = vdwg.mxu0
    %v4781 = vsel %vm4712, %v4732, 0
    %v4784 = vsel %vm4736, %v4730, 0
    %4786 = vmatprep.subr.bf16.mxu0 0
    %4787 = vmatpush1.bf16.msra.mxu0 %v4784
    %4788 = vmatprep.subr.bf16.mxu0 0
    %4789 = vmatpush1.bf16.msra.mxu0 0
    %4790 = vmatprep.subr.bf16.mxu0 0
    %4791 = vmatpush1.bf16.msra.mxu0 0
    %4792 = vmatprep.subr.bf16.mxu0 0
    %4793 = vmatpush1.bf16.msra.mxu0 0
    %4794 = vmatprep.subr.bf16.mxu0 0
    %4795 = vmatpush1.bf16.msra.mxu0 0
    %4796 = vmatprep.subr.bf16.mxu0 0
    %4797 = vmatpush1.bf16.msra.mxu0 0
    %4798 = vmatprep.subr.bf16.mxu0 0
    %4799 = vmatpush1.bf16.msra.mxu0 0
    %4800 = vmatprep.subr.bf16.mxu0 0
    %4801 = vmatpush1.bf16.msra.mxu0 0
    %4802 = vmatprep.subr.bf16.mxu0 0
    %4803 = vmatpush1.bf16.msra.mxu0 0
    %4804 = vmatprep.subr.bf16.mxu0 0
    %4805 = vmatpush1.bf16.msra.mxu0 0
    %4806 = vmatprep.subr.bf16.mxu0 0
    %4807 = vmatpush1.bf16.msra.mxu0 0
    %4808 = vmatprep.subr.bf16.mxu0 0
    %4809 = vmatpush1.bf16.msra.mxu0 0
    %4810 = vmatprep.subr.bf16.mxu0 0
    %4811 = vmatpush1.bf16.msra.mxu0 0
    %4812 = vmatprep.subr.bf16.mxu0 0
    %4813 = vmatpush1.bf16.msra.mxu0 0
    %4814 = vmatprep.subr.bf16.mxu0 0
    %4815 = vmatpush1.bf16.msra.mxu0 0
    %4816 = vmatprep.subr.bf16.mxu0 0
    %4817 = vmatpush1.bf16.msra.mxu0 0
    %4818 = vmatprep.mubr.bf16.mxu0 0
    %4819 = vmatmul.mubr.bf16.gmra.mrb[0].mxu0 %v4781
    %v4820 = vpop.f32.mrb[0].mxu0
    %v4821 = vadd.f32 0.0, %v4820
    %v4822 = vpop.f32.mrb[0].mxu0
    %v4823 = vpop.f32.mrb[0].mxu0
    %v4824 = vpop.f32.mrb[0].mxu0
    %4825 = vdwg.mxu0
    %v4826 = vmul.f32 %v4723, %v4775
    %v4827 = vmul.f32 %v4724, %v4821
    %v4828 = vpack.c.bf16 %v4826, %v4826
    %v4829 = vpack.c.bf16 %v4827, %v4827
    %v4830 = vpack.c.bf16 %v4698, %v4697
    %v4831 = vpack.c.bf16 %v4700, %v4699
    %v4832 = vpack.c.bf16 %v4702, %v4701
    %v4833 = vpack.c.bf16 %v4704, %v4703
    %4836 = vrot.lane.b32.xlu0 %v4830, 32
    %v4837 = vpop.permute.xlu0 %4836
    %4838 = vrot.lane.b32.xlu0 %v4831, 32
    %v4839 = vpop.permute.xlu0 %4838
    %v4843 = vsel %vm378, %v4828, 0
    %4845 = vmatprep.subr.bf16.mxu0 0
    %4846 = vmatpush1.bf16.msra.mxu0 %v4837
    %4847 = vmatprep.subr.bf16.mxu0 0
    %4848 = vmatpush1.bf16.msra.mxu0 %v4839
    %4849 = vmatprep.subr.bf16.mxu0 0
    %4850 = vmatpush1.bf16.msra.mxu0 0
    %4851 = vmatprep.subr.bf16.mxu0 0
    %4852 = vmatpush1.bf16.msra.mxu0 0
    %4853 = vmatprep.subr.bf16.mxu0 0
    %4854 = vmatpush1.bf16.msra.mxu0 0
    %4855 = vmatprep.subr.bf16.mxu0 0
    %4856 = vmatpush1.bf16.msra.mxu0 0
    %4857 = vmatprep.subr.bf16.mxu0 0
    %4858 = vmatpush1.bf16.msra.mxu0 0
    %4859 = vmatprep.subr.bf16.mxu0 0
    %4860 = vmatpush1.bf16.msra.mxu0 0
    %4861 = vmatprep.subr.bf16.mxu0 0
    %4862 = vmatpush1.bf16.msra.mxu0 0
    %4863 = vmatprep.subr.bf16.mxu0 0
    %4864 = vmatpush1.bf16.msra.mxu0 0
    %4865 = vmatprep.subr.bf16.mxu0 0
    %4866 = vmatpush1.bf16.msra.mxu0 0
    %4867 = vmatprep.subr.bf16.mxu0 0
    %4868 = vmatpush1.bf16.msra.mxu0 0
    %4869 = vmatprep.subr.bf16.mxu0 0
    %4870 = vmatpush1.bf16.msra.mxu0 0
    %4871 = vmatprep.subr.bf16.mxu0 0
    %4872 = vmatpush1.bf16.msra.mxu0 0
    %4873 = vmatprep.subr.bf16.mxu0 0
    %4874 = vmatpush1.bf16.msra.mxu0 0
    %4875 = vmatprep.subr.bf16.mxu0 0
    %4876 = vmatpush1.bf16.msra.mxu0 0
    %4877 = vmatprep.mubr.bf16.mxu0 0
    %4878 = vmatmul.mubr.bf16.gmra.mrb[0].mxu0 %v4843
    %v4879 = vpop.f32.mrb[0].mxu0
    %v4880 = vadd.f32 0.0, %v4879
    %v4881 = vpop.f32.mrb[0].mxu0
    %v4882 = vpop.f32.mrb[0].mxu0
    %v4883 = vpop.f32.mrb[0].mxu0
    %4884 = vdwg.mxu0
    %4887 = vrot.lane.b32.xlu0 %v4832, 32
    %v4888 = vpop.permute.xlu0 %4887
    %4889 = vrot.lane.b32.xlu0 %v4833, 32
    %v4890 = vpop.permute.xlu0 %4889
    %v4894 = vsel %vm378, %v4829, 0
    %4896 = vmatprep.subr.bf16.mxu0 0
    %4897 = vmatpush1.bf16.msra.mxu0 %v4888
    %4898 = vmatprep.subr.bf16.mxu0 0
    %4899 = vmatpush1.bf16.msra.mxu0 %v4890
    %4900 = vmatprep.subr.bf16.mxu0 0
    %4901 = vmatpush1.bf16.msra.mxu0 0
    %4902 = vmatprep.subr.bf16.mxu0 0
    %4903 = vmatpush1.bf16.msra.mxu0 0
    %4904 = vmatprep.subr.bf16.mxu0 0
    %4905 = vmatpush1.bf16.msra.mxu0 0
    %4906 = vmatprep.subr.bf16.mxu0 0
    %4907 = vmatpush1.bf16.msra.mxu0 0
    %4908 = vmatprep.subr.bf16.mxu0 0
    %4909 = vmatpush1.bf16.msra.mxu0 0
    %4910 = vmatprep.subr.bf16.mxu0 0
    %4911 = vmatpush1.bf16.msra.mxu0 0
    %4912 = vmatprep.subr.bf16.mxu0 0
    %4913 = vmatpush1.bf16.msra.mxu0 0
    %4914 = vmatprep.subr.bf16.mxu0 0
    %4915 = vmatpush1.bf16.msra.mxu0 0
    %4916 = vmatprep.subr.bf16.mxu0 0
    %4917 = vmatpush1.bf16.msra.mxu0 0
    %4918 = vmatprep.subr.bf16.mxu0 0
    %4919 = vmatpush1.bf16.msra.mxu0 0
    %4920 = vmatprep.subr.bf16.mxu0 0
    %4921 = vmatpush1.bf16.msra.mxu0 0
    %4922 = vmatprep.subr.bf16.mxu0 0
    %4923 = vmatpush1.bf16.msra.mxu0 0
    %4924 = vmatprep.subr.bf16.mxu0 0
    %4925 = vmatpush1.bf16.msra.mxu0 0
    %4926 = vmatprep.subr.bf16.mxu0 0
    %4927 = vmatpush1.bf16.msra.mxu0 0
    %4928 = vmatprep.mubr.bf16.mxu0 0
    %4929 = vmatmul.mubr.bf16.gmra.mrb[0].mxu0 %v4894
    %v4930 = vpop.f32.mrb[0].mxu0
    %v4931 = vadd.f32 0.0, %v4930
    %v4932 = vpop.f32.mrb[0].mxu0
    %v4933 = vpop.f32.mrb[0].mxu0
    %v4934 = vpop.f32.mrb[0].mxu0
    %4935 = vdwg.mxu0
    %v4936 = vxor.u32 %v4880, 2147483648
    %v4937 = vxor.u32 %v4931, 2147483648
    %v4938 = vmul.f32 %v4936, 1.442695
    %v4939 = vpow.pop %v4938
    %v4940 = vmul.f32 %v4937, 1.442695
    %v4941 = vpow.pop %v4940
    %v4942 = vadd.f32 %v4939, 1.0
    %v4943 = vadd.f32 %v4941, 1.0
    %v4944 = vrcp.pop %v4942
    %v4945 = vmul.f32 1.0, %v4944
    %v4946 = vrcp.pop %v4943
    %v4947 = vmul.f32 1.0, %v4946
    %4948 = vst.msk [vmem:[#allocation2] sm:$0xff] %vm378, %v4945
    %4949 = vst.msk [vmem:[#allocation2 + $0x8] sm:$0xff] %vm378, %v4947
    // Predicated region
    $region34: #{gcn_forward.1} parent=1 // pred_check
      _
    $region35: #{gcn_forward.1} parent=1 // pred_check_branch
      %4951 = sbr.rel (0) target = $region37
    $region36: #{gcn_forward.1} parent=1 // pred_region
      %s4953 = ssub.s32 256, 256
      %4954 = vsyncadd [#allocation3], %s4953
      %s4955 = sshll.u32 [#allocation2], 4
      %s4956 = int_to_ptr.vmem [resolvable:$true] %s4955
      %4961 = dma.vmem_to_hbm [thread:$0]  %s4956, 256, %s8, [#allocation3], 128, 128, 8
    $region37: #{gcn_forward.1} parent=1 // pred_fallthru
      _
    // Predicated region
    $region38: #{gcn_forward.1} parent=1 // pred_check
      _
    $region39: #{gcn_forward.1} parent=1 // pred_check_branch
      %4963 = sbr.rel (0) target = $region41
    $region40: #{gcn_forward.1} parent=1 // pred_region
      %4964 = dma.done [#allocation3], 256
    $region41: #{gcn_forward.1} parent=1 // pred_fallthru
      _
    %4965 = vsyncpa [#allocation3], 1

</llo_original>
